<compile_context>
chip_gen: v6e
topology: v6e:2x2x1
jax: 0.10.0
libtpu: 0.0.40
codegen_flags: <defaults>
</compile_context>

<pallas_src>
import functools

import jax
import jax.numpy as jnp
from jax import lax
from jax.experimental import pallas as pl
from jax.experimental.pallas import tpu as pltpu


def regressor_kernel(x_ref,
                     w1_ref, b1_ref,
                     w2_ref, b2_ref,
                     w3_ref, b3_ref,
                     w4_ref, b4_ref,
                     w5_ref, b5_ref,
                     o_ref, *, num_splits):
    """Fused MLP tile: (Linear -> ReLU) x4 -> Linear -> sigmoid.

    x_ref is (TILE_B, in_size) f32 in natural layout; weights are in PyTorch
    (out, in) layout (bf16), biases are (out, 1) bf16, the final layer's weight
    is (64, 1) f32 and bias (1, 1) f32.  Output is a lane-dense (1, TILE_B) row.
    """
    tile = x_ref.shape[0]
    sub = tile // num_splits

    def dense_relu(h_bf, w_ref, b_ref):
        # bf16 x bf16 MXU matmul with f32 accumulation; epilogue (downcast +
        # bias + ReLU) in bf16 -- halves the VALU work and produces exactly the
        # operand dtype the next matmul needs.
        y = jnp.dot(w_ref[...], h_bf, preferred_element_type=jnp.float32)
        return jnp.maximum(y.astype(jnp.bfloat16) + b_ref[...], 0)

    # Independent lane sub-tiles: two chains in straight-line code so the
    # scheduler can hide one chain's VPU epilogue under the other's matmul.
    for s in range(num_splits):
        lo, hi = s * sub, (s + 1) * sub

        # Layer 1: cast in-kernel and contract the feature dim of W1 with the
        # feature dim of x, so the result lands directly in the transposed
        # (features, batch) layout with batch on lanes.
        x_bf = x_ref[lo:hi, :].astype(jnp.bfloat16)               # (sub, in)
        y1 = lax.dot_general(w1_ref[...], x_bf,
                             (((1,), (1,)), ((), ())),
                             preferred_element_type=jnp.float32)  # (512, sub)
        h = jnp.maximum(y1.astype(jnp.bfloat16) + b1_ref[...], 0)
        # Dropout(p=0.3): identity at inference.
        h = dense_relu(h, w2_ref, b2_ref)                         # (256, sub)
        # Dropout(p=0.2): identity at inference.
        h = dense_relu(h, w3_ref, b3_ref)                         # (128, sub)
        # Dropout(p=0.2): identity at inference.
        h = dense_relu(h, w4_ref, b4_ref)                         # (64, sub)
        # Dropout(p=0.2): identity at inference.

        # Final 64 -> 1 layer on VPU + sublane reduce (skip a 1-column MXU pass).
        z = jnp.sum(h.astype(jnp.float32) * w5_ref[...], axis=0,
                    keepdims=True) + b5_ref[...]                  # (1, sub) f32
        # Sigmoid: exp and approx reciprocal both go to the EUP slot.
        o_ref[:, lo:hi] = pl.reciprocal(1.0 + jnp.exp(-z), approx=True)


def init_params(key, input_size):
    """PyTorch nn.Linear default init, PyTorch (out, in) weight layout."""
    dims = [input_size, 512, 256, 128, 64, 1]
    params = []
    for fan_in, fan_out in zip(dims[:-1], dims[1:]):
        key, kw, kb = jax.random.split(key, 3)
        bound = 1.0 / (fan_in ** 0.5)
        w = jax.random.uniform(kw, (fan_out, fan_in), jnp.float32, -bound, bound)
        b = jax.random.uniform(kb, (fan_out,), jnp.float32, -bound, bound)
        params.append((w, b))
    return params


def _choose_tile(batch, tile_b):
    """Pick the lane tile: big enough to amortize per-step overhead, small
    enough not to waste work on tiny batches, and >= 2 grid steps whenever the
    batch spans >= 2 lane groups (so both v7x TensorCores are used)."""
    lanes = ((max(batch, 1) + 127) // 128) * 128
    tile = max(128, min(int(tile_b), lanes))
    tile = ((tile + 127) // 128) * 128
    if lanes >= 256 and pl.cdiv(batch, tile) < 2:
        tile = max(128, ((lanes // 2 + 127) // 128) * 128)
    return tile


@functools.partial(jax.jit, static_argnames=("tile_b",))
def regressor_forward(x, params, tile_b=512):
    """x: (B, input_size) float32.  Returns sigmoid(logits) of shape (B,).

    tile_b=512 default (v6e/v7x sweet spot); on v5e 256-512 also works and the
    resident footprint here is well under the 16 MiB scoped-VMEM default.
    """
    B, in_size = x.shape
    tile = _choose_tile(B, tile_b)
    num_splits = 2 if tile % 256 == 0 else 1
    n_tiles = pl.cdiv(B, tile)
    b_pad = n_tiles * tile

    (w1, b1), (w2, b2), (w3, b3), (w4, b4), (w5, b5) = params
    inputs = [x]                                      # natural (B, in) f32 layout
    for w, b in ((w1, b1), (w2, b2), (w3, b3), (w4, b4)):
        inputs.append(w.astype(jnp.bfloat16))         # (out, in)  bf16 MXU operand
        inputs.append(b.reshape(-1, 1).astype(jnp.bfloat16))  # (out, 1) bf16
    inputs.append(w5.T.astype(jnp.float32))           # (64, 1) f32 (VPU tail)
    inputs.append(b5.reshape(1, 1).astype(jnp.float32))  # (1, 1) f32

    # x block moves with the grid; every weight/bias uses a constant index_map
    # so it is fetched once and stays VMEM-resident across batch tiles.
    in_specs = [pl.BlockSpec((tile, in_size), lambda i: (i, 0))]
    in_specs += [pl.BlockSpec(a.shape, lambda i: (0, 0)) for a in inputs[1:]]

    # Advisory cost estimate so XLA can overlap this call with neighbours.
    dims = [in_size] + [w.shape[0] for w, _ in params]
    flops = 2 * b_pad * sum(di * do for di, do in zip(dims[:-1], dims[1:]))
    bytes_accessed = sum(int(a.size) * a.dtype.itemsize for a in inputs)
    bytes_accessed += b_pad * 4
    cost = pl.CostEstimate(flops=flops, transcendentals=2 * b_pad,
                           bytes_accessed=bytes_accessed)

    out = pl.pallas_call(
        functools.partial(regressor_kernel, num_splits=num_splits),
        out_shape=jax.ShapeDtypeStruct((1, b_pad), jnp.float32),
        grid=(n_tiles,),
        in_specs=in_specs,
        out_specs=pl.BlockSpec((1, tile), lambda i: (0, i)),
        compiler_params=pltpu.CompilerParams(
            # Batch tiles are independent -> megacore-shardable on v7x.
            dimension_semantics=("parallel",)),
        cost_estimate=cost,
    )(*inputs)

    # torch.sigmoid(z1).squeeze(): drop lane padding + trailing size-1 dim.
    # (Ragged last x block reads unspecified tail rows; those lanes never feed a
    #  cross-lane reduction and are sliced off here, so this is safe.)
    return out[0, :B]


def reference_forward_matched(x, params):
    """Pure-JAX reference mirroring the kernel's dtype choices exactly."""
    h_bf = x.astype(jnp.bfloat16)
    for w, b in params[:-1]:
        y = jnp.dot(h_bf, w.T.astype(jnp.bfloat16),
                    preferred_element_type=jnp.float32)
        h_bf = jnp.maximum(y.astype(jnp.bfloat16) + b.astype(jnp.bfloat16), 0)
    w5, b5 = params[-1]
    z = h_bf.astype(jnp.float32) @ w5.T + b5          # f32 tail, like the kernel
    return jax.nn.sigmoid(z)[:, 0]


def reference_forward_f32(x, params):
    """Full-float32 reference of the original PyTorch module."""
    h = x
    for i, (w, b) in enumerate(params):
        h = h @ w.T + b
        if i < len(params) - 1:
            h = jnp.maximum(h, 0.0)
    return jax.nn.sigmoid(h)[:, 0]


if __name__ == "__main__":
    key = jax.random.PRNGKey(0)
    kx, kp, kx2 = jax.random.split(key, 3)

    input_size = 32
    params = init_params(kp, input_size)

    # Small case (single 128-lane tile, no split).
    batch = 8
    x = jax.random.normal(kx, (batch, input_size), dtype=jnp.float32)
    z = jax.block_until_ready(regressor_forward(x, params))
    assert z.shape == (batch,)

    z_ref = reference_forward_matched(x, params)
    assert jnp.allclose(z, z_ref, atol=5e-3, rtol=5e-3), \
        float(jnp.max(jnp.abs(z - z_ref)))
    z_f32 = reference_forward_f32(x, params)
    assert jnp.allclose(z, z_f32, atol=3e-2, rtol=3e-2), \
        float(jnp.max(jnp.abs(z - z_f32)))

    # Larger case exercising the multi-tile / split (tile=512, 2 sub-tiles) path
    # with a ragged last block.
    batch2 = 1000
    x2 = jax.random.normal(kx2, (batch2, input_size), dtype=jnp.float32)
    z2 = jax.block_until_ready(regressor_forward(x2, params))
    assert z2.shape == (batch2,)
    z2_ref = reference_forward_matched(x2, params)
    assert jnp.allclose(z2, z2_ref, atol=5e-3, rtol=5e-3), \
        float(jnp.max(jnp.abs(z2 - z2_ref)))

    print("KERNEL_OK")
</pallas_src>

<mosaic_0001>
module attributes {stable_mosaic.version = 11 : i64} {
  func.func @regressor_kernel(%arg0: i32, %arg1: memref<128x32xf32, #tpu.memory_space<vmem>>, %arg2: memref<512x32xbf16, #tpu.memory_space<vmem>>, %arg3: memref<512x1xbf16, #tpu.memory_space<vmem>>, %arg4: memref<256x512xbf16, #tpu.memory_space<vmem>>, %arg5: memref<256x1xbf16, #tpu.memory_space<vmem>>, %arg6: memref<128x256xbf16, #tpu.memory_space<vmem>>, %arg7: memref<128x1xbf16, #tpu.memory_space<vmem>>, %arg8: memref<64x128xbf16, #tpu.memory_space<vmem>>, %arg9: memref<64x1xbf16, #tpu.memory_space<vmem>>, %arg10: memref<64x1xf32, #tpu.memory_space<vmem>>, %arg11: memref<1x1xf32, #tpu.memory_space<vmem>>, %arg12: memref<1x128xf32, #tpu.memory_space<vmem>>) attributes {dimension_semantics = [#tpu.dimension_semantics<parallel>], iteration_bounds = array<i64: 1>, scalar_prefetch = 0 : i64, scratch_operands = 0 : i64, tpu.core_type = #tpu.core_type<tc>, window_params = [{transform_indices = @transform_0, window_bounds = array<i64: 128, 32>}, {pipeline_mode = #tpu.pipeline_mode<synchronous>, transform_indices = @transform_1, window_bounds = array<i64: 512, 32>}, {pipeline_mode = #tpu.pipeline_mode<synchronous>, transform_indices = @transform_2, window_bounds = array<i64: 512, 1>}, {pipeline_mode = #tpu.pipeline_mode<synchronous>, transform_indices = @transform_3, window_bounds = array<i64: 256, 512>}, {pipeline_mode = #tpu.pipeline_mode<synchronous>, transform_indices = @transform_4, window_bounds = array<i64: 256, 1>}, {pipeline_mode = #tpu.pipeline_mode<synchronous>, transform_indices = @transform_5, window_bounds = array<i64: 128, 256>}, {pipeline_mode = #tpu.pipeline_mode<synchronous>, transform_indices = @transform_6, window_bounds = array<i64: 128, 1>}, {pipeline_mode = #tpu.pipeline_mode<synchronous>, transform_indices = @transform_7, window_bounds = array<i64: 64, 128>}, {pipeline_mode = #tpu.pipeline_mode<synchronous>, transform_indices = @transform_8, window_bounds = array<i64: 64, 1>}, {pipeline_mode = #tpu.pipeline_mode<synchronous>, transform_indices = @transform_9, window_bounds = array<i64: 64, 1>}, {pipeline_mode = #tpu.pipeline_mode<synchronous>, transform_indices = @transform_10, window_bounds = array<i64: 1, 1>}, {transform_indices = @transform_11, window_bounds = array<i64: 1, 128>}]} {
    %c0 = arith.constant 0 : index
    %c0_0 = arith.constant 0 : index
    %0 = vector.load %arg1[%c0, %c0_0] : memref<128x32xf32, #tpu.memory_space<vmem>>, vector<128x32xf32>
    %1 = arith.truncf %0 : vector<128x32xf32> to vector<128x32xbf16>
    %c0_1 = arith.constant 0 : index
    %c0_2 = arith.constant 0 : index
    %2 = vector.load %arg2[%c0_1, %c0_2] : memref<512x32xbf16, #tpu.memory_space<vmem>>, vector<512x32xbf16>
    %cst = arith.constant dense<0.000000e+00> : vector<512x128xf32>
    %3 = tpu.matmul %2, %1, %cst {dimension_numbers = #tpu.dot_dimension_numbers<[1], [1], [0], [0], [0, 0, 1, 0], [], []>} : vector<512x32xbf16>, vector<128x32xbf16>, vector<512x128xf32> -> vector<512x128xf32>
    %4 = arith.truncf %3 : vector<512x128xf32> to vector<512x128xbf16>
    %c0_3 = arith.constant 0 : index
    %c0_4 = arith.constant 0 : index
    %5 = vector.load %arg3[%c0_3, %c0_4] : memref<512x1xbf16, #tpu.memory_space<vmem>>, vector<512x1xbf16>
    %6 = vector.broadcast %5 : vector<512x1xbf16> to vector<512x128xbf16>
    %7 = arith.addf %4, %6 : vector<512x128xbf16>
    %cst_5 = arith.constant 0.000000e+00 : bf16
    %8 = vector.broadcast %cst_5 : bf16 to vector<512x128xbf16>
    %9 = arith.maximumf %7, %8 : vector<512x128xbf16>
    %c0_6 = arith.constant 0 : index
    %c0_7 = arith.constant 0 : index
    %10 = vector.load %arg4[%c0_6, %c0_7] : memref<256x512xbf16, #tpu.memory_space<vmem>>, vector<256x512xbf16>
    %cst_8 = arith.constant dense<0.000000e+00> : vector<256x128xf32>
    %11 = tpu.matmul %10, %9, %cst_8 {dimension_numbers = #tpu.dot_dimension_numbers<[1], [0], [0], [1], [0, 0, 1, 1], [], []>} : vector<256x512xbf16>, vector<512x128xbf16>, vector<256x128xf32> -> vector<256x128xf32>
    %12 = arith.truncf %11 : vector<256x128xf32> to vector<256x128xbf16>
    %c0_9 = arith.constant 0 : index
    %c0_10 = arith.constant 0 : index
    %13 = vector.load %arg5[%c0_9, %c0_10] : memref<256x1xbf16, #tpu.memory_space<vmem>>, vector<256x1xbf16>
    %14 = vector.broadcast %13 : vector<256x1xbf16> to vector<256x128xbf16>
    %15 = arith.addf %12, %14 : vector<256x128xbf16>
    %cst_11 = arith.constant 0.000000e+00 : bf16
    %16 = vector.broadcast %cst_11 : bf16 to vector<256x128xbf16>
    %17 = arith.maximumf %15, %16 : vector<256x128xbf16>
    %c0_12 = arith.constant 0 : index
    %c0_13 = arith.constant 0 : index
    %18 = vector.load %arg6[%c0_12, %c0_13] : memref<128x256xbf16, #tpu.memory_space<vmem>>, vector<128x256xbf16>
    %cst_14 = arith.constant dense<0.000000e+00> : vector<128x128xf32>
    %19 = tpu.matmul %18, %17, %cst_14 {dimension_numbers = #tpu.dot_dimension_numbers<[1], [0], [0], [1], [0, 0, 1, 1], [], []>} : vector<128x256xbf16>, vector<256x128xbf16>, vector<128x128xf32> -> vector<128x128xf32>
    %20 = arith.truncf %19 : vector<128x128xf32> to vector<128x128xbf16>
    %c0_15 = arith.constant 0 : index
    %c0_16 = arith.constant 0 : index
    %21 = vector.load %arg7[%c0_15, %c0_16] : memref<128x1xbf16, #tpu.memory_space<vmem>>, vector<128x1xbf16>
    %22 = vector.broadcast %21 : vector<128x1xbf16> to vector<128x128xbf16>
    %23 = arith.addf %20, %22 : vector<128x128xbf16>
    %cst_17 = arith.constant 0.000000e+00 : bf16
    %24 = vector.broadcast %cst_17 : bf16 to vector<128x128xbf16>
    %25 = arith.maximumf %23, %24 : vector<128x128xbf16>
    %c0_18 = arith.constant 0 : index
    %c0_19 = arith.constant 0 : index
    %26 = vector.load %arg8[%c0_18, %c0_19] : memref<64x128xbf16, #tpu.memory_space<vmem>>, vector<64x128xbf16>
    %cst_20 = arith.constant dense<0.000000e+00> : vector<64x128xf32>
    %27 = tpu.matmul %26, %25, %cst_20 {dimension_numbers = #tpu.dot_dimension_numbers<[1], [0], [0], [1], [0, 0, 1, 1], [], []>} : vector<64x128xbf16>, vector<128x128xbf16>, vector<64x128xf32> -> vector<64x128xf32>
    %28 = arith.truncf %27 : vector<64x128xf32> to vector<64x128xbf16>
    %c0_21 = arith.constant 0 : index
    %c0_22 = arith.constant 0 : index
    %29 = vector.load %arg9[%c0_21, %c0_22] : memref<64x1xbf16, #tpu.memory_space<vmem>>, vector<64x1xbf16>
    %30 = vector.broadcast %29 : vector<64x1xbf16> to vector<64x128xbf16>
    %31 = arith.addf %28, %30 : vector<64x128xbf16>
    %cst_23 = arith.constant 0.000000e+00 : bf16
    %32 = vector.broadcast %cst_23 : bf16 to vector<64x128xbf16>
    %33 = arith.maximumf %31, %32 : vector<64x128xbf16>
    %34 = arith.extf %33 : vector<64x128xbf16> to vector<64x128xf32>
    %c0_24 = arith.constant 0 : index
    %c0_25 = arith.constant 0 : index
    %35 = vector.load %arg10[%c0_24, %c0_25] : memref<64x1xf32, #tpu.memory_space<vmem>>, vector<64x1xf32>
    %36 = vector.broadcast %35 : vector<64x1xf32> to vector<64x128xf32>
    %37 = arith.mulf %34, %36 : vector<64x128xf32>
    %cst_26 = arith.constant dense<0.000000e+00> : vector<128xf32>
    %38 = vector.multi_reduction <add>, %37, %cst_26 [0] : vector<64x128xf32> to vector<128xf32>
    %39 = vector.shape_cast %38 : vector<128xf32> to vector<1x128xf32>
    %c0_27 = arith.constant 0 : index
    %c0_28 = arith.constant 0 : index
    %40 = vector.load %arg11[%c0_27, %c0_28] : memref<1x1xf32, #tpu.memory_space<vmem>>, vector<1x1xf32>
    %41 = vector.broadcast %40 : vector<1x1xf32> to vector<1x128xf32>
    %42 = arith.addf %39, %41 : vector<1x128xf32>
    %cst_29 = arith.constant 0.000000e+00 : f32
    %43 = vector.broadcast %cst_29 : f32 to vector<1x128xf32>
    %44 = arith.subf %43, %42 : vector<1x128xf32>
    %45 = math.exp %44 : vector<1x128xf32>
    %cst_30 = arith.constant 1.000000e+00 : f32
    %46 = vector.broadcast %cst_30 : f32 to vector<1x128xf32>
    %47 = arith.addf %46, %45 : vector<1x128xf32>
    %48 = tpu.reciprocal %47 {approx = true} : vector<1x128xf32> -> vector<1x128xf32>
    %c0_31 = arith.constant 0 : index
    %c0_32 = arith.constant 0 : index
    %49 = vector.load %arg12[%c0_31, %c0_32] : memref<1x128xf32, #tpu.memory_space<vmem>>, vector<1x128xf32>
    tpu.vector_store %arg12[%c0_31, %c0_32], %48 {strides = array<i32>} : memref<1x128xf32, #tpu.memory_space<vmem>>, vector<1x128xf32>,
    return
  }
  func.func @transform_0(%arg0: i32) -> (i32, i32) {
    %c0_i32 = arith.constant 0 : i32
    %c0_i32_0 = arith.constant 0 : i32
    return %arg0, %c0_i32 : i32, i32
  }
  func.func @transform_1(%arg0: i32) -> (i32, i32) {
    %c0_i32 = arith.constant 0 : i32
    %c0_i32_0 = arith.constant 0 : i32
    %c0_i32_1 = arith.constant 0 : i32
    return %c0_i32, %c0_i32_0 : i32, i32
  }
  func.func @transform_2(%arg0: i32) -> (i32, i32) {
    %c0_i32 = arith.constant 0 : i32
    %c0_i32_0 = arith.constant 0 : i32
    %c0_i32_1 = arith.constant 0 : i32
    return %c0_i32, %c0_i32_0 : i32, i32
  }
  func.func @transform_3(%arg0: i32) -> (i32, i32) {
    %c0_i32 = arith.constant 0 : i32
    %c0_i32_0 = arith.constant 0 : i32
    %c0_i32_1 = arith.constant 0 : i32
    return %c0_i32, %c0_i32_0 : i32, i32
  }
  func.func @transform_4(%arg0: i32) -> (i32, i32) {
    %c0_i32 = arith.constant 0 : i32
    %c0_i32_0 = arith.constant 0 : i32
    %c0_i32_1 = arith.constant 0 : i32
    return %c0_i32, %c0_i32_0 : i32, i32
  }
  func.func @transform_5(%arg0: i32) -> (i32, i32) {
    %c0_i32 = arith.constant 0 : i32
    %c0_i32_0 = arith.constant 0 : i32
    %c0_i32_1 = arith.constant 0 : i32
    return %c0_i32, %c0_i32_0 : i32, i32
  }
  func.func @transform_6(%arg0: i32) -> (i32, i32) {
    %c0_i32 = arith.constant 0 : i32
    %c0_i32_0 = arith.constant 0 : i32
    %c0_i32_1 = arith.constant 0 : i32
    return %c0_i32, %c0_i32_0 : i32, i32
  }
  func.func @transform_7(%arg0: i32) -> (i32, i32) {
    %c0_i32 = arith.constant 0 : i32
    %c0_i32_0 = arith.constant 0 : i32
    %c0_i32_1 = arith.constant 0 : i32
    return %c0_i32, %c0_i32_0 : i32, i32
  }
  func.func @transform_8(%arg0: i32) -> (i32, i32) {
    %c0_i32 = arith.constant 0 : i32
    %c0_i32_0 = arith.constant 0 : i32
    %c0_i32_1 = arith.constant 0 : i32
    return %c0_i32, %c0_i32_0 : i32, i32
  }
  func.func @transform_9(%arg0: i32) -> (i32, i32) {
    %c0_i32 = arith.constant 0 : i32
    %c0_i32_0 = arith.constant 0 : i32
    %c0_i32_1 = arith.constant 0 : i32
    return %c0_i32, %c0_i32_0 : i32, i32
  }
  func.func @transform_10(%arg0: i32) -> (i32, i32) {
    %c0_i32 = arith.constant 0 : i32
    %c0_i32_0 = arith.constant 0 : i32
    %c0_i32_1 = arith.constant 0 : i32
    return %c0_i32, %c0_i32_0 : i32, i32
  }
  func.func @transform_11(%arg0: i32) -> (i32, i32) {
    %c0_i32 = arith.constant 0 : i32
    %c0_i32_0 = arith.constant 0 : i32
    return %c0_i32, %arg0 : i32, i32
  }
}

</mosaic_0001>

<llo_original>
// kernel: regressor_forward.1
$region0: #{regressor_forward.1}
  #allocation0 [shape = 'u32[]', space=smem, size = 0x4, offset = 0x4, fixed_abs, tag = 'smem constant byte address 0x4 - core index']
  #allocation1 [shape = 'u32[144,128]{1,0:T(1,128)}', space=vmem, size = 0x12000, scoped, tag = 'internal scratch']
  #allocation2 [shape = 'f32[1,1]{1,0:T(1,128)S(1)}', space=vmem, size = 0x200, scoped, tag = 'scoped memory for regressor_forward.1']
  %s0 = inlined_call_operand.vmem [shape: f32[8,32], index: 0, kind: input, shape index: {}]
  %s1 = inlined_call_operand.vmem [shape: bf16[512,32], index: 1, kind: input, shape index: {}]
  %s2 = inlined_call_operand.vmem [shape: bf16[512,1], index: 2, kind: input, shape index: {}]
  %s3 = inlined_call_operand.vmem [shape: bf16[256,512], index: 3, kind: input, shape index: {}]
  %s4 = inlined_call_operand.vmem [shape: bf16[256,1], index: 4, kind: input, shape index: {}]
  %s5 = inlined_call_operand.vmem [shape: bf16[128,256], index: 5, kind: input, shape index: {}]
  %s6 = inlined_call_operand.vmem [shape: bf16[128,1], index: 6, kind: input, shape index: {}]
  %s7 = inlined_call_operand.vmem [shape: bf16[64,128], index: 7, kind: input, shape index: {}]
  %s8 = inlined_call_operand.vmem [shape: bf16[64,1], index: 8, kind: input, shape index: {}]
  %s9 = inlined_call_operand.vmem [shape: f32[64,1], index: 9, kind: input, shape index: {}]
  %s10 = inlined_call_operand.<no memory space> [shape: f32[1,1], index: 10, kind: input, shape index: {}]
  %s11 = inlined_call_operand.vmem [shape: f32[1,128], index: 11, kind: output, shape index: {}]
  %s12 = sld [smem:[#allocation0]]
  $region54: #{regressor_forward.1} parent=0
    _
  %s14 = ssub.s32 1, %s12
  %s15 = scalar_select 0, %s14, %s12
  %v16 = vstv %s10
  %17 = vst [vmem:[#allocation2] sm:$0x1] %v16
  // Predicated region
  $region2: #{regressor_forward.1} parent=0 // pred_check
    _
  $region3: #{regressor_forward.1} parent=0 // pred_check_branch
    %19 = sbr.rel (0) target = $region5
  $region4: #{regressor_forward.1} parent=0 // pred_region
    _
  $region5: #{regressor_forward.1} parent=0 // pred_fallthru
    _
  // Predicated region
  $region6: #{regressor_forward.1} parent=0 // pred_check
    _
  $region7: #{regressor_forward.1} parent=0 // pred_check_branch
    %21 = sbr.rel (0) target = $region9
  $region8: #{regressor_forward.1} parent=0 // pred_region
    _
  $region9: #{regressor_forward.1} parent=0 // pred_fallthru
    _
  // Predicated region
  $region10: #{regressor_forward.1} parent=0 // pred_check
    _
  $region11: #{regressor_forward.1} parent=0 // pred_check_branch
    %23 = sbr.rel (0) target = $region13
  $region12: #{regressor_forward.1} parent=0 // pred_region
    _
  $region13: #{regressor_forward.1} parent=0 // pred_fallthru
    _
  // Predicated region
  $region14: #{regressor_forward.1} parent=0 // pred_check
    _
  $region15: #{regressor_forward.1} parent=0 // pred_check_branch
    %25 = sbr.rel (0) target = $region17
  $region16: #{regressor_forward.1} parent=0 // pred_region
    _
  $region17: #{regressor_forward.1} parent=0 // pred_fallthru
    _
  // Predicated region
  $region18: #{regressor_forward.1} parent=0 // pred_check
    _
  $region19: #{regressor_forward.1} parent=0 // pred_check_branch
    %27 = sbr.rel (0) target = $region21
  $region20: #{regressor_forward.1} parent=0 // pred_region
    _
  $region21: #{regressor_forward.1} parent=0 // pred_fallthru
    _
  // Predicated region
  $region22: #{regressor_forward.1} parent=0 // pred_check
    _
  $region23: #{regressor_forward.1} parent=0 // pred_check_branch
    %29 = sbr.rel (0) target = $region25
  $region24: #{regressor_forward.1} parent=0 // pred_region
    _
  $region25: #{regressor_forward.1} parent=0 // pred_fallthru
    _
  // Predicated region
  $region26: #{regressor_forward.1} parent=0 // pred_check
    _
  $region27: #{regressor_forward.1} parent=0 // pred_check_branch
    %31 = sbr.rel (0) target = $region29
  $region28: #{regressor_forward.1} parent=0 // pred_region
    _
  $region29: #{regressor_forward.1} parent=0 // pred_fallthru
    _
  // Predicated region
  $region30: #{regressor_forward.1} parent=0 // pred_check
    _
  $region31: #{regressor_forward.1} parent=0 // pred_check_branch
    %33 = sbr.rel (0) target = $region33
  $region32: #{regressor_forward.1} parent=0 // pred_region
    _
  $region33: #{regressor_forward.1} parent=0 // pred_fallthru
    _
  // Predicated region
  $region34: #{regressor_forward.1} parent=0 // pred_check
    _
  $region35: #{regressor_forward.1} parent=0 // pred_check_branch
    %35 = sbr.rel (0) target = $region37
  $region36: #{regressor_forward.1} parent=0 // pred_region
    _
  $region37: #{regressor_forward.1} parent=0 // pred_fallthru
    _
  // Predicated region
  $region38: #{regressor_forward.1} parent=0 // pred_check
    _
  $region39: #{regressor_forward.1} parent=0 // pred_check_branch
    %37 = sbr.rel (0) target = $region41
  $region40: #{regressor_forward.1} parent=0 // pred_region
    _
  $region41: #{regressor_forward.1} parent=0 // pred_fallthru
    _
  // Predicated region
  $region42: #{regressor_forward.1} parent=0 // pred_check
    _
  $region43: #{regressor_forward.1} parent=0 // pred_check_branch
    %39 = sbr.rel (0) target = $region45
  $region44: #{regressor_forward.1} parent=0 // pred_region
    _
  $region45: #{regressor_forward.1} parent=0 // pred_fallthru
    _
  %v41 = vld [vmem:[%s0] sm:$0xff]
  %v42 = vld [vmem:[%s0 + $0x8] sm:$0xff]
  %v43 = vld [vmem:[%s0 + $0x10] sm:$0xff]
  %v44 = vld [vmem:[%s0 + $0x18] sm:$0xff]
  %v45 = vld [vmem:[%s0 + $0x20] sm:$0xff]
  %v46 = vld [vmem:[%s0 + $0x28] sm:$0xff]
  %v47 = vld [vmem:[%s0 + $0x30] sm:$0xff]
  %v48 = vld [vmem:[%s0 + $0x38] sm:$0xff]
  %v49 = vld [vmem:[%s0 + $0x40] sm:$0xff]
  %v50 = vld [vmem:[%s0 + $0x48] sm:$0xff]
  %v51 = vld [vmem:[%s0 + $0x50] sm:$0xff]
  %v52 = vld [vmem:[%s0 + $0x58] sm:$0xff]
  %v53 = vld [vmem:[%s0 + $0x60] sm:$0xff]
  %v54 = vld [vmem:[%s0 + $0x68] sm:$0xff]
  %v55 = vld [vmem:[%s0 + $0x70] sm:$0xff]
  %v56 = vld [vmem:[%s0 + $0x78] sm:$0xff]
  %v57 = vpack.c.bf16 %v42, %v41
  %v58 = vpack.c.bf16 %v44, %v43
  %v59 = vpack.c.bf16 %v46, %v45
  %v60 = vpack.c.bf16 %v48, %v47
  %v61 = vpack.c.bf16 %v50, %v49
  %v62 = vpack.c.bf16 %v52, %v51
  %v63 = vpack.c.bf16 %v54, %v53
  %v64 = vpack.c.bf16 %v56, %v55
  %v65 = vld [vmem:[%s1] sm:$0xf]
  %v66 = vld [vmem:[%s1 + $0x4] sm:$0xf]
  %v67 = vld [vmem:[%s1 + $0x8] sm:$0xf]
  %v68 = vld [vmem:[%s1 + $0xc] sm:$0xf]
  %v69 = vld [vmem:[%s1 + $0x10] sm:$0xf]
  %v70 = vld [vmem:[%s1 + $0x14] sm:$0xf]
  %v71 = vld [vmem:[%s1 + $0x18] sm:$0xf]
  %v72 = vld [vmem:[%s1 + $0x1c] sm:$0xf]
  %v73 = vld [vmem:[%s1 + $0x20] sm:$0xf]
  %v74 = vld [vmem:[%s1 + $0x24] sm:$0xf]
  %v75 = vld [vmem:[%s1 + $0x28] sm:$0xf]
  %v76 = vld [vmem:[%s1 + $0x2c] sm:$0xf]
  %v77 = vld [vmem:[%s1 + $0x30] sm:$0xf]
  %v78 = vld [vmem:[%s1 + $0x34] sm:$0xf]
  %v79 = vld [vmem:[%s1 + $0x38] sm:$0xf]
  %v80 = vld [vmem:[%s1 + $0x3c] sm:$0xf]
  %v81 = vld [vmem:[%s1 + $0x40] sm:$0xf]
  %v82 = vld [vmem:[%s1 + $0x44] sm:$0xf]
  %v83 = vld [vmem:[%s1 + $0x48] sm:$0xf]
  %v84 = vld [vmem:[%s1 + $0x4c] sm:$0xf]
  %v85 = vld [vmem:[%s1 + $0x50] sm:$0xf]
  %v86 = vld [vmem:[%s1 + $0x54] sm:$0xf]
  %v87 = vld [vmem:[%s1 + $0x58] sm:$0xf]
  %v88 = vld [vmem:[%s1 + $0x5c] sm:$0xf]
  %v89 = vld [vmem:[%s1 + $0x60] sm:$0xf]
  %v90 = vld [vmem:[%s1 + $0x64] sm:$0xf]
  %v91 = vld [vmem:[%s1 + $0x68] sm:$0xf]
  %v92 = vld [vmem:[%s1 + $0x6c] sm:$0xf]
  %v93 = vld [vmem:[%s1 + $0x70] sm:$0xf]
  %v94 = vld [vmem:[%s1 + $0x74] sm:$0xf]
  %v95 = vld [vmem:[%s1 + $0x78] sm:$0xf]
  %v96 = vld [vmem:[%s1 + $0x7c] sm:$0xf]
  %v97 = vld [vmem:[%s1 + $0x80] sm:$0xf]
  %v98 = vld [vmem:[%s1 + $0x84] sm:$0xf]
  %v99 = vld [vmem:[%s1 + $0x88] sm:$0xf]
  %v100 = vld [vmem:[%s1 + $0x8c] sm:$0xf]
  %v101 = vld [vmem:[%s1 + $0x90] sm:$0xf]
  %v102 = vld [vmem:[%s1 + $0x94] sm:$0xf]
  %v103 = vld [vmem:[%s1 + $0x98] sm:$0xf]
  %v104 = vld [vmem:[%s1 + $0x9c] sm:$0xf]
  %v105 = vld [vmem:[%s1 + $0xa0] sm:$0xf]
  %v106 = vld [vmem:[%s1 + $0xa4] sm:$0xf]
  %v107 = vld [vmem:[%s1 + $0xa8] sm:$0xf]
  %v108 = vld [vmem:[%s1 + $0xac] sm:$0xf]
  %v109 = vld [vmem:[%s1 + $0xb0] sm:$0xf]
  %v110 = vld [vmem:[%s1 + $0xb4] sm:$0xf]
  %v111 = vld [vmem:[%s1 + $0xb8] sm:$0xf]
  %v112 = vld [vmem:[%s1 + $0xbc] sm:$0xf]
  %v113 = vld [vmem:[%s1 + $0xc0] sm:$0xf]
  %v114 = vld [vmem:[%s1 + $0xc4] sm:$0xf]
  %v115 = vld [vmem:[%s1 + $0xc8] sm:$0xf]
  %v116 = vld [vmem:[%s1 + $0xcc] sm:$0xf]
  %v117 = vld [vmem:[%s1 + $0xd0] sm:$0xf]
  %v118 = vld [vmem:[%s1 + $0xd4] sm:$0xf]
  %v119 = vld [vmem:[%s1 + $0xd8] sm:$0xf]
  %v120 = vld [vmem:[%s1 + $0xdc] sm:$0xf]
  %v121 = vld [vmem:[%s1 + $0xe0] sm:$0xf]
  %v122 = vld [vmem:[%s1 + $0xe4] sm:$0xf]
  %v123 = vld [vmem:[%s1 + $0xe8] sm:$0xf]
  %v124 = vld [vmem:[%s1 + $0xec] sm:$0xf]
  %v125 = vld [vmem:[%s1 + $0xf0] sm:$0xf]
  %v126 = vld [vmem:[%s1 + $0xf4] sm:$0xf]
  %v127 = vld [vmem:[%s1 + $0xf8] sm:$0xf]
  %v128 = vld [vmem:[%s1 + $0xfc] sm:$0xf]
  %v193 = vunpack.c.l.b16 %v65
  %v194 = vunpack.c.l.b16 %v66
  %v195 = vunpack.c.l.b16 %v67
  %v196 = vunpack.c.l.b16 %v68
  %v197 = vunpack.c.l.b16 %v69
  %v198 = vunpack.c.l.b16 %v70
  %v199 = vunpack.c.l.b16 %v71
  %v200 = vunpack.c.l.b16 %v72
  %v201 = vunpack.c.l.b16 %v73
  %v202 = vunpack.c.l.b16 %v74
  %v203 = vunpack.c.l.b16 %v75
  %v204 = vunpack.c.l.b16 %v76
  %v205 = vunpack.c.l.b16 %v77
  %v206 = vunpack.c.l.b16 %v78
  %v207 = vunpack.c.l.b16 %v79
  %v208 = vunpack.c.l.b16 %v80
  %v209 = vunpack.c.l.b16 %v81
  %v210 = vunpack.c.l.b16 %v82
  %v211 = vunpack.c.l.b16 %v83
  %v212 = vunpack.c.l.b16 %v84
  %v213 = vunpack.c.l.b16 %v85
  %v214 = vunpack.c.l.b16 %v86
  %v215 = vunpack.c.l.b16 %v87
  %v216 = vunpack.c.l.b16 %v88
  %v217 = vunpack.c.l.b16 %v89
  %v218 = vunpack.c.l.b16 %v90
  %v219 = vunpack.c.l.b16 %v91
  %v220 = vunpack.c.l.b16 %v92
  %v221 = vunpack.c.l.b16 %v93
  %v222 = vunpack.c.l.b16 %v94
  %v223 = vunpack.c.l.b16 %v95
  %v224 = vunpack.c.l.b16 %v96
  %v225 = vunpack.c.l.b16 %v97
  %v226 = vunpack.c.l.b16 %v98
  %v227 = vunpack.c.l.b16 %v99
  %v228 = vunpack.c.l.b16 %v100
  %v229 = vunpack.c.l.b16 %v101
  %v230 = vunpack.c.l.b16 %v102
  %v231 = vunpack.c.l.b16 %v103
  %v232 = vunpack.c.l.b16 %v104
  %v233 = vunpack.c.l.b16 %v105
  %v234 = vunpack.c.l.b16 %v106
  %v235 = vunpack.c.l.b16 %v107
  %v236 = vunpack.c.l.b16 %v108
  %v237 = vunpack.c.l.b16 %v109
  %v238 = vunpack.c.l.b16 %v110
  %v239 = vunpack.c.l.b16 %v111
  %v240 = vunpack.c.l.b16 %v112
  %v241 = vunpack.c.l.b16 %v113
  %v242 = vunpack.c.l.b16 %v114
  %v243 = vunpack.c.l.b16 %v115
  %v244 = vunpack.c.l.b16 %v116
  %v245 = vunpack.c.l.b16 %v117
  %v246 = vunpack.c.l.b16 %v118
  %v247 = vunpack.c.l.b16 %v119
  %v248 = vunpack.c.l.b16 %v120
  %v249 = vunpack.c.l.b16 %v121
  %v250 = vunpack.c.l.b16 %v122
  %v251 = vunpack.c.l.b16 %v123
  %v252 = vunpack.c.l.b16 %v124
  %v253 = vunpack.c.l.b16 %v125
  %v254 = vunpack.c.l.b16 %v126
  %v255 = vunpack.c.l.b16 %v127
  %v256 = vunpack.c.l.b16 %v128
  %v257 = vpack.c.b16 %v194, %v193
  %v258 = vpack.c.b16 %v196, %v195
  %v259 = vpack.c.b16 %v198, %v197
  %v260 = vpack.c.b16 %v200, %v199
  %v261 = vpack.c.b16 %v202, %v201
  %v262 = vpack.c.b16 %v204, %v203
  %v263 = vpack.c.b16 %v206, %v205
  %v264 = vpack.c.b16 %v208, %v207
  %v265 = vpack.c.b16 %v210, %v209
  %v266 = vpack.c.b16 %v212, %v211
  %v267 = vpack.c.b16 %v214, %v213
  %v268 = vpack.c.b16 %v216, %v215
  %v269 = vpack.c.b16 %v218, %v217
  %v270 = vpack.c.b16 %v220, %v219
  %v271 = vpack.c.b16 %v222, %v221
  %v272 = vpack.c.b16 %v224, %v223
  %v273 = vpack.c.b16 %v226, %v225
  %v274 = vpack.c.b16 %v228, %v227
  %v275 = vpack.c.b16 %v230, %v229
  %v276 = vpack.c.b16 %v232, %v231
  %v277 = vpack.c.b16 %v234, %v233
  %v278 = vpack.c.b16 %v236, %v235
  %v279 = vpack.c.b16 %v238, %v237
  %v280 = vpack.c.b16 %v240, %v239
  %v281 = vpack.c.b16 %v242, %v241
  %v282 = vpack.c.b16 %v244, %v243
  %v283 = vpack.c.b16 %v246, %v245
  %v284 = vpack.c.b16 %v248, %v247
  %v285 = vpack.c.b16 %v250, %v249
  %v286 = vpack.c.b16 %v252, %v251
  %v287 = vpack.c.b16 %v254, %v253
  %v288 = vpack.c.b16 %v256, %v255
  %vm289 = vcmask 261120
  %v291 = vsel %vm289, %v257, 0
  %v294 = vsel %vm289, %v258, 0
  %v297 = vsel %vm289, %v259, 0
  %v300 = vsel %vm289, %v260, 0
  %v303 = vsel %vm289, %v261, 0
  %v306 = vsel %vm289, %v262, 0
  %v309 = vsel %vm289, %v263, 0
  %v312 = vsel %vm289, %v264, 0
  %v315 = vsel %vm289, %v265, 0
  %v318 = vsel %vm289, %v266, 0
  %v321 = vsel %vm289, %v267, 0
  %v324 = vsel %vm289, %v268, 0
  %v327 = vsel %vm289, %v269, 0
  %v330 = vsel %vm289, %v270, 0
  %v333 = vsel %vm289, %v271, 0
  %v336 = vsel %vm289, %v272, 0
  %v339 = vsel %vm289, %v273, 0
  %v342 = vsel %vm289, %v274, 0
  %v345 = vsel %vm289, %v275, 0
  %v348 = vsel %vm289, %v276, 0
  %v351 = vsel %vm289, %v277, 0
  %v354 = vsel %vm289, %v278, 0
  %v357 = vsel %vm289, %v279, 0
  %v360 = vsel %vm289, %v280, 0
  %v363 = vsel %vm289, %v281, 0
  %v366 = vsel %vm289, %v282, 0
  %v369 = vsel %vm289, %v283, 0
  %v372 = vsel %vm289, %v284, 0
  %v375 = vsel %vm289, %v285, 0
  %v378 = vsel %vm289, %v286, 0
  %v381 = vsel %vm289, %v287, 0
  %v384 = vsel %vm289, %v288, 0
  %v387 = vsel %vm289, %v57, 0
  %v390 = vsel %vm289, %v58, 0
  %v393 = vsel %vm289, %v59, 0
  %v396 = vsel %vm289, %v60, 0
  %v399 = vsel %vm289, %v61, 0
  %v402 = vsel %vm289, %v62, 0
  %v405 = vsel %vm289, %v63, 0
  %v408 = vsel %vm289, %v64, 0
  %410 = vmatprep.subr.bf16.mxu0 0
  %411 = vmatpush1.bf16.xpose.msra.mxu0 %v408
  %412 = vmatprep.subr.bf16.mxu0 0
  %413 = vmatpush1.bf16.xpose.msra.mxu0 %v405
  %414 = vmatprep.subr.bf16.mxu0 0
  %415 = vmatpush1.bf16.xpose.msra.mxu0 %v402
  %416 = vmatprep.subr.bf16.mxu0 0
  %417 = vmatpush1.bf16.xpose.msra.mxu0 %v399
  %418 = vmatprep.subr.bf16.mxu0 0
  %419 = vmatpush1.bf16.xpose.msra.mxu0 %v396
  %420 = vmatprep.subr.bf16.mxu0 0
  %421 = vmatpush1.bf16.xpose.msra.mxu0 %v393
  %422 = vmatprep.subr.bf16.mxu0 0
  %423 = vmatpush1.bf16.xpose.msra.mxu0 %v390
  %424 = vmatprep.subr.bf16.mxu0 0
  %425 = vmatpush1.bf16.xpose.msra.mxu0 %v387
  %426 = vmatprep.subr.bf16.mxu0 0
  %427 = vmatpush2.bf16.xpose.msra.mxu0 0
  %428 = vmatprep.subr.bf16.mxu0 0
  %429 = vmatpush2.bf16.xpose.msra.mxu0 0
  %430 = vmatprep.subr.bf16.mxu0 0
  %431 = vmatpush2.bf16.xpose.msra.mxu0 0
  %432 = vmatprep.subr.bf16.mxu0 0
  %433 = vmatpush2.bf16.xpose.msra.mxu0 0
  %434 = vmatprep.subr.bf16.mxu0 0
  %435 = vmatpush2.bf16.xpose.msra.mxu0 0
  %436 = vmatprep.subr.bf16.mxu0 0
  %437 = vmatpush2.bf16.xpose.msra.mxu0 0
  %438 = vmatprep.subr.bf16.mxu0 0
  %439 = vmatpush2.bf16.xpose.msra.mxu0 0
  %440 = vmatprep.subr.bf16.mxu0 0
  %441 = vmatpush2.bf16.xpose.msra.mxu0 0
  %442 = vmatprep.mubr.bf16.mxu0 0
  %443 = vmatmul.mubr.bf16.gmra.mxu0 %v291
  %v444 = vpop.f32.mrf.mxu0
  %v445 = vadd.f32 0.0, %v444
  %v446 = vpop.f32.mrf.mxu0
  %v447 = vpop.f32.mrf.mxu0
  %v448 = vadd.f32 0.0, %v447
  %v449 = vpop.f32.mrf.mxu0
  %450 = vmatprep.mubr.bf16.mxu0 0
  %451 = vmatmul.mubr.bf16.gmra.mxu0 %v294
  %v452 = vpop.f32.mrf.mxu0
  %v453 = vadd.f32 0.0, %v452
  %v454 = vpop.f32.mrf.mxu0
  %v455 = vpop.f32.mrf.mxu0
  %v456 = vadd.f32 0.0, %v455
  %v457 = vpop.f32.mrf.mxu0
  %458 = vmatprep.mubr.bf16.mxu0 0
  %459 = vmatmul.mubr.bf16.gmra.mxu0 %v297
  %v460 = vpop.f32.mrf.mxu0
  %v461 = vadd.f32 0.0, %v460
  %v462 = vpop.f32.mrf.mxu0
  %v463 = vpop.f32.mrf.mxu0
  %v464 = vadd.f32 0.0, %v463
  %v465 = vpop.f32.mrf.mxu0
  %466 = vmatprep.mubr.bf16.mxu0 0
  %467 = vmatmul.mubr.bf16.gmra.mxu0 %v300
  %v468 = vpop.f32.mrf.mxu0
  %v469 = vadd.f32 0.0, %v468
  %v470 = vpop.f32.mrf.mxu0
  %v471 = vpop.f32.mrf.mxu0
  %v472 = vadd.f32 0.0, %v471
  %v473 = vpop.f32.mrf.mxu0
  %474 = vmatprep.mubr.bf16.mxu0 0
  %475 = vmatmul.mubr.bf16.gmra.mxu0 %v303
  %v476 = vpop.f32.mrf.mxu0
  %v477 = vadd.f32 0.0, %v476
  %v478 = vpop.f32.mrf.mxu0
  %v479 = vpop.f32.mrf.mxu0
  %v480 = vadd.f32 0.0, %v479
  %v481 = vpop.f32.mrf.mxu0
  %482 = vmatprep.mubr.bf16.mxu0 0
  %483 = vmatmul.mubr.bf16.gmra.mxu0 %v306
  %v484 = vpop.f32.mrf.mxu0
  %v485 = vadd.f32 0.0, %v484
  %v486 = vpop.f32.mrf.mxu0
  %v487 = vpop.f32.mrf.mxu0
  %v488 = vadd.f32 0.0, %v487
  %v489 = vpop.f32.mrf.mxu0
  %490 = vmatprep.mubr.bf16.mxu0 0
  %491 = vmatmul.mubr.bf16.gmra.mxu0 %v309
  %v492 = vpop.f32.mrf.mxu0
  %v493 = vadd.f32 0.0, %v492
  %v494 = vpop.f32.mrf.mxu0
  %v495 = vpop.f32.mrf.mxu0
  %v496 = vadd.f32 0.0, %v495
  %v497 = vpop.f32.mrf.mxu0
  %498 = vmatprep.mubr.bf16.mxu0 0
  %499 = vmatmul.mubr.bf16.gmra.mxu0 %v312
  %v500 = vpop.f32.mrf.mxu0
  %v501 = vadd.f32 0.0, %v500
  %v502 = vpop.f32.mrf.mxu0
  %v503 = vpop.f32.mrf.mxu0
  %v504 = vadd.f32 0.0, %v503
  %v505 = vpop.f32.mrf.mxu0
  %506 = vmatprep.mubr.bf16.mxu0 0
  %507 = vmatmul.mubr.bf16.gmra.mxu0 %v315
  %v508 = vpop.f32.mrf.mxu0
  %v509 = vadd.f32 0.0, %v508
  %v510 = vpop.f32.mrf.mxu0
  %v511 = vpop.f32.mrf.mxu0
  %v512 = vadd.f32 0.0, %v511
  %v513 = vpop.f32.mrf.mxu0
  %514 = vmatprep.mubr.bf16.mxu0 0
  %515 = vmatmul.mubr.bf16.gmra.mxu0 %v318
  %v516 = vpop.f32.mrf.mxu0
  %v517 = vadd.f32 0.0, %v516
  %v518 = vpop.f32.mrf.mxu0
  %v519 = vpop.f32.mrf.mxu0
  %v520 = vadd.f32 0.0, %v519
  %v521 = vpop.f32.mrf.mxu0
  %522 = vmatprep.mubr.bf16.mxu0 0
  %523 = vmatmul.mubr.bf16.gmra.mxu0 %v321
  %v524 = vpop.f32.mrf.mxu0
  %v525 = vadd.f32 0.0, %v524
  %v526 = vpop.f32.mrf.mxu0
  %v527 = vpop.f32.mrf.mxu0
  %v528 = vadd.f32 0.0, %v527
  %v529 = vpop.f32.mrf.mxu0
  %530 = vmatprep.mubr.bf16.mxu0 0
  %531 = vmatmul.mubr.bf16.gmra.mxu0 %v324
  %v532 = vpop.f32.mrf.mxu0
  %v533 = vadd.f32 0.0, %v532
  %v534 = vpop.f32.mrf.mxu0
  %v535 = vpop.f32.mrf.mxu0
  %v536 = vadd.f32 0.0, %v535
  %v537 = vpop.f32.mrf.mxu0
  %538 = vmatprep.mubr.bf16.mxu0 0
  %539 = vmatmul.mubr.bf16.gmra.mxu0 %v327
  %v540 = vpop.f32.mrf.mxu0
  %v541 = vadd.f32 0.0, %v540
  %v542 = vpop.f32.mrf.mxu0
  %v543 = vpop.f32.mrf.mxu0
  %v544 = vadd.f32 0.0, %v543
  %v545 = vpop.f32.mrf.mxu0
  %546 = vmatprep.mubr.bf16.mxu0 0
  %547 = vmatmul.mubr.bf16.gmra.mxu0 %v330
  %v548 = vpop.f32.mrf.mxu0
  %v549 = vadd.f32 0.0, %v548
  %v550 = vpop.f32.mrf.mxu0
  %v551 = vpop.f32.mrf.mxu0
  %v552 = vadd.f32 0.0, %v551
  %v553 = vpop.f32.mrf.mxu0
  %554 = vmatprep.mubr.bf16.mxu0 0
  %555 = vmatmul.mubr.bf16.gmra.mxu0 %v333
  %v556 = vpop.f32.mrf.mxu0
  %v557 = vadd.f32 0.0, %v556
  %v558 = vpop.f32.mrf.mxu0
  %v559 = vpop.f32.mrf.mxu0
  %v560 = vadd.f32 0.0, %v559
  %v561 = vpop.f32.mrf.mxu0
  %562 = vmatprep.mubr.bf16.mxu0 0
  %563 = vmatmul.mubr.bf16.gmra.mxu0 %v336
  %v564 = vpop.f32.mrf.mxu0
  %v565 = vadd.f32 0.0, %v564
  %v566 = vpop.f32.mrf.mxu0
  %v567 = vpop.f32.mrf.mxu0
  %v568 = vadd.f32 0.0, %v567
  %v569 = vpop.f32.mrf.mxu0
  %570 = vmatprep.mubr.bf16.mxu0 0
  %571 = vmatmul.mubr.bf16.gmra.mxu0 %v339
  %v572 = vpop.f32.mrf.mxu0
  %v573 = vadd.f32 0.0, %v572
  %v574 = vpop.f32.mrf.mxu0
  %v575 = vpop.f32.mrf.mxu0
  %v576 = vadd.f32 0.0, %v575
  %v577 = vpop.f32.mrf.mxu0
  %578 = vmatprep.mubr.bf16.mxu0 0
  %579 = vmatmul.mubr.bf16.gmra.mxu0 %v342
  %v580 = vpop.f32.mrf.mxu0
  %v581 = vadd.f32 0.0, %v580
  %v582 = vpop.f32.mrf.mxu0
  %v583 = vpop.f32.mrf.mxu0
  %v584 = vadd.f32 0.0, %v583
  %v585 = vpop.f32.mrf.mxu0
  %586 = vmatprep.mubr.bf16.mxu0 0
  %587 = vmatmul.mubr.bf16.gmra.mxu0 %v345
  %v588 = vpop.f32.mrf.mxu0
  %v589 = vadd.f32 0.0, %v588
  %v590 = vpop.f32.mrf.mxu0
  %v591 = vpop.f32.mrf.mxu0
  %v592 = vadd.f32 0.0, %v591
  %v593 = vpop.f32.mrf.mxu0
  %594 = vmatprep.mubr.bf16.mxu0 0
  %595 = vmatmul.mubr.bf16.gmra.mxu0 %v348
  %v596 = vpop.f32.mrf.mxu0
  %v597 = vadd.f32 0.0, %v596
  %v598 = vpop.f32.mrf.mxu0
  %v599 = vpop.f32.mrf.mxu0
  %v600 = vadd.f32 0.0, %v599
  %v601 = vpop.f32.mrf.mxu0
  %602 = vmatprep.mubr.bf16.mxu0 0
  %603 = vmatmul.mubr.bf16.gmra.mxu0 %v351
  %v604 = vpop.f32.mrf.mxu0
  %v605 = vadd.f32 0.0, %v604
  %v606 = vpop.f32.mrf.mxu0
  %v607 = vpop.f32.mrf.mxu0
  %v608 = vadd.f32 0.0, %v607
  %v609 = vpop.f32.mrf.mxu0
  %610 = vmatprep.mubr.bf16.mxu0 0
  %611 = vmatmul.mubr.bf16.gmra.mxu0 %v354
  %v612 = vpop.f32.mrf.mxu0
  %v613 = vadd.f32 0.0, %v612
  %v614 = vpop.f32.mrf.mxu0
  %v615 = vpop.f32.mrf.mxu0
  %v616 = vadd.f32 0.0, %v615
  %v617 = vpop.f32.mrf.mxu0
  %618 = vmatprep.mubr.bf16.mxu0 0
  %619 = vmatmul.mubr.bf16.gmra.mxu0 %v357
  %v620 = vpop.f32.mrf.mxu0
  %v621 = vadd.f32 0.0, %v620
  %v622 = vpop.f32.mrf.mxu0
  %v623 = vpop.f32.mrf.mxu0
  %v624 = vadd.f32 0.0, %v623
  %v625 = vpop.f32.mrf.mxu0
  %626 = vmatprep.mubr.bf16.mxu0 0
  %627 = vmatmul.mubr.bf16.gmra.mxu0 %v360
  %v628 = vpop.f32.mrf.mxu0
  %v629 = vadd.f32 0.0, %v628
  %v630 = vpop.f32.mrf.mxu0
  %v631 = vpop.f32.mrf.mxu0
  %v632 = vadd.f32 0.0, %v631
  %v633 = vpop.f32.mrf.mxu0
  %634 = vmatprep.mubr.bf16.mxu0 0
  %635 = vmatmul.mubr.bf16.gmra.mxu0 %v363
  %v636 = vpop.f32.mrf.mxu0
  %v637 = vadd.f32 0.0, %v636
  %v638 = vpop.f32.mrf.mxu0
  %v639 = vpop.f32.mrf.mxu0
  %v640 = vadd.f32 0.0, %v639
  %v641 = vpop.f32.mrf.mxu0
  %642 = vmatprep.mubr.bf16.mxu0 0
  %643 = vmatmul.mubr.bf16.gmra.mxu0 %v366
  %v644 = vpop.f32.mrf.mxu0
  %v645 = vadd.f32 0.0, %v644
  %v646 = vpop.f32.mrf.mxu0
  %v647 = vpop.f32.mrf.mxu0
  %v648 = vadd.f32 0.0, %v647
  %v649 = vpop.f32.mrf.mxu0
  %650 = vmatprep.mubr.bf16.mxu0 0
  %651 = vmatmul.mubr.bf16.gmra.mxu0 %v369
  %v652 = vpop.f32.mrf.mxu0
  %v653 = vadd.f32 0.0, %v652
  %v654 = vpop.f32.mrf.mxu0
  %v655 = vpop.f32.mrf.mxu0
  %v656 = vadd.f32 0.0, %v655
  %v657 = vpop.f32.mrf.mxu0
  %658 = vmatprep.mubr.bf16.mxu0 0
  %659 = vmatmul.mubr.bf16.gmra.mxu0 %v372
  %v660 = vpop.f32.mrf.mxu0
  %v661 = vadd.f32 0.0, %v660
  %v662 = vpop.f32.mrf.mxu0
  %v663 = vpop.f32.mrf.mxu0
  %v664 = vadd.f32 0.0, %v663
  %v665 = vpop.f32.mrf.mxu0
  %666 = vmatprep.mubr.bf16.mxu0 0
  %667 = vmatmul.mubr.bf16.gmra.mxu0 %v375
  %v668 = vpop.f32.mrf.mxu0
  %v669 = vadd.f32 0.0, %v668
  %v670 = vpop.f32.mrf.mxu0
  %v671 = vpop.f32.mrf.mxu0
  %v672 = vadd.f32 0.0, %v671
  %v673 = vpop.f32.mrf.mxu0
  %674 = vmatprep.mubr.bf16.mxu0 0
  %675 = vmatmul.mubr.bf16.gmra.mxu0 %v378
  %v676 = vpop.f32.mrf.mxu0
  %v677 = vadd.f32 0.0, %v676
  %v678 = vpop.f32.mrf.mxu0
  %v679 = vpop.f32.mrf.mxu0
  %v680 = vadd.f32 0.0, %v679
  %v681 = vpop.f32.mrf.mxu0
  %682 = vmatprep.mubr.bf16.mxu0 0
  %683 = vmatmul.mubr.bf16.gmra.mxu0 %v381
  %v684 = vpop.f32.mrf.mxu0
  %v685 = vadd.f32 0.0, %v684
  %v686 = vpop.f32.mrf.mxu0
  %v687 = vpop.f32.mrf.mxu0
  %v688 = vadd.f32 0.0, %v687
  %v689 = vpop.f32.mrf.mxu0
  %690 = vmatprep.mubr.bf16.mxu0 0
  %691 = vmatmul.mubr.bf16.gmra.mxu0 %v384
  %v692 = vpop.f32.mrf.mxu0
  %v693 = vadd.f32 0.0, %v692
  %v694 = vpop.f32.mrf.mxu0
  %v695 = vpop.f32.mrf.mxu0
  %v696 = vadd.f32 0.0, %v695
  %v697 = vpop.f32.mrf.mxu0
  %698 = vdwg.mxu0
  %v699 = vpack.c.bf16 %v448, %v445
  %v700 = vpack.c.bf16 %v456, %v453
  %v701 = vpack.c.bf16 %v464, %v461
  %v702 = vpack.c.bf16 %v472, %v469
  %v703 = vpack.c.bf16 %v480, %v477
  %v704 = vpack.c.bf16 %v488, %v485
  %v705 = vpack.c.bf16 %v496, %v493
  %v706 = vpack.c.bf16 %v504, %v501
  %v707 = vpack.c.bf16 %v512, %v509
  %v708 = vpack.c.bf16 %v520, %v517
  %v709 = vpack.c.bf16 %v528, %v525
  %v710 = vpack.c.bf16 %v536, %v533
  %v711 = vpack.c.bf16 %v544, %v541
  %v712 = vpack.c.bf16 %v552, %v549
  %v713 = vpack.c.bf16 %v560, %v557
  %v714 = vpack.c.bf16 %v568, %v565
  %v715 = vpack.c.bf16 %v576, %v573
  %v716 = vpack.c.bf16 %v584, %v581
  %v717 = vpack.c.bf16 %v592, %v589
  %v718 = vpack.c.bf16 %v600, %v597
  %v719 = vpack.c.bf16 %v608, %v605
  %v720 = vpack.c.bf16 %v616, %v613
  %v721 = vpack.c.bf16 %v624, %v621
  %v722 = vpack.c.bf16 %v632, %v629
  %v723 = vpack.c.bf16 %v640, %v637
  %v724 = vpack.c.bf16 %v648, %v645
  %v725 = vpack.c.bf16 %v656, %v653
  %v726 = vpack.c.bf16 %v664, %v661
  %v727 = vpack.c.bf16 %v672, %v669
  %v728 = vpack.c.bf16 %v680, %v677
  %v729 = vpack.c.bf16 %v688, %v685
  %v730 = vpack.c.bf16 %v696, %v693
  %v731 = vld [vmem:[%s2] sm:$0xf]
  %v732 = vld [vmem:[%s2 + $0x4] sm:$0xf]
  %v733 = vld [vmem:[%s2 + $0x8] sm:$0xf]
  %v734 = vld [vmem:[%s2 + $0xc] sm:$0xf]
  %v735 = vld [vmem:[%s2 + $0x10] sm:$0xf]
  %v736 = vld [vmem:[%s2 + $0x14] sm:$0xf]
  %v737 = vld [vmem:[%s2 + $0x18] sm:$0xf]
  %v738 = vld [vmem:[%s2 + $0x1c] sm:$0xf]
  %v739 = vld [vmem:[%s2 + $0x20] sm:$0xf]
  %v740 = vld [vmem:[%s2 + $0x24] sm:$0xf]
  %v741 = vld [vmem:[%s2 + $0x28] sm:$0xf]
  %v742 = vld [vmem:[%s2 + $0x2c] sm:$0xf]
  %v743 = vld [vmem:[%s2 + $0x30] sm:$0xf]
  %v744 = vld [vmem:[%s2 + $0x34] sm:$0xf]
  %v745 = vld [vmem:[%s2 + $0x38] sm:$0xf]
  %v746 = vld [vmem:[%s2 + $0x3c] sm:$0xf]
  %v747 = vld [vmem:[%s2 + $0x40] sm:$0xf]
  %v748 = vld [vmem:[%s2 + $0x44] sm:$0xf]
  %v749 = vld [vmem:[%s2 + $0x48] sm:$0xf]
  %v750 = vld [vmem:[%s2 + $0x4c] sm:$0xf]
  %v751 = vld [vmem:[%s2 + $0x50] sm:$0xf]
  %v752 = vld [vmem:[%s2 + $0x54] sm:$0xf]
  %v753 = vld [vmem:[%s2 + $0x58] sm:$0xf]
  %v754 = vld [vmem:[%s2 + $0x5c] sm:$0xf]
  %v755 = vld [vmem:[%s2 + $0x60] sm:$0xf]
  %v756 = vld [vmem:[%s2 + $0x64] sm:$0xf]
  %v757 = vld [vmem:[%s2 + $0x68] sm:$0xf]
  %v758 = vld [vmem:[%s2 + $0x6c] sm:$0xf]
  %v759 = vld [vmem:[%s2 + $0x70] sm:$0xf]
  %v760 = vld [vmem:[%s2 + $0x74] sm:$0xf]
  %v761 = vld [vmem:[%s2 + $0x78] sm:$0xf]
  %v762 = vld [vmem:[%s2 + $0x7c] sm:$0xf]
  %v763 = vld [vmem:[%s2 + $0x80] sm:$0xf]
  %v764 = vld [vmem:[%s2 + $0x84] sm:$0xf]
  %v765 = vld [vmem:[%s2 + $0x88] sm:$0xf]
  %v766 = vld [vmem:[%s2 + $0x8c] sm:$0xf]
  %v767 = vld [vmem:[%s2 + $0x90] sm:$0xf]
  %v768 = vld [vmem:[%s2 + $0x94] sm:$0xf]
  %v769 = vld [vmem:[%s2 + $0x98] sm:$0xf]
  %v770 = vld [vmem:[%s2 + $0x9c] sm:$0xf]
  %v771 = vld [vmem:[%s2 + $0xa0] sm:$0xf]
  %v772 = vld [vmem:[%s2 + $0xa4] sm:$0xf]
  %v773 = vld [vmem:[%s2 + $0xa8] sm:$0xf]
  %v774 = vld [vmem:[%s2 + $0xac] sm:$0xf]
  %v775 = vld [vmem:[%s2 + $0xb0] sm:$0xf]
  %v776 = vld [vmem:[%s2 + $0xb4] sm:$0xf]
  %v777 = vld [vmem:[%s2 + $0xb8] sm:$0xf]
  %v778 = vld [vmem:[%s2 + $0xbc] sm:$0xf]
  %v779 = vld [vmem:[%s2 + $0xc0] sm:$0xf]
  %v780 = vld [vmem:[%s2 + $0xc4] sm:$0xf]
  %v781 = vld [vmem:[%s2 + $0xc8] sm:$0xf]
  %v782 = vld [vmem:[%s2 + $0xcc] sm:$0xf]
  %v783 = vld [vmem:[%s2 + $0xd0] sm:$0xf]
  %v784 = vld [vmem:[%s2 + $0xd4] sm:$0xf]
  %v785 = vld [vmem:[%s2 + $0xd8] sm:$0xf]
  %v786 = vld [vmem:[%s2 + $0xdc] sm:$0xf]
  %v787 = vld [vmem:[%s2 + $0xe0] sm:$0xf]
  %v788 = vld [vmem:[%s2 + $0xe4] sm:$0xf]
  %v789 = vld [vmem:[%s2 + $0xe8] sm:$0xf]
  %v790 = vld [vmem:[%s2 + $0xec] sm:$0xf]
  %v791 = vld [vmem:[%s2 + $0xf0] sm:$0xf]
  %v792 = vld [vmem:[%s2 + $0xf4] sm:$0xf]
  %v793 = vld [vmem:[%s2 + $0xf8] sm:$0xf]
  %v794 = vld [vmem:[%s2 + $0xfc] sm:$0xf]
  %796 = vset.pattern.permute.xlu0 0
  %797 = vperm.xlu0 %796, %v731
  %v798 = vpop.permute.xlu0 %797
  %v801 = vunpack.c.l.s4 839922192
  %v802 = vunpack.c.0.s8 %v801
  %v803 = vlaneseq
  %v804 = vshrl.u32 %v803, 7
  %v805 = vsub.s32 %v802, %v804
  %v806 = vrot.slane %v798, %v805
  %808 = vset.pattern.permute.xlu0 0
  %809 = vperm.xlu0 %808, %v732
  %v810 = vpop.permute.xlu0 %809
  %v813 = vunpack.c.l.s4 839922192
  %v814 = vunpack.c.0.s8 %v813
  %v815 = vlaneseq
  %v816 = vshrl.u32 %v815, 7
  %v817 = vsub.s32 %v814, %v816
  %v818 = vrot.slane %v810, %v817
  %820 = vset.pattern.permute.xlu0 0
  %821 = vperm.xlu0 %820, %v733
  %v822 = vpop.permute.xlu0 %821
  %v825 = vunpack.c.l.s4 839922192
  %v826 = vunpack.c.0.s8 %v825
  %v827 = vlaneseq
  %v828 = vshrl.u32 %v827, 7
  %v829 = vsub.s32 %v826, %v828
  %v830 = vrot.slane %v822, %v829
  %832 = vset.pattern.permute.xlu0 0
  %833 = vperm.xlu0 %832, %v734
  %v834 = vpop.permute.xlu0 %833
  %v837 = vunpack.c.l.s4 839922192
  %v838 = vunpack.c.0.s8 %v837
  %v839 = vlaneseq
  %v840 = vshrl.u32 %v839, 7
  %v841 = vsub.s32 %v838, %v840
  %v842 = vrot.slane %v834, %v841
  %844 = vset.pattern.permute.xlu0 0
  %845 = vperm.xlu0 %844, %v735
  %v846 = vpop.permute.xlu0 %845
  %v849 = vunpack.c.l.s4 839922192
  %v850 = vunpack.c.0.s8 %v849
  %v851 = vlaneseq
  %v852 = vshrl.u32 %v851, 7
  %v853 = vsub.s32 %v850, %v852
  %v854 = vrot.slane %v846, %v853
  %856 = vset.pattern.permute.xlu0 0
  %857 = vperm.xlu0 %856, %v736
  %v858 = vpop.permute.xlu0 %857
  %v861 = vunpack.c.l.s4 839922192
  %v862 = vunpack.c.0.s8 %v861
  %v863 = vlaneseq
  %v864 = vshrl.u32 %v863, 7
  %v865 = vsub.s32 %v862, %v864
  %v866 = vrot.slane %v858, %v865
  %868 = vset.pattern.permute.xlu0 0
  %869 = vperm.xlu0 %868, %v737
  %v870 = vpop.permute.xlu0 %869
  %v873 = vunpack.c.l.s4 839922192
  %v874 = vunpack.c.0.s8 %v873
  %v875 = vlaneseq
  %v876 = vshrl.u32 %v875, 7
  %v877 = vsub.s32 %v874, %v876
  %v878 = vrot.slane %v870, %v877
  %880 = vset.pattern.permute.xlu0 0
  %881 = vperm.xlu0 %880, %v738
  %v882 = vpop.permute.xlu0 %881
  %v885 = vunpack.c.l.s4 839922192
  %v886 = vunpack.c.0.s8 %v885
  %v887 = vlaneseq
  %v888 = vshrl.u32 %v887, 7
  %v889 = vsub.s32 %v886, %v888
  %v890 = vrot.slane %v882, %v889
  %892 = vset.pattern.permute.xlu0 0
  %893 = vperm.xlu0 %892, %v739
  %v894 = vpop.permute.xlu0 %893
  %v897 = vunpack.c.l.s4 839922192
  %v898 = vunpack.c.0.s8 %v897
  %v899 = vlaneseq
  %v900 = vshrl.u32 %v899, 7
  %v901 = vsub.s32 %v898, %v900
  %v902 = vrot.slane %v894, %v901
  %904 = vset.pattern.permute.xlu0 0
  %905 = vperm.xlu0 %904, %v740
  %v906 = vpop.permute.xlu0 %905
  %v909 = vunpack.c.l.s4 839922192
  %v910 = vunpack.c.0.s8 %v909
  %v911 = vlaneseq
  %v912 = vshrl.u32 %v911, 7
  %v913 = vsub.s32 %v910, %v912
  %v914 = vrot.slane %v906, %v913
  %916 = vset.pattern.permute.xlu0 0
  %917 = vperm.xlu0 %916, %v741
  %v918 = vpop.permute.xlu0 %917
  %v921 = vunpack.c.l.s4 839922192
  %v922 = vunpack.c.0.s8 %v921
  %v923 = vlaneseq
  %v924 = vshrl.u32 %v923, 7
  %v925 = vsub.s32 %v922, %v924
  %v926 = vrot.slane %v918, %v925
  %928 = vset.pattern.permute.xlu0 0
  %929 = vperm.xlu0 %928, %v742
  %v930 = vpop.permute.xlu0 %929
  %v933 = vunpack.c.l.s4 839922192
  %v934 = vunpack.c.0.s8 %v933
  %v935 = vlaneseq
  %v936 = vshrl.u32 %v935, 7
  %v937 = vsub.s32 %v934, %v936
  %v938 = vrot.slane %v930, %v937
  %940 = vset.pattern.permute.xlu0 0
  %941 = vperm.xlu0 %940, %v743
  %v942 = vpop.permute.xlu0 %941
  %v945 = vunpack.c.l.s4 839922192
  %v946 = vunpack.c.0.s8 %v945
  %v947 = vlaneseq
  %v948 = vshrl.u32 %v947, 7
  %v949 = vsub.s32 %v946, %v948
  %v950 = vrot.slane %v942, %v949
  %952 = vset.pattern.permute.xlu0 0
  %953 = vperm.xlu0 %952, %v744
  %v954 = vpop.permute.xlu0 %953
  %v957 = vunpack.c.l.s4 839922192
  %v958 = vunpack.c.0.s8 %v957
  %v959 = vlaneseq
  %v960 = vshrl.u32 %v959, 7
  %v961 = vsub.s32 %v958, %v960
  %v962 = vrot.slane %v954, %v961
  %964 = vset.pattern.permute.xlu0 0
  %965 = vperm.xlu0 %964, %v745
  %v966 = vpop.permute.xlu0 %965
  %v969 = vunpack.c.l.s4 839922192
  %v970 = vunpack.c.0.s8 %v969
  %v971 = vlaneseq
  %v972 = vshrl.u32 %v971, 7
  %v973 = vsub.s32 %v970, %v972
  %v974 = vrot.slane %v966, %v973
  %976 = vset.pattern.permute.xlu0 0
  %977 = vperm.xlu0 %976, %v746
  %v978 = vpop.permute.xlu0 %977
  %v981 = vunpack.c.l.s4 839922192
  %v982 = vunpack.c.0.s8 %v981
  %v983 = vlaneseq
  %v984 = vshrl.u32 %v983, 7
  %v985 = vsub.s32 %v982, %v984
  %v986 = vrot.slane %v978, %v985
  %988 = vset.pattern.permute.xlu0 0
  %989 = vperm.xlu0 %988, %v747
  %v990 = vpop.permute.xlu0 %989
  %v993 = vunpack.c.l.s4 839922192
  %v994 = vunpack.c.0.s8 %v993
  %v995 = vlaneseq
  %v996 = vshrl.u32 %v995, 7
  %v997 = vsub.s32 %v994, %v996
  %v998 = vrot.slane %v990, %v997
  %1000 = vset.pattern.permute.xlu0 0
  %1001 = vperm.xlu0 %1000, %v748
  %v1002 = vpop.permute.xlu0 %1001
  %v1005 = vunpack.c.l.s4 839922192
  %v1006 = vunpack.c.0.s8 %v1005
  %v1007 = vlaneseq
  %v1008 = vshrl.u32 %v1007, 7
  %v1009 = vsub.s32 %v1006, %v1008
  %v1010 = vrot.slane %v1002, %v1009
  %1012 = vset.pattern.permute.xlu0 0
  %1013 = vperm.xlu0 %1012, %v749
  %v1014 = vpop.permute.xlu0 %1013
  %v1017 = vunpack.c.l.s4 839922192
  %v1018 = vunpack.c.0.s8 %v1017
  %v1019 = vlaneseq
  %v1020 = vshrl.u32 %v1019, 7
  %v1021 = vsub.s32 %v1018, %v1020
  %v1022 = vrot.slane %v1014, %v1021
  %1024 = vset.pattern.permute.xlu0 0
  %1025 = vperm.xlu0 %1024, %v750
  %v1026 = vpop.permute.xlu0 %1025
  %v1029 = vunpack.c.l.s4 839922192
  %v1030 = vunpack.c.0.s8 %v1029
  %v1031 = vlaneseq
  %v1032 = vshrl.u32 %v1031, 7
  %v1033 = vsub.s32 %v1030, %v1032
  %v1034 = vrot.slane %v1026, %v1033
  %1036 = vset.pattern.permute.xlu0 0
  %1037 = vperm.xlu0 %1036, %v751
  %v1038 = vpop.permute.xlu0 %1037
  %v1041 = vunpack.c.l.s4 839922192
  %v1042 = vunpack.c.0.s8 %v1041
  %v1043 = vlaneseq
  %v1044 = vshrl.u32 %v1043, 7
  %v1045 = vsub.s32 %v1042, %v1044
  %v1046 = vrot.slane %v1038, %v1045
  %1048 = vset.pattern.permute.xlu0 0
  %1049 = vperm.xlu0 %1048, %v752
  %v1050 = vpop.permute.xlu0 %1049
  %v1053 = vunpack.c.l.s4 839922192
  %v1054 = vunpack.c.0.s8 %v1053
  %v1055 = vlaneseq
  %v1056 = vshrl.u32 %v1055, 7
  %v1057 = vsub.s32 %v1054, %v1056
  %v1058 = vrot.slane %v1050, %v1057
  %1060 = vset.pattern.permute.xlu0 0
  %1061 = vperm.xlu0 %1060, %v753
  %v1062 = vpop.permute.xlu0 %1061
  %v1065 = vunpack.c.l.s4 839922192
  %v1066 = vunpack.c.0.s8 %v1065
  %v1067 = vlaneseq
  %v1068 = vshrl.u32 %v1067, 7
  %v1069 = vsub.s32 %v1066, %v1068
  %v1070 = vrot.slane %v1062, %v1069
  %1072 = vset.pattern.permute.xlu0 0
  %1073 = vperm.xlu0 %1072, %v754
  %v1074 = vpop.permute.xlu0 %1073
  %v1077 = vunpack.c.l.s4 839922192
  %v1078 = vunpack.c.0.s8 %v1077
  %v1079 = vlaneseq
  %v1080 = vshrl.u32 %v1079, 7
  %v1081 = vsub.s32 %v1078, %v1080
  %v1082 = vrot.slane %v1074, %v1081
  %1084 = vset.pattern.permute.xlu0 0
  %1085 = vperm.xlu0 %1084, %v755
  %v1086 = vpop.permute.xlu0 %1085
  %v1089 = vunpack.c.l.s4 839922192
  %v1090 = vunpack.c.0.s8 %v1089
  %v1091 = vlaneseq
  %v1092 = vshrl.u32 %v1091, 7
  %v1093 = vsub.s32 %v1090, %v1092
  %v1094 = vrot.slane %v1086, %v1093
  %1096 = vset.pattern.permute.xlu0 0
  %1097 = vperm.xlu0 %1096, %v756
  %v1098 = vpop.permute.xlu0 %1097
  %v1101 = vunpack.c.l.s4 839922192
  %v1102 = vunpack.c.0.s8 %v1101
  %v1103 = vlaneseq
  %v1104 = vshrl.u32 %v1103, 7
  %v1105 = vsub.s32 %v1102, %v1104
  %v1106 = vrot.slane %v1098, %v1105
  %1108 = vset.pattern.permute.xlu0 0
  %1109 = vperm.xlu0 %1108, %v757
  %v1110 = vpop.permute.xlu0 %1109
  %v1113 = vunpack.c.l.s4 839922192
  %v1114 = vunpack.c.0.s8 %v1113
  %v1115 = vlaneseq
  %v1116 = vshrl.u32 %v1115, 7
  %v1117 = vsub.s32 %v1114, %v1116
  %v1118 = vrot.slane %v1110, %v1117
  %1120 = vset.pattern.permute.xlu0 0
  %1121 = vperm.xlu0 %1120, %v758
  %v1122 = vpop.permute.xlu0 %1121
  %v1125 = vunpack.c.l.s4 839922192
  %v1126 = vunpack.c.0.s8 %v1125
  %v1127 = vlaneseq
  %v1128 = vshrl.u32 %v1127, 7
  %v1129 = vsub.s32 %v1126, %v1128
  %v1130 = vrot.slane %v1122, %v1129
  %1132 = vset.pattern.permute.xlu0 0
  %1133 = vperm.xlu0 %1132, %v759
  %v1134 = vpop.permute.xlu0 %1133
  %v1137 = vunpack.c.l.s4 839922192
  %v1138 = vunpack.c.0.s8 %v1137
  %v1139 = vlaneseq
  %v1140 = vshrl.u32 %v1139, 7
  %v1141 = vsub.s32 %v1138, %v1140
  %v1142 = vrot.slane %v1134, %v1141
  %1144 = vset.pattern.permute.xlu0 0
  %1145 = vperm.xlu0 %1144, %v760
  %v1146 = vpop.permute.xlu0 %1145
  %v1149 = vunpack.c.l.s4 839922192
  %v1150 = vunpack.c.0.s8 %v1149
  %v1151 = vlaneseq
  %v1152 = vshrl.u32 %v1151, 7
  %v1153 = vsub.s32 %v1150, %v1152
  %v1154 = vrot.slane %v1146, %v1153
  %1156 = vset.pattern.permute.xlu0 0
  %1157 = vperm.xlu0 %1156, %v761
  %v1158 = vpop.permute.xlu0 %1157
  %v1161 = vunpack.c.l.s4 839922192
  %v1162 = vunpack.c.0.s8 %v1161
  %v1163 = vlaneseq
  %v1164 = vshrl.u32 %v1163, 7
  %v1165 = vsub.s32 %v1162, %v1164
  %v1166 = vrot.slane %v1158, %v1165
  %1168 = vset.pattern.permute.xlu0 0
  %1169 = vperm.xlu0 %1168, %v762
  %v1170 = vpop.permute.xlu0 %1169
  %v1173 = vunpack.c.l.s4 839922192
  %v1174 = vunpack.c.0.s8 %v1173
  %v1175 = vlaneseq
  %v1176 = vshrl.u32 %v1175, 7
  %v1177 = vsub.s32 %v1174, %v1176
  %v1178 = vrot.slane %v1170, %v1177
  %1180 = vset.pattern.permute.xlu0 0
  %1181 = vperm.xlu0 %1180, %v763
  %v1182 = vpop.permute.xlu0 %1181
  %v1185 = vunpack.c.l.s4 839922192
  %v1186 = vunpack.c.0.s8 %v1185
  %v1187 = vlaneseq
  %v1188 = vshrl.u32 %v1187, 7
  %v1189 = vsub.s32 %v1186, %v1188
  %v1190 = vrot.slane %v1182, %v1189
  %1192 = vset.pattern.permute.xlu0 0
  %1193 = vperm.xlu0 %1192, %v764
  %v1194 = vpop.permute.xlu0 %1193
  %v1197 = vunpack.c.l.s4 839922192
  %v1198 = vunpack.c.0.s8 %v1197
  %v1199 = vlaneseq
  %v1200 = vshrl.u32 %v1199, 7
  %v1201 = vsub.s32 %v1198, %v1200
  %v1202 = vrot.slane %v1194, %v1201
  %1204 = vset.pattern.permute.xlu0 0
  %1205 = vperm.xlu0 %1204, %v765
  %v1206 = vpop.permute.xlu0 %1205
  %v1209 = vunpack.c.l.s4 839922192
  %v1210 = vunpack.c.0.s8 %v1209
  %v1211 = vlaneseq
  %v1212 = vshrl.u32 %v1211, 7
  %v1213 = vsub.s32 %v1210, %v1212
  %v1214 = vrot.slane %v1206, %v1213
  %1216 = vset.pattern.permute.xlu0 0
  %1217 = vperm.xlu0 %1216, %v766
  %v1218 = vpop.permute.xlu0 %1217
  %v1221 = vunpack.c.l.s4 839922192
  %v1222 = vunpack.c.0.s8 %v1221
  %v1223 = vlaneseq
  %v1224 = vshrl.u32 %v1223, 7
  %v1225 = vsub.s32 %v1222, %v1224
  %v1226 = vrot.slane %v1218, %v1225
  %1228 = vset.pattern.permute.xlu0 0
  %1229 = vperm.xlu0 %1228, %v767
  %v1230 = vpop.permute.xlu0 %1229
  %v1233 = vunpack.c.l.s4 839922192
  %v1234 = vunpack.c.0.s8 %v1233
  %v1235 = vlaneseq
  %v1236 = vshrl.u32 %v1235, 7
  %v1237 = vsub.s32 %v1234, %v1236
  %v1238 = vrot.slane %v1230, %v1237
  %1240 = vset.pattern.permute.xlu0 0
  %1241 = vperm.xlu0 %1240, %v768
  %v1242 = vpop.permute.xlu0 %1241
  %v1245 = vunpack.c.l.s4 839922192
  %v1246 = vunpack.c.0.s8 %v1245
  %v1247 = vlaneseq
  %v1248 = vshrl.u32 %v1247, 7
  %v1249 = vsub.s32 %v1246, %v1248
  %v1250 = vrot.slane %v1242, %v1249
  %1252 = vset.pattern.permute.xlu0 0
  %1253 = vperm.xlu0 %1252, %v769
  %v1254 = vpop.permute.xlu0 %1253
  %v1257 = vunpack.c.l.s4 839922192
  %v1258 = vunpack.c.0.s8 %v1257
  %v1259 = vlaneseq
  %v1260 = vshrl.u32 %v1259, 7
  %v1261 = vsub.s32 %v1258, %v1260
  %v1262 = vrot.slane %v1254, %v1261
  %1264 = vset.pattern.permute.xlu0 0
  %1265 = vperm.xlu0 %1264, %v770
  %v1266 = vpop.permute.xlu0 %1265
  %v1269 = vunpack.c.l.s4 839922192
  %v1270 = vunpack.c.0.s8 %v1269
  %v1271 = vlaneseq
  %v1272 = vshrl.u32 %v1271, 7
  %v1273 = vsub.s32 %v1270, %v1272
  %v1274 = vrot.slane %v1266, %v1273
  %1276 = vset.pattern.permute.xlu0 0
  %1277 = vperm.xlu0 %1276, %v771
  %v1278 = vpop.permute.xlu0 %1277
  %v1281 = vunpack.c.l.s4 839922192
  %v1282 = vunpack.c.0.s8 %v1281
  %v1283 = vlaneseq
  %v1284 = vshrl.u32 %v1283, 7
  %v1285 = vsub.s32 %v1282, %v1284
  %v1286 = vrot.slane %v1278, %v1285
  %1288 = vset.pattern.permute.xlu0 0
  %1289 = vperm.xlu0 %1288, %v772
  %v1290 = vpop.permute.xlu0 %1289
  %v1293 = vunpack.c.l.s4 839922192
  %v1294 = vunpack.c.0.s8 %v1293
  %v1295 = vlaneseq
  %v1296 = vshrl.u32 %v1295, 7
  %v1297 = vsub.s32 %v1294, %v1296
  %v1298 = vrot.slane %v1290, %v1297
  %1300 = vset.pattern.permute.xlu0 0
  %1301 = vperm.xlu0 %1300, %v773
  %v1302 = vpop.permute.xlu0 %1301
  %v1305 = vunpack.c.l.s4 839922192
  %v1306 = vunpack.c.0.s8 %v1305
  %v1307 = vlaneseq
  %v1308 = vshrl.u32 %v1307, 7
  %v1309 = vsub.s32 %v1306, %v1308
  %v1310 = vrot.slane %v1302, %v1309
  %1312 = vset.pattern.permute.xlu0 0
  %1313 = vperm.xlu0 %1312, %v774
  %v1314 = vpop.permute.xlu0 %1313
  %v1317 = vunpack.c.l.s4 839922192
  %v1318 = vunpack.c.0.s8 %v1317
  %v1319 = vlaneseq
  %v1320 = vshrl.u32 %v1319, 7
  %v1321 = vsub.s32 %v1318, %v1320
  %v1322 = vrot.slane %v1314, %v1321
  %1324 = vset.pattern.permute.xlu0 0
  %1325 = vperm.xlu0 %1324, %v775
  %v1326 = vpop.permute.xlu0 %1325
  %v1329 = vunpack.c.l.s4 839922192
  %v1330 = vunpack.c.0.s8 %v1329
  %v1331 = vlaneseq
  %v1332 = vshrl.u32 %v1331, 7
  %v1333 = vsub.s32 %v1330, %v1332
  %v1334 = vrot.slane %v1326, %v1333
  %1336 = vset.pattern.permute.xlu0 0
  %1337 = vperm.xlu0 %1336, %v776
  %v1338 = vpop.permute.xlu0 %1337
  %v1341 = vunpack.c.l.s4 839922192
  %v1342 = vunpack.c.0.s8 %v1341
  %v1343 = vlaneseq
  %v1344 = vshrl.u32 %v1343, 7
  %v1345 = vsub.s32 %v1342, %v1344
  %v1346 = vrot.slane %v1338, %v1345
  %1348 = vset.pattern.permute.xlu0 0
  %1349 = vperm.xlu0 %1348, %v777
  %v1350 = vpop.permute.xlu0 %1349
  %v1353 = vunpack.c.l.s4 839922192
  %v1354 = vunpack.c.0.s8 %v1353
  %v1355 = vlaneseq
  %v1356 = vshrl.u32 %v1355, 7
  %v1357 = vsub.s32 %v1354, %v1356
  %v1358 = vrot.slane %v1350, %v1357
  %1360 = vset.pattern.permute.xlu0 0
  %1361 = vperm.xlu0 %1360, %v778
  %v1362 = vpop.permute.xlu0 %1361
  %v1365 = vunpack.c.l.s4 839922192
  %v1366 = vunpack.c.0.s8 %v1365
  %v1367 = vlaneseq
  %v1368 = vshrl.u32 %v1367, 7
  %v1369 = vsub.s32 %v1366, %v1368
  %v1370 = vrot.slane %v1362, %v1369
  %1372 = vset.pattern.permute.xlu0 0
  %1373 = vperm.xlu0 %1372, %v779
  %v1374 = vpop.permute.xlu0 %1373
  %v1377 = vunpack.c.l.s4 839922192
  %v1378 = vunpack.c.0.s8 %v1377
  %v1379 = vlaneseq
  %v1380 = vshrl.u32 %v1379, 7
  %v1381 = vsub.s32 %v1378, %v1380
  %v1382 = vrot.slane %v1374, %v1381
  %1384 = vset.pattern.permute.xlu0 0
  %1385 = vperm.xlu0 %1384, %v780
  %v1386 = vpop.permute.xlu0 %1385
  %v1389 = vunpack.c.l.s4 839922192
  %v1390 = vunpack.c.0.s8 %v1389
  %v1391 = vlaneseq
  %v1392 = vshrl.u32 %v1391, 7
  %v1393 = vsub.s32 %v1390, %v1392
  %v1394 = vrot.slane %v1386, %v1393
  %1396 = vset.pattern.permute.xlu0 0
  %1397 = vperm.xlu0 %1396, %v781
  %v1398 = vpop.permute.xlu0 %1397
  %v1401 = vunpack.c.l.s4 839922192
  %v1402 = vunpack.c.0.s8 %v1401
  %v1403 = vlaneseq
  %v1404 = vshrl.u32 %v1403, 7
  %v1405 = vsub.s32 %v1402, %v1404
  %v1406 = vrot.slane %v1398, %v1405
  %1408 = vset.pattern.permute.xlu0 0
  %1409 = vperm.xlu0 %1408, %v782
  %v1410 = vpop.permute.xlu0 %1409
  %v1413 = vunpack.c.l.s4 839922192
  %v1414 = vunpack.c.0.s8 %v1413
  %v1415 = vlaneseq
  %v1416 = vshrl.u32 %v1415, 7
  %v1417 = vsub.s32 %v1414, %v1416
  %v1418 = vrot.slane %v1410, %v1417
  %1420 = vset.pattern.permute.xlu0 0
  %1421 = vperm.xlu0 %1420, %v783
  %v1422 = vpop.permute.xlu0 %1421
  %v1425 = vunpack.c.l.s4 839922192
  %v1426 = vunpack.c.0.s8 %v1425
  %v1427 = vlaneseq
  %v1428 = vshrl.u32 %v1427, 7
  %v1429 = vsub.s32 %v1426, %v1428
  %v1430 = vrot.slane %v1422, %v1429
  %1432 = vset.pattern.permute.xlu0 0
  %1433 = vperm.xlu0 %1432, %v784
  %v1434 = vpop.permute.xlu0 %1433
  %v1437 = vunpack.c.l.s4 839922192
  %v1438 = vunpack.c.0.s8 %v1437
  %v1439 = vlaneseq
  %v1440 = vshrl.u32 %v1439, 7
  %v1441 = vsub.s32 %v1438, %v1440
  %v1442 = vrot.slane %v1434, %v1441
  %1444 = vset.pattern.permute.xlu0 0
  %1445 = vperm.xlu0 %1444, %v785
  %v1446 = vpop.permute.xlu0 %1445
  %v1449 = vunpack.c.l.s4 839922192
  %v1450 = vunpack.c.0.s8 %v1449
  %v1451 = vlaneseq
  %v1452 = vshrl.u32 %v1451, 7
  %v1453 = vsub.s32 %v1450, %v1452
  %v1454 = vrot.slane %v1446, %v1453
  %1456 = vset.pattern.permute.xlu0 0
  %1457 = vperm.xlu0 %1456, %v786
  %v1458 = vpop.permute.xlu0 %1457
  %v1461 = vunpack.c.l.s4 839922192
  %v1462 = vunpack.c.0.s8 %v1461
  %v1463 = vlaneseq
  %v1464 = vshrl.u32 %v1463, 7
  %v1465 = vsub.s32 %v1462, %v1464
  %v1466 = vrot.slane %v1458, %v1465
  %1468 = vset.pattern.permute.xlu0 0
  %1469 = vperm.xlu0 %1468, %v787
  %v1470 = vpop.permute.xlu0 %1469
  %v1473 = vunpack.c.l.s4 839922192
  %v1474 = vunpack.c.0.s8 %v1473
  %v1475 = vlaneseq
  %v1476 = vshrl.u32 %v1475, 7
  %v1477 = vsub.s32 %v1474, %v1476
  %v1478 = vrot.slane %v1470, %v1477
  %1480 = vset.pattern.permute.xlu0 0
  %1481 = vperm.xlu0 %1480, %v788
  %v1482 = vpop.permute.xlu0 %1481
  %v1485 = vunpack.c.l.s4 839922192
  %v1486 = vunpack.c.0.s8 %v1485
  %v1487 = vlaneseq
  %v1488 = vshrl.u32 %v1487, 7
  %v1489 = vsub.s32 %v1486, %v1488
  %v1490 = vrot.slane %v1482, %v1489
  %1492 = vset.pattern.permute.xlu0 0
  %1493 = vperm.xlu0 %1492, %v789
  %v1494 = vpop.permute.xlu0 %1493
  %v1497 = vunpack.c.l.s4 839922192
  %v1498 = vunpack.c.0.s8 %v1497
  %v1499 = vlaneseq
  %v1500 = vshrl.u32 %v1499, 7
  %v1501 = vsub.s32 %v1498, %v1500
  %v1502 = vrot.slane %v1494, %v1501
  %1504 = vset.pattern.permute.xlu0 0
  %1505 = vperm.xlu0 %1504, %v790
  %v1506 = vpop.permute.xlu0 %1505
  %v1509 = vunpack.c.l.s4 839922192
  %v1510 = vunpack.c.0.s8 %v1509
  %v1511 = vlaneseq
  %v1512 = vshrl.u32 %v1511, 7
  %v1513 = vsub.s32 %v1510, %v1512
  %v1514 = vrot.slane %v1506, %v1513
  %1516 = vset.pattern.permute.xlu0 0
  %1517 = vperm.xlu0 %1516, %v791
  %v1518 = vpop.permute.xlu0 %1517
  %v1521 = vunpack.c.l.s4 839922192
  %v1522 = vunpack.c.0.s8 %v1521
  %v1523 = vlaneseq
  %v1524 = vshrl.u32 %v1523, 7
  %v1525 = vsub.s32 %v1522, %v1524
  %v1526 = vrot.slane %v1518, %v1525
  %1528 = vset.pattern.permute.xlu0 0
  %1529 = vperm.xlu0 %1528, %v792
  %v1530 = vpop.permute.xlu0 %1529
  %v1533 = vunpack.c.l.s4 839922192
  %v1534 = vunpack.c.0.s8 %v1533
  %v1535 = vlaneseq
  %v1536 = vshrl.u32 %v1535, 7
  %v1537 = vsub.s32 %v1534, %v1536
  %v1538 = vrot.slane %v1530, %v1537
  %1540 = vset.pattern.permute.xlu0 0
  %1541 = vperm.xlu0 %1540, %v793
  %v1542 = vpop.permute.xlu0 %1541
  %v1545 = vunpack.c.l.s4 839922192
  %v1546 = vunpack.c.0.s8 %v1545
  %v1547 = vlaneseq
  %v1548 = vshrl.u32 %v1547, 7
  %v1549 = vsub.s32 %v1546, %v1548
  %v1550 = vrot.slane %v1542, %v1549
  %1552 = vset.pattern.permute.xlu0 0
  %1553 = vperm.xlu0 %1552, %v794
  %v1554 = vpop.permute.xlu0 %1553
  %v1557 = vunpack.c.l.s4 839922192
  %v1558 = vunpack.c.0.s8 %v1557
  %v1559 = vlaneseq
  %v1560 = vshrl.u32 %v1559, 7
  %v1561 = vsub.s32 %v1558, %v1560
  %v1562 = vrot.slane %v1554, %v1561
  %v1627 = vunpack.c.l.b16 %v806
  %v1628 = vunpack.c.l.b16 %v818
  %v1629 = vunpack.c.l.b16 %v830
  %v1630 = vunpack.c.l.b16 %v842
  %v1631 = vunpack.c.l.b16 %v854
  %v1632 = vunpack.c.l.b16 %v866
  %v1633 = vunpack.c.l.b16 %v878
  %v1634 = vunpack.c.l.b16 %v890
  %v1635 = vunpack.c.l.b16 %v902
  %v1636 = vunpack.c.l.b16 %v914
  %v1637 = vunpack.c.l.b16 %v926
  %v1638 = vunpack.c.l.b16 %v938
  %v1639 = vunpack.c.l.b16 %v950
  %v1640 = vunpack.c.l.b16 %v962
  %v1641 = vunpack.c.l.b16 %v974
  %v1642 = vunpack.c.l.b16 %v986
  %v1643 = vunpack.c.l.b16 %v998
  %v1644 = vunpack.c.l.b16 %v1010
  %v1645 = vunpack.c.l.b16 %v1022
  %v1646 = vunpack.c.l.b16 %v1034
  %v1647 = vunpack.c.l.b16 %v1046
  %v1648 = vunpack.c.l.b16 %v1058
  %v1649 = vunpack.c.l.b16 %v1070
  %v1650 = vunpack.c.l.b16 %v1082
  %v1651 = vunpack.c.l.b16 %v1094
  %v1652 = vunpack.c.l.b16 %v1106
  %v1653 = vunpack.c.l.b16 %v1118
  %v1654 = vunpack.c.l.b16 %v1130
  %v1655 = vunpack.c.l.b16 %v1142
  %v1656 = vunpack.c.l.b16 %v1154
  %v1657 = vunpack.c.l.b16 %v1166
  %v1658 = vunpack.c.l.b16 %v1178
  %v1659 = vunpack.c.l.b16 %v1190
  %v1660 = vunpack.c.l.b16 %v1202
  %v1661 = vunpack.c.l.b16 %v1214
  %v1662 = vunpack.c.l.b16 %v1226
  %v1663 = vunpack.c.l.b16 %v1238
  %v1664 = vunpack.c.l.b16 %v1250
  %v1665 = vunpack.c.l.b16 %v1262
  %v1666 = vunpack.c.l.b16 %v1274
  %v1667 = vunpack.c.l.b16 %v1286
  %v1668 = vunpack.c.l.b16 %v1298
  %v1669 = vunpack.c.l.b16 %v1310
  %v1670 = vunpack.c.l.b16 %v1322
  %v1671 = vunpack.c.l.b16 %v1334
  %v1672 = vunpack.c.l.b16 %v1346
  %v1673 = vunpack.c.l.b16 %v1358
  %v1674 = vunpack.c.l.b16 %v1370
  %v1675 = vunpack.c.l.b16 %v1382
  %v1676 = vunpack.c.l.b16 %v1394
  %v1677 = vunpack.c.l.b16 %v1406
  %v1678 = vunpack.c.l.b16 %v1418
  %v1679 = vunpack.c.l.b16 %v1430
  %v1680 = vunpack.c.l.b16 %v1442
  %v1681 = vunpack.c.l.b16 %v1454
  %v1682 = vunpack.c.l.b16 %v1466
  %v1683 = vunpack.c.l.b16 %v1478
  %v1684 = vunpack.c.l.b16 %v1490
  %v1685 = vunpack.c.l.b16 %v1502
  %v1686 = vunpack.c.l.b16 %v1514
  %v1687 = vunpack.c.l.b16 %v1526
  %v1688 = vunpack.c.l.b16 %v1538
  %v1689 = vunpack.c.l.b16 %v1550
  %v1690 = vunpack.c.l.b16 %v1562
  %v1691 = vpack.c.b16 %v1628, %v1627
  %v1692 = vpack.c.b16 %v1630, %v1629
  %v1693 = vpack.c.b16 %v1632, %v1631
  %v1694 = vpack.c.b16 %v1634, %v1633
  %v1695 = vpack.c.b16 %v1636, %v1635
  %v1696 = vpack.c.b16 %v1638, %v1637
  %v1697 = vpack.c.b16 %v1640, %v1639
  %v1698 = vpack.c.b16 %v1642, %v1641
  %v1699 = vpack.c.b16 %v1644, %v1643
  %v1700 = vpack.c.b16 %v1646, %v1645
  %v1701 = vpack.c.b16 %v1648, %v1647
  %v1702 = vpack.c.b16 %v1650, %v1649
  %v1703 = vpack.c.b16 %v1652, %v1651
  %v1704 = vpack.c.b16 %v1654, %v1653
  %v1705 = vpack.c.b16 %v1656, %v1655
  %v1706 = vpack.c.b16 %v1658, %v1657
  %v1707 = vpack.c.b16 %v1660, %v1659
  %v1708 = vpack.c.b16 %v1662, %v1661
  %v1709 = vpack.c.b16 %v1664, %v1663
  %v1710 = vpack.c.b16 %v1666, %v1665
  %v1711 = vpack.c.b16 %v1668, %v1667
  %v1712 = vpack.c.b16 %v1670, %v1669
  %v1713 = vpack.c.b16 %v1672, %v1671
  %v1714 = vpack.c.b16 %v1674, %v1673
  %v1715 = vpack.c.b16 %v1676, %v1675
  %v1716 = vpack.c.b16 %v1678, %v1677
  %v1717 = vpack.c.b16 %v1680, %v1679
  %v1718 = vpack.c.b16 %v1682, %v1681
  %v1719 = vpack.c.b16 %v1684, %v1683
  %v1720 = vpack.c.b16 %v1686, %v1685
  %v1721 = vpack.c.b16 %v1688, %v1687
  %v1722 = vpack.c.b16 %v1690, %v1689
  %v1755 = vadd.bf16 %v699, %v1691
  %v1756 = vadd.bf16 %v700, %v1692
  %v1757 = vadd.bf16 %v701, %v1693
  %v1758 = vadd.bf16 %v702, %v1694
  %v1759 = vadd.bf16 %v703, %v1695
  %v1760 = vadd.bf16 %v704, %v1696
  %v1761 = vadd.bf16 %v705, %v1697
  %v1762 = vadd.bf16 %v706, %v1698
  %v1763 = vadd.bf16 %v707, %v1699
  %v1764 = vadd.bf16 %v708, %v1700
  %v1765 = vadd.bf16 %v709, %v1701
  %v1766 = vadd.bf16 %v710, %v1702
  %v1767 = vadd.bf16 %v711, %v1703
  %v1768 = vadd.bf16 %v712, %v1704
  %v1769 = vadd.bf16 %v713, %v1705
  %v1770 = vadd.bf16 %v714, %v1706
  %v1771 = vadd.bf16 %v715, %v1707
  %v1772 = vadd.bf16 %v716, %v1708
  %v1773 = vadd.bf16 %v717, %v1709
  %v1774 = vadd.bf16 %v718, %v1710
  %v1775 = vadd.bf16 %v719, %v1711
  %v1776 = vadd.bf16 %v720, %v1712
  %v1777 = vadd.bf16 %v721, %v1713
  %v1778 = vadd.bf16 %v722, %v1714
  %v1779 = vadd.bf16 %v723, %v1715
  %v1780 = vadd.bf16 %v724, %v1716
  %v1781 = vadd.bf16 %v725, %v1717
  %v1782 = vadd.bf16 %v726, %v1718
  %v1783 = vadd.bf16 %v727, %v1719
  %v1784 = vadd.bf16 %v728, %v1720
  %v1785 = vadd.bf16 %v729, %v1721
  %v1786 = vadd.bf16 %v730, %v1722
  %v1787 = vmax.bf16 %v1755, 0
  %v1788 = vmax.bf16 %v1756, 0
  %v1789 = vmax.bf16 %v1757, 0
  %v1790 = vmax.bf16 %v1758, 0
  %v1791 = vmax.bf16 %v1759, 0
  %v1792 = vmax.bf16 %v1760, 0
  %v1793 = vmax.bf16 %v1761, 0
  %v1794 = vmax.bf16 %v1762, 0
  %v1795 = vmax.bf16 %v1763, 0
  %v1796 = vmax.bf16 %v1764, 0
  %v1797 = vmax.bf16 %v1765, 0
  %v1798 = vmax.bf16 %v1766, 0
  %v1799 = vmax.bf16 %v1767, 0
  %v1800 = vmax.bf16 %v1768, 0
  %v1801 = vmax.bf16 %v1769, 0
  %v1802 = vmax.bf16 %v1770, 0
  %v1803 = vmax.bf16 %v1771, 0
  %v1804 = vmax.bf16 %v1772, 0
  %v1805 = vmax.bf16 %v1773, 0
  %v1806 = vmax.bf16 %v1774, 0
  %v1807 = vmax.bf16 %v1775, 0
  %v1808 = vmax.bf16 %v1776, 0
  %v1809 = vmax.bf16 %v1777, 0
  %v1810 = vmax.bf16 %v1778, 0
  %v1811 = vmax.bf16 %v1779, 0
  %v1812 = vmax.bf16 %v1780, 0
  %v1813 = vmax.bf16 %v1781, 0
  %v1814 = vmax.bf16 %v1782, 0
  %v1815 = vmax.bf16 %v1783, 0
  %v1816 = vmax.bf16 %v1784, 0
  %v1817 = vmax.bf16 %v1785, 0
  %v1818 = vmax.bf16 %v1786, 0
  %v1819 = vld [vmem:[%s3] sm:$0xff]
  %v1820 = vld [vmem:[%s3 + $0x8] sm:$0xff]
  %v1821 = vld [vmem:[%s3 + $0x10] sm:$0xff]
  %v1822 = vld [vmem:[%s3 + $0x18] sm:$0xff]
  %v1823 = vld [vmem:[%s3 + $0x20] sm:$0xff]
  %v1824 = vld [vmem:[%s3 + $0x28] sm:$0xff]
  %v1825 = vld [vmem:[%s3 + $0x30] sm:$0xff]
  %v1826 = vld [vmem:[%s3 + $0x38] sm:$0xff]
  %v1827 = vld [vmem:[%s3 + $0x40] sm:$0xff]
  %v1828 = vld [vmem:[%s3 + $0x48] sm:$0xff]
  %v1829 = vld [vmem:[%s3 + $0x50] sm:$0xff]
  %v1830 = vld [vmem:[%s3 + $0x58] sm:$0xff]
  %v1831 = vld [vmem:[%s3 + $0x60] sm:$0xff]
  %v1832 = vld [vmem:[%s3 + $0x68] sm:$0xff]
  %v1833 = vld [vmem:[%s3 + $0x70] sm:$0xff]
  %v1834 = vld [vmem:[%s3 + $0x78] sm:$0xff]
  %v1835 = vld [vmem:[%s3 + $0x80] sm:$0xff]
  %v1836 = vld [vmem:[%s3 + $0x88] sm:$0xff]
  %v1837 = vld [vmem:[%s3 + $0x90] sm:$0xff]
  %v1838 = vld [vmem:[%s3 + $0x98] sm:$0xff]
  %v1839 = vld [vmem:[%s3 + $0xa0] sm:$0xff]
  %v1840 = vld [vmem:[%s3 + $0xa8] sm:$0xff]
  %v1841 = vld [vmem:[%s3 + $0xb0] sm:$0xff]
  %v1842 = vld [vmem:[%s3 + $0xb8] sm:$0xff]
  %v1843 = vld [vmem:[%s3 + $0xc0] sm:$0xff]
  %v1844 = vld [vmem:[%s3 + $0xc8] sm:$0xff]
  %v1845 = vld [vmem:[%s3 + $0xd0] sm:$0xff]
  %v1846 = vld [vmem:[%s3 + $0xd8] sm:$0xff]
  %v1847 = vld [vmem:[%s3 + $0xe0] sm:$0xff]
  %v1848 = vld [vmem:[%s3 + $0xe8] sm:$0xff]
  %v1849 = vld [vmem:[%s3 + $0xf0] sm:$0xff]
  %v1850 = vld [vmem:[%s3 + $0xf8] sm:$0xff]
  %v1851 = vld [vmem:[%s3 + $0x100] sm:$0xff]
  %v1852 = vld [vmem:[%s3 + $0x108] sm:$0xff]
  %v1853 = vld [vmem:[%s3 + $0x110] sm:$0xff]
  %v1854 = vld [vmem:[%s3 + $0x118] sm:$0xff]
  %v1855 = vld [vmem:[%s3 + $0x120] sm:$0xff]
  %v1856 = vld [vmem:[%s3 + $0x128] sm:$0xff]
  %v1857 = vld [vmem:[%s3 + $0x130] sm:$0xff]
  %v1858 = vld [vmem:[%s3 + $0x138] sm:$0xff]
  %v1859 = vld [vmem:[%s3 + $0x140] sm:$0xff]
  %v1860 = vld [vmem:[%s3 + $0x148] sm:$0xff]
  %v1861 = vld [vmem:[%s3 + $0x150] sm:$0xff]
  %v1862 = vld [vmem:[%s3 + $0x158] sm:$0xff]
  %v1863 = vld [vmem:[%s3 + $0x160] sm:$0xff]
  %v1864 = vld [vmem:[%s3 + $0x168] sm:$0xff]
  %v1865 = vld [vmem:[%s3 + $0x170] sm:$0xff]
  %v1866 = vld [vmem:[%s3 + $0x178] sm:$0xff]
  %v1867 = vld [vmem:[%s3 + $0x180] sm:$0xff]
  %v1868 = vld [vmem:[%s3 + $0x188] sm:$0xff]
  %v1869 = vld [vmem:[%s3 + $0x190] sm:$0xff]
  %v1870 = vld [vmem:[%s3 + $0x198] sm:$0xff]
  %v1871 = vld [vmem:[%s3 + $0x1a0] sm:$0xff]
  %v1872 = vld [vmem:[%s3 + $0x1a8] sm:$0xff]
  %v1873 = vld [vmem:[%s3 + $0x1b0] sm:$0xff]
  %v1874 = vld [vmem:[%s3 + $0x1b8] sm:$0xff]
  %v1875 = vld [vmem:[%s3 + $0x1c0] sm:$0xff]
  %v1876 = vld [vmem:[%s3 + $0x1c8] sm:$0xff]
  %v1877 = vld [vmem:[%s3 + $0x1d0] sm:$0xff]
  %v1878 = vld [vmem:[%s3 + $0x1d8] sm:$0xff]
  %v1879 = vld [vmem:[%s3 + $0x1e0] sm:$0xff]
  %v1880 = vld [vmem:[%s3 + $0x1e8] sm:$0xff]
  %v1881 = vld [vmem:[%s3 + $0x1f0] sm:$0xff]
  %v1882 = vld [vmem:[%s3 + $0x1f8] sm:$0xff]
  %v1947 = vunpack.c.l.b16 %v1819
  %v1948 = vunpack.c.h.b16 %v1819
  %v1949 = vunpack.c.l.b16 %v1820
  %v1950 = vunpack.c.h.b16 %v1820
  %v1951 = vunpack.c.l.b16 %v1821
  %v1952 = vunpack.c.h.b16 %v1821
  %v1953 = vunpack.c.l.b16 %v1822
  %v1954 = vunpack.c.h.b16 %v1822
  %v1955 = vunpack.c.l.b16 %v1823
  %v1956 = vunpack.c.h.b16 %v1823
  %v1957 = vunpack.c.l.b16 %v1824
  %v1958 = vunpack.c.h.b16 %v1824
  %v1959 = vunpack.c.l.b16 %v1825
  %v1960 = vunpack.c.h.b16 %v1825
  %v1961 = vunpack.c.l.b16 %v1826
  %v1962 = vunpack.c.h.b16 %v1826
  %v1963 = vunpack.c.l.b16 %v1827
  %v1964 = vunpack.c.h.b16 %v1827
  %v1965 = vunpack.c.l.b16 %v1828
  %v1966 = vunpack.c.h.b16 %v1828
  %v1967 = vunpack.c.l.b16 %v1829
  %v1968 = vunpack.c.h.b16 %v1829
  %v1969 = vunpack.c.l.b16 %v1830
  %v1970 = vunpack.c.h.b16 %v1830
  %v1971 = vunpack.c.l.b16 %v1831
  %v1972 = vunpack.c.h.b16 %v1831
  %v1973 = vunpack.c.l.b16 %v1832
  %v1974 = vunpack.c.h.b16 %v1832
  %v1975 = vunpack.c.l.b16 %v1833
  %v1976 = vunpack.c.h.b16 %v1833
  %v1977 = vunpack.c.l.b16 %v1834
  %v1978 = vunpack.c.h.b16 %v1834
  %v1979 = vunpack.c.l.b16 %v1835
  %v1980 = vunpack.c.h.b16 %v1835
  %v1981 = vunpack.c.l.b16 %v1836
  %v1982 = vunpack.c.h.b16 %v1836
  %v1983 = vunpack.c.l.b16 %v1837
  %v1984 = vunpack.c.h.b16 %v1837
  %v1985 = vunpack.c.l.b16 %v1838
  %v1986 = vunpack.c.h.b16 %v1838
  %v1987 = vunpack.c.l.b16 %v1839
  %v1988 = vunpack.c.h.b16 %v1839
  %v1989 = vunpack.c.l.b16 %v1840
  %v1990 = vunpack.c.h.b16 %v1840
  %v1991 = vunpack.c.l.b16 %v1841
  %v1992 = vunpack.c.h.b16 %v1841
  %v1993 = vunpack.c.l.b16 %v1842
  %v1994 = vunpack.c.h.b16 %v1842
  %v1995 = vunpack.c.l.b16 %v1843
  %v1996 = vunpack.c.h.b16 %v1843
  %v1997 = vunpack.c.l.b16 %v1844
  %v1998 = vunpack.c.h.b16 %v1844
  %v1999 = vunpack.c.l.b16 %v1845
  %v2000 = vunpack.c.h.b16 %v1845
  %v2001 = vunpack.c.l.b16 %v1846
  %v2002 = vunpack.c.h.b16 %v1846
  %v2003 = vunpack.c.l.b16 %v1847
  %v2004 = vunpack.c.h.b16 %v1847
  %v2005 = vunpack.c.l.b16 %v1848
  %v2006 = vunpack.c.h.b16 %v1848
  %v2007 = vunpack.c.l.b16 %v1849
  %v2008 = vunpack.c.h.b16 %v1849
  %v2009 = vunpack.c.l.b16 %v1850
  %v2010 = vunpack.c.h.b16 %v1850
  %v2011 = vunpack.c.l.b16 %v1851
  %v2012 = vunpack.c.h.b16 %v1851
  %v2013 = vunpack.c.l.b16 %v1852
  %v2014 = vunpack.c.h.b16 %v1852
  %v2015 = vunpack.c.l.b16 %v1853
  %v2016 = vunpack.c.h.b16 %v1853
  %v2017 = vunpack.c.l.b16 %v1854
  %v2018 = vunpack.c.h.b16 %v1854
  %v2019 = vunpack.c.l.b16 %v1855
  %v2020 = vunpack.c.h.b16 %v1855
  %v2021 = vunpack.c.l.b16 %v1856
  %v2022 = vunpack.c.h.b16 %v1856
  %v2023 = vunpack.c.l.b16 %v1857
  %v2024 = vunpack.c.h.b16 %v1857
  %v2025 = vunpack.c.l.b16 %v1858
  %v2026 = vunpack.c.h.b16 %v1858
  %v2027 = vunpack.c.l.b16 %v1859
  %v2028 = vunpack.c.h.b16 %v1859
  %v2029 = vunpack.c.l.b16 %v1860
  %v2030 = vunpack.c.h.b16 %v1860
  %v2031 = vunpack.c.l.b16 %v1861
  %v2032 = vunpack.c.h.b16 %v1861
  %v2033 = vunpack.c.l.b16 %v1862
  %v2034 = vunpack.c.h.b16 %v1862
  %v2035 = vunpack.c.l.b16 %v1863
  %v2036 = vunpack.c.h.b16 %v1863
  %v2037 = vunpack.c.l.b16 %v1864
  %v2038 = vunpack.c.h.b16 %v1864
  %v2039 = vunpack.c.l.b16 %v1865
  %v2040 = vunpack.c.h.b16 %v1865
  %v2041 = vunpack.c.l.b16 %v1866
  %v2042 = vunpack.c.h.b16 %v1866
  %v2043 = vunpack.c.l.b16 %v1867
  %v2044 = vunpack.c.h.b16 %v1867
  %v2045 = vunpack.c.l.b16 %v1868
  %v2046 = vunpack.c.h.b16 %v1868
  %v2047 = vunpack.c.l.b16 %v1869
  %v2048 = vunpack.c.h.b16 %v1869
  %v2049 = vunpack.c.l.b16 %v1870
  %v2050 = vunpack.c.h.b16 %v1870
  %v2051 = vunpack.c.l.b16 %v1871
  %v2052 = vunpack.c.h.b16 %v1871
  %v2053 = vunpack.c.l.b16 %v1872
  %v2054 = vunpack.c.h.b16 %v1872
  %v2055 = vunpack.c.l.b16 %v1873
  %v2056 = vunpack.c.h.b16 %v1873
  %v2057 = vunpack.c.l.b16 %v1874
  %v2058 = vunpack.c.h.b16 %v1874
  %v2059 = vunpack.c.l.b16 %v1875
  %v2060 = vunpack.c.h.b16 %v1875
  %v2061 = vunpack.c.l.b16 %v1876
  %v2062 = vunpack.c.h.b16 %v1876
  %v2063 = vunpack.c.l.b16 %v1877
  %v2064 = vunpack.c.h.b16 %v1877
  %v2065 = vunpack.c.l.b16 %v1878
  %v2066 = vunpack.c.h.b16 %v1878
  %v2067 = vunpack.c.l.b16 %v1879
  %v2068 = vunpack.c.h.b16 %v1879
  %v2069 = vunpack.c.l.b16 %v1880
  %v2070 = vunpack.c.h.b16 %v1880
  %v2071 = vunpack.c.l.b16 %v1881
  %v2072 = vunpack.c.h.b16 %v1881
  %v2073 = vunpack.c.l.b16 %v1882
  %v2074 = vunpack.c.h.b16 %v1882
  %v2075 = vpack.c.b16 %v1951, %v1947
  %v2076 = vpack.c.b16 %v1952, %v1948
  %v2077 = vpack.c.b16 %v1953, %v1949
  %v2078 = vpack.c.b16 %v1954, %v1950
  %v2079 = vpack.c.b16 %v1959, %v1955
  %v2080 = vpack.c.b16 %v1960, %v1956
  %v2081 = vpack.c.b16 %v1961, %v1957
  %v2082 = vpack.c.b16 %v1962, %v1958
  %v2083 = vpack.c.b16 %v1967, %v1963
  %v2084 = vpack.c.b16 %v1968, %v1964
  %v2085 = vpack.c.b16 %v1969, %v1965
  %v2086 = vpack.c.b16 %v1970, %v1966
  %v2087 = vpack.c.b16 %v1975, %v1971
  %v2088 = vpack.c.b16 %v1976, %v1972
  %v2089 = vpack.c.b16 %v1977, %v1973
  %v2090 = vpack.c.b16 %v1978, %v1974
  %v2091 = vpack.c.b16 %v1983, %v1979
  %v2092 = vpack.c.b16 %v1984, %v1980
  %v2093 = vpack.c.b16 %v1985, %v1981
  %v2094 = vpack.c.b16 %v1986, %v1982
  %v2095 = vpack.c.b16 %v1991, %v1987
  %v2096 = vpack.c.b16 %v1992, %v1988
  %v2097 = vpack.c.b16 %v1993, %v1989
  %v2098 = vpack.c.b16 %v1994, %v1990
  %v2099 = vpack.c.b16 %v1999, %v1995
  %v2100 = vpack.c.b16 %v2000, %v1996
  %v2101 = vpack.c.b16 %v2001, %v1997
  %v2102 = vpack.c.b16 %v2002, %v1998
  %v2103 = vpack.c.b16 %v2007, %v2003
  %v2104 = vpack.c.b16 %v2008, %v2004
  %v2105 = vpack.c.b16 %v2009, %v2005
  %v2106 = vpack.c.b16 %v2010, %v2006
  %v2107 = vpack.c.b16 %v2015, %v2011
  %v2108 = vpack.c.b16 %v2016, %v2012
  %v2109 = vpack.c.b16 %v2017, %v2013
  %v2110 = vpack.c.b16 %v2018, %v2014
  %v2111 = vpack.c.b16 %v2023, %v2019
  %v2112 = vpack.c.b16 %v2024, %v2020
  %v2113 = vpack.c.b16 %v2025, %v2021
  %v2114 = vpack.c.b16 %v2026, %v2022
  %v2115 = vpack.c.b16 %v2031, %v2027
  %v2116 = vpack.c.b16 %v2032, %v2028
  %v2117 = vpack.c.b16 %v2033, %v2029
  %v2118 = vpack.c.b16 %v2034, %v2030
  %v2119 = vpack.c.b16 %v2039, %v2035
  %v2120 = vpack.c.b16 %v2040, %v2036
  %v2121 = vpack.c.b16 %v2041, %v2037
  %v2122 = vpack.c.b16 %v2042, %v2038
  %v2123 = vpack.c.b16 %v2047, %v2043
  %v2124 = vpack.c.b16 %v2048, %v2044
  %v2125 = vpack.c.b16 %v2049, %v2045
  %v2126 = vpack.c.b16 %v2050, %v2046
  %v2127 = vpack.c.b16 %v2055, %v2051
  %v2128 = vpack.c.b16 %v2056, %v2052
  %v2129 = vpack.c.b16 %v2057, %v2053
  %v2130 = vpack.c.b16 %v2058, %v2054
  %v2131 = vpack.c.b16 %v2063, %v2059
  %v2132 = vpack.c.b16 %v2064, %v2060
  %v2133 = vpack.c.b16 %v2065, %v2061
  %v2134 = vpack.c.b16 %v2066, %v2062
  %v2135 = vpack.c.b16 %v2071, %v2067
  %v2136 = vpack.c.b16 %v2072, %v2068
  %v2137 = vpack.c.b16 %v2073, %v2069
  %v2138 = vpack.c.b16 %v2074, %v2070
  %2203 = vmatprep.subr.bf16.mxu0 0
  %2204 = vmatpush1.bf16.msra.mxu0 %v1794
  %2205 = vmatprep.subr.bf16.mxu0 0
  %2206 = vmatpush1.bf16.msra.mxu0 %v1793
  %2207 = vmatprep.subr.bf16.mxu0 0
  %2208 = vmatpush1.bf16.msra.mxu0 %v1792
  %2209 = vmatprep.subr.bf16.mxu0 0
  %2210 = vmatpush1.bf16.msra.mxu0 %v1791
  %2211 = vmatprep.subr.bf16.mxu0 0
  %2212 = vmatpush1.bf16.msra.mxu0 %v1790
  %2213 = vmatprep.subr.bf16.mxu0 0
  %2214 = vmatpush1.bf16.msra.mxu0 %v1789
  %2215 = vmatprep.subr.bf16.mxu0 0
  %2216 = vmatpush1.bf16.msra.mxu0 %v1788
  %2217 = vmatprep.subr.bf16.mxu0 0
  %2218 = vmatpush1.bf16.msra.mxu0 %v1787
  %2219 = vmatprep.subr.bf16.mxu0 0
  %2220 = vmatpush2.bf16.msra.mxu0 %v1802
  %2221 = vmatprep.subr.bf16.mxu0 0
  %2222 = vmatpush2.bf16.msra.mxu0 %v1801
  %2223 = vmatprep.subr.bf16.mxu0 0
  %2224 = vmatpush2.bf16.msra.mxu0 %v1800
  %2225 = vmatprep.subr.bf16.mxu0 0
  %2226 = vmatpush2.bf16.msra.mxu0 %v1799
  %2227 = vmatprep.subr.bf16.mxu0 0
  %2228 = vmatpush2.bf16.msra.mxu0 %v1798
  %2229 = vmatprep.subr.bf16.mxu0 0
  %2230 = vmatpush2.bf16.msra.mxu0 %v1797
  %2231 = vmatprep.subr.bf16.mxu0 0
  %2232 = vmatpush2.bf16.msra.mxu0 %v1796
  %2233 = vmatprep.subr.bf16.mxu0 0
  %2234 = vmatpush2.bf16.msra.mxu0 %v1795
  %2235 = vmatprep.mubr.bf16.mxu0 %v2076
  %2236 = vmatmul.mubr.bf16.gmra.mxu0 %v2075
  %v2237 = vpop.f32.mrf.mxu0
  %v2238 = vadd.f32 0.0, %v2237
  %v2239 = vpop.f32.mrf.mxu0
  %v2240 = vpop.f32.mrf.mxu0
  %v2241 = vadd.f32 0.0, %v2240
  %v2242 = vpop.f32.mrf.mxu0
  %2243 = vmatprep.mubr.bf16.mxu0 %v2080
  %2244 = vmatmul.mubr.bf16.gmra.mxu0 %v2079
  %v2245 = vpop.f32.mrf.mxu0
  %v2246 = vadd.f32 0.0, %v2245
  %v2247 = vpop.f32.mrf.mxu0
  %v2248 = vpop.f32.mrf.mxu0
  %v2249 = vadd.f32 0.0, %v2248
  %v2250 = vpop.f32.mrf.mxu0
  %2251 = vmatprep.mubr.bf16.mxu0 %v2084
  %2252 = vmatmul.mubr.bf16.gmra.mxu0 %v2083
  %v2253 = vpop.f32.mrf.mxu0
  %v2254 = vadd.f32 0.0, %v2253
  %v2255 = vpop.f32.mrf.mxu0
  %v2256 = vpop.f32.mrf.mxu0
  %v2257 = vadd.f32 0.0, %v2256
  %v2258 = vpop.f32.mrf.mxu0
  %2259 = vmatprep.mubr.bf16.mxu0 %v2088
  %2260 = vmatmul.mubr.bf16.gmra.mxu0 %v2087
  %v2261 = vpop.f32.mrf.mxu0
  %v2262 = vadd.f32 0.0, %v2261
  %v2263 = vpop.f32.mrf.mxu0
  %v2264 = vpop.f32.mrf.mxu0
  %v2265 = vadd.f32 0.0, %v2264
  %v2266 = vpop.f32.mrf.mxu0
  %2267 = vmatprep.mubr.bf16.mxu0 %v2092
  %2268 = vmatmul.mubr.bf16.gmra.mxu0 %v2091
  %v2269 = vpop.f32.mrf.mxu0
  %v2270 = vadd.f32 0.0, %v2269
  %v2271 = vpop.f32.mrf.mxu0
  %v2272 = vpop.f32.mrf.mxu0
  %v2273 = vadd.f32 0.0, %v2272
  %v2274 = vpop.f32.mrf.mxu0
  %2275 = vmatprep.mubr.bf16.mxu0 %v2096
  %2276 = vmatmul.mubr.bf16.gmra.mxu0 %v2095
  %v2277 = vpop.f32.mrf.mxu0
  %v2278 = vadd.f32 0.0, %v2277
  %v2279 = vpop.f32.mrf.mxu0
  %v2280 = vpop.f32.mrf.mxu0
  %v2281 = vadd.f32 0.0, %v2280
  %v2282 = vpop.f32.mrf.mxu0
  %2283 = vmatprep.mubr.bf16.mxu0 %v2100
  %2284 = vmatmul.mubr.bf16.gmra.mxu0 %v2099
  %v2285 = vpop.f32.mrf.mxu0
  %v2286 = vadd.f32 0.0, %v2285
  %v2287 = vpop.f32.mrf.mxu0
  %v2288 = vpop.f32.mrf.mxu0
  %v2289 = vadd.f32 0.0, %v2288
  %v2290 = vpop.f32.mrf.mxu0
  %2291 = vmatprep.mubr.bf16.mxu0 %v2104
  %2292 = vmatmul.mubr.bf16.gmra.mxu0 %v2103
  %v2293 = vpop.f32.mrf.mxu0
  %v2294 = vadd.f32 0.0, %v2293
  %v2295 = vpop.f32.mrf.mxu0
  %v2296 = vpop.f32.mrf.mxu0
  %v2297 = vadd.f32 0.0, %v2296
  %v2298 = vpop.f32.mrf.mxu0
  %2299 = vmatprep.mubr.bf16.mxu0 %v2108
  %2300 = vmatmul.mubr.bf16.gmra.mxu0 %v2107
  %v2301 = vpop.f32.mrf.mxu0
  %v2302 = vadd.f32 0.0, %v2301
  %v2303 = vpop.f32.mrf.mxu0
  %v2304 = vpop.f32.mrf.mxu0
  %v2305 = vadd.f32 0.0, %v2304
  %v2306 = vpop.f32.mrf.mxu0
  %2307 = vmatprep.mubr.bf16.mxu0 %v2112
  %2308 = vmatmul.mubr.bf16.gmra.mxu0 %v2111
  %v2309 = vpop.f32.mrf.mxu0
  %v2310 = vadd.f32 0.0, %v2309
  %v2311 = vpop.f32.mrf.mxu0
  %v2312 = vpop.f32.mrf.mxu0
  %v2313 = vadd.f32 0.0, %v2312
  %v2314 = vpop.f32.mrf.mxu0
  %2315 = vmatprep.mubr.bf16.mxu0 %v2116
  %2316 = vmatmul.mubr.bf16.gmra.mxu0 %v2115
  %v2317 = vpop.f32.mrf.mxu0
  %v2318 = vadd.f32 0.0, %v2317
  %v2319 = vpop.f32.mrf.mxu0
  %v2320 = vpop.f32.mrf.mxu0
  %v2321 = vadd.f32 0.0, %v2320
  %v2322 = vpop.f32.mrf.mxu0
  %2323 = vmatprep.mubr.bf16.mxu0 %v2120
  %2324 = vmatmul.mubr.bf16.gmra.mxu0 %v2119
  %v2325 = vpop.f32.mrf.mxu0
  %v2326 = vadd.f32 0.0, %v2325
  %v2327 = vpop.f32.mrf.mxu0
  %v2328 = vpop.f32.mrf.mxu0
  %v2329 = vadd.f32 0.0, %v2328
  %v2330 = vpop.f32.mrf.mxu0
  %2331 = vmatprep.mubr.bf16.mxu0 %v2124
  %2332 = vmatmul.mubr.bf16.gmra.mxu0 %v2123
  %v2333 = vpop.f32.mrf.mxu0
  %v2334 = vadd.f32 0.0, %v2333
  %v2335 = vpop.f32.mrf.mxu0
  %v2336 = vpop.f32.mrf.mxu0
  %v2337 = vadd.f32 0.0, %v2336
  %v2338 = vpop.f32.mrf.mxu0
  %2339 = vmatprep.mubr.bf16.mxu0 %v2128
  %2340 = vmatmul.mubr.bf16.gmra.mxu0 %v2127
  %v2341 = vpop.f32.mrf.mxu0
  %v2342 = vadd.f32 0.0, %v2341
  %v2343 = vpop.f32.mrf.mxu0
  %v2344 = vpop.f32.mrf.mxu0
  %v2345 = vadd.f32 0.0, %v2344
  %v2346 = vpop.f32.mrf.mxu0
  %2347 = vmatprep.mubr.bf16.mxu0 %v2132
  %2348 = vmatmul.mubr.bf16.gmra.mxu0 %v2131
  %v2349 = vpop.f32.mrf.mxu0
  %v2350 = vadd.f32 0.0, %v2349
  %v2351 = vpop.f32.mrf.mxu0
  %v2352 = vpop.f32.mrf.mxu0
  %v2353 = vadd.f32 0.0, %v2352
  %v2354 = vpop.f32.mrf.mxu0
  %2355 = vmatprep.mubr.bf16.mxu0 %v2136
  %2356 = vmatmul.mubr.bf16.gmra.mxu0 %v2135
  %v2357 = vpop.f32.mrf.mxu0
  %v2358 = vadd.f32 0.0, %v2357
  %v2359 = vpop.f32.mrf.mxu0
  %v2360 = vpop.f32.mrf.mxu0
  %v2361 = vadd.f32 0.0, %v2360
  %v2362 = vpop.f32.mrf.mxu0
  %2363 = vdwg.mxu0
  %2364 = vmatprep.subr.bf16.mxu0 0
  %2365 = vmatpush1.bf16.msra.mxu0 %v1810
  %2366 = vmatprep.subr.bf16.mxu0 0
  %2367 = vmatpush1.bf16.msra.mxu0 %v1809
  %2368 = vmatprep.subr.bf16.mxu0 0
  %2369 = vmatpush1.bf16.msra.mxu0 %v1808
  %2370 = vmatprep.subr.bf16.mxu0 0
  %2371 = vmatpush1.bf16.msra.mxu0 %v1807
  %2372 = vmatprep.subr.bf16.mxu0 0
  %2373 = vmatpush1.bf16.msra.mxu0 %v1806
  %2374 = vmatprep.subr.bf16.mxu0 0
  %2375 = vmatpush1.bf16.msra.mxu0 %v1805
  %2376 = vmatprep.subr.bf16.mxu0 0
  %2377 = vmatpush1.bf16.msra.mxu0 %v1804
  %2378 = vmatprep.subr.bf16.mxu0 0
  %2379 = vmatpush1.bf16.msra.mxu0 %v1803
  %2380 = vmatprep.subr.bf16.mxu0 0
  %2381 = vmatpush2.bf16.msra.mxu0 %v1818
  %2382 = vmatprep.subr.bf16.mxu0 0
  %2383 = vmatpush2.bf16.msra.mxu0 %v1817
  %2384 = vmatprep.subr.bf16.mxu0 0
  %2385 = vmatpush2.bf16.msra.mxu0 %v1816
  %2386 = vmatprep.subr.bf16.mxu0 0
  %2387 = vmatpush2.bf16.msra.mxu0 %v1815
  %2388 = vmatprep.subr.bf16.mxu0 0
  %2389 = vmatpush2.bf16.msra.mxu0 %v1814
  %2390 = vmatprep.subr.bf16.mxu0 0
  %2391 = vmatpush2.bf16.msra.mxu0 %v1813
  %2392 = vmatprep.subr.bf16.mxu0 0
  %2393 = vmatpush2.bf16.msra.mxu0 %v1812
  %2394 = vmatprep.subr.bf16.mxu0 0
  %2395 = vmatpush2.bf16.msra.mxu0 %v1811
  %2396 = vmatprep.mubr.bf16.mxu0 %v2078
  %2397 = vmatmul.mubr.bf16.gmra.mxu0 %v2077
  %v2398 = vpop.f32.mrf.mxu0
  %v2399 = vadd.f32 %v2238, %v2398
  %v2400 = vpop.f32.mrf.mxu0
  %v2401 = vpop.f32.mrf.mxu0
  %v2402 = vadd.f32 %v2241, %v2401
  %v2403 = vpop.f32.mrf.mxu0
  %2404 = vmatprep.mubr.bf16.mxu0 %v2082
  %2405 = vmatmul.mubr.bf16.gmra.mxu0 %v2081
  %v2406 = vpop.f32.mrf.mxu0
  %v2407 = vadd.f32 %v2246, %v2406
  %v2408 = vpop.f32.mrf.mxu0
  %v2409 = vpop.f32.mrf.mxu0
  %v2410 = vadd.f32 %v2249, %v2409
  %v2411 = vpop.f32.mrf.mxu0
  %2412 = vmatprep.mubr.bf16.mxu0 %v2086
  %2413 = vmatmul.mubr.bf16.gmra.mxu0 %v2085
  %v2414 = vpop.f32.mrf.mxu0
  %v2415 = vadd.f32 %v2254, %v2414
  %v2416 = vpop.f32.mrf.mxu0
  %v2417 = vpop.f32.mrf.mxu0
  %v2418 = vadd.f32 %v2257, %v2417
  %v2419 = vpop.f32.mrf.mxu0
  %2420 = vmatprep.mubr.bf16.mxu0 %v2090
  %2421 = vmatmul.mubr.bf16.gmra.mxu0 %v2089
  %v2422 = vpop.f32.mrf.mxu0
  %v2423 = vadd.f32 %v2262, %v2422
  %v2424 = vpop.f32.mrf.mxu0
  %v2425 = vpop.f32.mrf.mxu0
  %v2426 = vadd.f32 %v2265, %v2425
  %v2427 = vpop.f32.mrf.mxu0
  %2428 = vmatprep.mubr.bf16.mxu0 %v2094
  %2429 = vmatmul.mubr.bf16.gmra.mxu0 %v2093
  %v2430 = vpop.f32.mrf.mxu0
  %v2431 = vadd.f32 %v2270, %v2430
  %v2432 = vpop.f32.mrf.mxu0
  %v2433 = vpop.f32.mrf.mxu0
  %v2434 = vadd.f32 %v2273, %v2433
  %v2435 = vpop.f32.mrf.mxu0
  %2436 = vmatprep.mubr.bf16.mxu0 %v2098
  %2437 = vmatmul.mubr.bf16.gmra.mxu0 %v2097
  %v2438 = vpop.f32.mrf.mxu0
  %v2439 = vadd.f32 %v2278, %v2438
  %v2440 = vpop.f32.mrf.mxu0
  %v2441 = vpop.f32.mrf.mxu0
  %v2442 = vadd.f32 %v2281, %v2441
  %v2443 = vpop.f32.mrf.mxu0
  %2444 = vmatprep.mubr.bf16.mxu0 %v2102
  %2445 = vmatmul.mubr.bf16.gmra.mxu0 %v2101
  %v2446 = vpop.f32.mrf.mxu0
  %v2447 = vadd.f32 %v2286, %v2446
  %v2448 = vpop.f32.mrf.mxu0
  %v2449 = vpop.f32.mrf.mxu0
  %v2450 = vadd.f32 %v2289, %v2449
  %v2451 = vpop.f32.mrf.mxu0
  %2452 = vmatprep.mubr.bf16.mxu0 %v2106
  %2453 = vmatmul.mubr.bf16.gmra.mxu0 %v2105
  %v2454 = vpop.f32.mrf.mxu0
  %v2455 = vadd.f32 %v2294, %v2454
  %v2456 = vpop.f32.mrf.mxu0
  %v2457 = vpop.f32.mrf.mxu0
  %v2458 = vadd.f32 %v2297, %v2457
  %v2459 = vpop.f32.mrf.mxu0
  %2460 = vmatprep.mubr.bf16.mxu0 %v2110
  %2461 = vmatmul.mubr.bf16.gmra.mxu0 %v2109
  %v2462 = vpop.f32.mrf.mxu0
  %v2463 = vadd.f32 %v2302, %v2462
  %v2464 = vpop.f32.mrf.mxu0
  %v2465 = vpop.f32.mrf.mxu0
  %v2466 = vadd.f32 %v2305, %v2465
  %v2467 = vpop.f32.mrf.mxu0
  %2468 = vmatprep.mubr.bf16.mxu0 %v2114
  %2469 = vmatmul.mubr.bf16.gmra.mxu0 %v2113
  %v2470 = vpop.f32.mrf.mxu0
  %v2471 = vadd.f32 %v2310, %v2470
  %v2472 = vpop.f32.mrf.mxu0
  %v2473 = vpop.f32.mrf.mxu0
  %v2474 = vadd.f32 %v2313, %v2473
  %v2475 = vpop.f32.mrf.mxu0
  %2476 = vmatprep.mubr.bf16.mxu0 %v2118
  %2477 = vmatmul.mubr.bf16.gmra.mxu0 %v2117
  %v2478 = vpop.f32.mrf.mxu0
  %v2479 = vadd.f32 %v2318, %v2478
  %v2480 = vpop.f32.mrf.mxu0
  %v2481 = vpop.f32.mrf.mxu0
  %v2482 = vadd.f32 %v2321, %v2481
  %v2483 = vpop.f32.mrf.mxu0
  %2484 = vmatprep.mubr.bf16.mxu0 %v2122
  %2485 = vmatmul.mubr.bf16.gmra.mxu0 %v2121
  %v2486 = vpop.f32.mrf.mxu0
  %v2487 = vadd.f32 %v2326, %v2486
  %v2488 = vpop.f32.mrf.mxu0
  %v2489 = vpop.f32.mrf.mxu0
  %v2490 = vadd.f32 %v2329, %v2489
  %v2491 = vpop.f32.mrf.mxu0
  %2492 = vmatprep.mubr.bf16.mxu0 %v2126
  %2493 = vmatmul.mubr.bf16.gmra.mxu0 %v2125
  %v2494 = vpop.f32.mrf.mxu0
  %v2495 = vadd.f32 %v2334, %v2494
  %v2496 = vpop.f32.mrf.mxu0
  %v2497 = vpop.f32.mrf.mxu0
  %v2498 = vadd.f32 %v2337, %v2497
  %v2499 = vpop.f32.mrf.mxu0
  %2500 = vmatprep.mubr.bf16.mxu0 %v2130
  %2501 = vmatmul.mubr.bf16.gmra.mxu0 %v2129
  %v2502 = vpop.f32.mrf.mxu0
  %v2503 = vadd.f32 %v2342, %v2502
  %v2504 = vpop.f32.mrf.mxu0
  %v2505 = vpop.f32.mrf.mxu0
  %v2506 = vadd.f32 %v2345, %v2505
  %v2507 = vpop.f32.mrf.mxu0
  %2508 = vmatprep.mubr.bf16.mxu0 %v2134
  %2509 = vmatmul.mubr.bf16.gmra.mxu0 %v2133
  %v2510 = vpop.f32.mrf.mxu0
  %v2511 = vadd.f32 %v2350, %v2510
  %v2512 = vpop.f32.mrf.mxu0
  %v2513 = vpop.f32.mrf.mxu0
  %v2514 = vadd.f32 %v2353, %v2513
  %v2515 = vpop.f32.mrf.mxu0
  %2516 = vmatprep.mubr.bf16.mxu0 %v2138
  %2517 = vmatmul.mubr.bf16.gmra.mxu0 %v2137
  %v2518 = vpop.f32.mrf.mxu0
  %v2519 = vadd.f32 %v2358, %v2518
  %v2520 = vpop.f32.mrf.mxu0
  %v2521 = vpop.f32.mrf.mxu0
  %v2522 = vadd.f32 %v2361, %v2521
  %v2523 = vpop.f32.mrf.mxu0
  %2524 = vdwg.mxu0
  %v2525 = vpack.c.bf16 %v2402, %v2399
  %v2526 = vpack.c.bf16 %v2410, %v2407
  %v2527 = vpack.c.bf16 %v2418, %v2415
  %v2528 = vpack.c.bf16 %v2426, %v2423
  %v2529 = vpack.c.bf16 %v2434, %v2431
  %v2530 = vpack.c.bf16 %v2442, %v2439
  %v2531 = vpack.c.bf16 %v2450, %v2447
  %v2532 = vpack.c.bf16 %v2458, %v2455
  %v2533 = vpack.c.bf16 %v2466, %v2463
  %v2534 = vpack.c.bf16 %v2474, %v2471
  %v2535 = vpack.c.bf16 %v2482, %v2479
  %v2536 = vpack.c.bf16 %v2490, %v2487
  %v2537 = vpack.c.bf16 %v2498, %v2495
  %v2538 = vpack.c.bf16 %v2506, %v2503
  %v2539 = vpack.c.bf16 %v2514, %v2511
  %v2540 = vpack.c.bf16 %v2522, %v2519
  %v2541 = vld [vmem:[%s4] sm:$0xf]
  %v2542 = vld [vmem:[%s4 + $0x4] sm:$0xf]
  %v2543 = vld [vmem:[%s4 + $0x8] sm:$0xf]
  %v2544 = vld [vmem:[%s4 + $0xc] sm:$0xf]
  %v2545 = vld [vmem:[%s4 + $0x10] sm:$0xf]
  %v2546 = vld [vmem:[%s4 + $0x14] sm:$0xf]
  %v2547 = vld [vmem:[%s4 + $0x18] sm:$0xf]
  %v2548 = vld [vmem:[%s4 + $0x1c] sm:$0xf]
  %v2549 = vld [vmem:[%s4 + $0x20] sm:$0xf]
  %v2550 = vld [vmem:[%s4 + $0x24] sm:$0xf]
  %v2551 = vld [vmem:[%s4 + $0x28] sm:$0xf]
  %v2552 = vld [vmem:[%s4 + $0x2c] sm:$0xf]
  %v2553 = vld [vmem:[%s4 + $0x30] sm:$0xf]
  %v2554 = vld [vmem:[%s4 + $0x34] sm:$0xf]
  %v2555 = vld [vmem:[%s4 + $0x38] sm:$0xf]
  %v2556 = vld [vmem:[%s4 + $0x3c] sm:$0xf]
  %v2557 = vld [vmem:[%s4 + $0x40] sm:$0xf]
  %v2558 = vld [vmem:[%s4 + $0x44] sm:$0xf]
  %v2559 = vld [vmem:[%s4 + $0x48] sm:$0xf]
  %v2560 = vld [vmem:[%s4 + $0x4c] sm:$0xf]
  %v2561 = vld [vmem:[%s4 + $0x50] sm:$0xf]
  %v2562 = vld [vmem:[%s4 + $0x54] sm:$0xf]
  %v2563 = vld [vmem:[%s4 + $0x58] sm:$0xf]
  %v2564 = vld [vmem:[%s4 + $0x5c] sm:$0xf]
  %v2565 = vld [vmem:[%s4 + $0x60] sm:$0xf]
  %v2566 = vld [vmem:[%s4 + $0x64] sm:$0xf]
  %v2567 = vld [vmem:[%s4 + $0x68] sm:$0xf]
  %v2568 = vld [vmem:[%s4 + $0x6c] sm:$0xf]
  %v2569 = vld [vmem:[%s4 + $0x70] sm:$0xf]
  %v2570 = vld [vmem:[%s4 + $0x74] sm:$0xf]
  %v2571 = vld [vmem:[%s4 + $0x78] sm:$0xf]
  %v2572 = vld [vmem:[%s4 + $0x7c] sm:$0xf]
  %2574 = vset.pattern.permute.xlu0 0
  %2575 = vperm.xlu0 %2574, %v2541
  %v2576 = vpop.permute.xlu0 %2575
  %v2579 = vunpack.c.l.s4 839922192
  %v2580 = vunpack.c.0.s8 %v2579
  %v2581 = vlaneseq
  %v2582 = vshrl.u32 %v2581, 7
  %v2583 = vsub.s32 %v2580, %v2582
  %v2584 = vrot.slane %v2576, %v2583
  %2586 = vset.pattern.permute.xlu0 0
  %2587 = vperm.xlu0 %2586, %v2542
  %v2588 = vpop.permute.xlu0 %2587
  %v2591 = vunpack.c.l.s4 839922192
  %v2592 = vunpack.c.0.s8 %v2591
  %v2593 = vlaneseq
  %v2594 = vshrl.u32 %v2593, 7
  %v2595 = vsub.s32 %v2592, %v2594
  %v2596 = vrot.slane %v2588, %v2595
  %2598 = vset.pattern.permute.xlu0 0
  %2599 = vperm.xlu0 %2598, %v2543
  %v2600 = vpop.permute.xlu0 %2599
  %v2603 = vunpack.c.l.s4 839922192
  %v2604 = vunpack.c.0.s8 %v2603
  %v2605 = vlaneseq
  %v2606 = vshrl.u32 %v2605, 7
  %v2607 = vsub.s32 %v2604, %v2606
  %v2608 = vrot.slane %v2600, %v2607
  %2610 = vset.pattern.permute.xlu0 0
  %2611 = vperm.xlu0 %2610, %v2544
  %v2612 = vpop.permute.xlu0 %2611
  %v2615 = vunpack.c.l.s4 839922192
  %v2616 = vunpack.c.0.s8 %v2615
  %v2617 = vlaneseq
  %v2618 = vshrl.u32 %v2617, 7
  %v2619 = vsub.s32 %v2616, %v2618
  %v2620 = vrot.slane %v2612, %v2619
  %2622 = vset.pattern.permute.xlu0 0
  %2623 = vperm.xlu0 %2622, %v2545
  %v2624 = vpop.permute.xlu0 %2623
  %v2627 = vunpack.c.l.s4 839922192
  %v2628 = vunpack.c.0.s8 %v2627
  %v2629 = vlaneseq
  %v2630 = vshrl.u32 %v2629, 7
  %v2631 = vsub.s32 %v2628, %v2630
  %v2632 = vrot.slane %v2624, %v2631
  %2634 = vset.pattern.permute.xlu0 0
  %2635 = vperm.xlu0 %2634, %v2546
  %v2636 = vpop.permute.xlu0 %2635
  %v2639 = vunpack.c.l.s4 839922192
  %v2640 = vunpack.c.0.s8 %v2639
  %v2641 = vlaneseq
  %v2642 = vshrl.u32 %v2641, 7
  %v2643 = vsub.s32 %v2640, %v2642
  %v2644 = vrot.slane %v2636, %v2643
  %2646 = vset.pattern.permute.xlu0 0
  %2647 = vperm.xlu0 %2646, %v2547
  %v2648 = vpop.permute.xlu0 %2647
  %v2651 = vunpack.c.l.s4 839922192
  %v2652 = vunpack.c.0.s8 %v2651
  %v2653 = vlaneseq
  %v2654 = vshrl.u32 %v2653, 7
  %v2655 = vsub.s32 %v2652, %v2654
  %v2656 = vrot.slane %v2648, %v2655
  %2658 = vset.pattern.permute.xlu0 0
  %2659 = vperm.xlu0 %2658, %v2548
  %v2660 = vpop.permute.xlu0 %2659
  %v2663 = vunpack.c.l.s4 839922192
  %v2664 = vunpack.c.0.s8 %v2663
  %v2665 = vlaneseq
  %v2666 = vshrl.u32 %v2665, 7
  %v2667 = vsub.s32 %v2664, %v2666
  %v2668 = vrot.slane %v2660, %v2667
  %2670 = vset.pattern.permute.xlu0 0
  %2671 = vperm.xlu0 %2670, %v2549
  %v2672 = vpop.permute.xlu0 %2671
  %v2675 = vunpack.c.l.s4 839922192
  %v2676 = vunpack.c.0.s8 %v2675
  %v2677 = vlaneseq
  %v2678 = vshrl.u32 %v2677, 7
  %v2679 = vsub.s32 %v2676, %v2678
  %v2680 = vrot.slane %v2672, %v2679
  %2682 = vset.pattern.permute.xlu0 0
  %2683 = vperm.xlu0 %2682, %v2550
  %v2684 = vpop.permute.xlu0 %2683
  %v2687 = vunpack.c.l.s4 839922192
  %v2688 = vunpack.c.0.s8 %v2687
  %v2689 = vlaneseq
  %v2690 = vshrl.u32 %v2689, 7
  %v2691 = vsub.s32 %v2688, %v2690
  %v2692 = vrot.slane %v2684, %v2691
  %2694 = vset.pattern.permute.xlu0 0
  %2695 = vperm.xlu0 %2694, %v2551
  %v2696 = vpop.permute.xlu0 %2695
  %v2699 = vunpack.c.l.s4 839922192
  %v2700 = vunpack.c.0.s8 %v2699
  %v2701 = vlaneseq
  %v2702 = vshrl.u32 %v2701, 7
  %v2703 = vsub.s32 %v2700, %v2702
  %v2704 = vrot.slane %v2696, %v2703
  %2706 = vset.pattern.permute.xlu0 0
  %2707 = vperm.xlu0 %2706, %v2552
  %v2708 = vpop.permute.xlu0 %2707
  %v2711 = vunpack.c.l.s4 839922192
  %v2712 = vunpack.c.0.s8 %v2711
  %v2713 = vlaneseq
  %v2714 = vshrl.u32 %v2713, 7
  %v2715 = vsub.s32 %v2712, %v2714
  %v2716 = vrot.slane %v2708, %v2715
  %2718 = vset.pattern.permute.xlu0 0
  %2719 = vperm.xlu0 %2718, %v2553
  %v2720 = vpop.permute.xlu0 %2719
  %v2723 = vunpack.c.l.s4 839922192
  %v2724 = vunpack.c.0.s8 %v2723
  %v2725 = vlaneseq
  %v2726 = vshrl.u32 %v2725, 7
  %v2727 = vsub.s32 %v2724, %v2726
  %v2728 = vrot.slane %v2720, %v2727
  %2730 = vset.pattern.permute.xlu0 0
  %2731 = vperm.xlu0 %2730, %v2554
  %v2732 = vpop.permute.xlu0 %2731
  %v2735 = vunpack.c.l.s4 839922192
  %v2736 = vunpack.c.0.s8 %v2735
  %v2737 = vlaneseq
  %v2738 = vshrl.u32 %v2737, 7
  %v2739 = vsub.s32 %v2736, %v2738
  %v2740 = vrot.slane %v2732, %v2739
  %2742 = vset.pattern.permute.xlu0 0
  %2743 = vperm.xlu0 %2742, %v2555
  %v2744 = vpop.permute.xlu0 %2743
  %v2747 = vunpack.c.l.s4 839922192
  %v2748 = vunpack.c.0.s8 %v2747
  %v2749 = vlaneseq
  %v2750 = vshrl.u32 %v2749, 7
  %v2751 = vsub.s32 %v2748, %v2750
  %v2752 = vrot.slane %v2744, %v2751
  %2754 = vset.pattern.permute.xlu0 0
  %2755 = vperm.xlu0 %2754, %v2556
  %v2756 = vpop.permute.xlu0 %2755
  %v2759 = vunpack.c.l.s4 839922192
  %v2760 = vunpack.c.0.s8 %v2759
  %v2761 = vlaneseq
  %v2762 = vshrl.u32 %v2761, 7
  %v2763 = vsub.s32 %v2760, %v2762
  %v2764 = vrot.slane %v2756, %v2763
  %2766 = vset.pattern.permute.xlu0 0
  %2767 = vperm.xlu0 %2766, %v2557
  %v2768 = vpop.permute.xlu0 %2767
  %v2771 = vunpack.c.l.s4 839922192
  %v2772 = vunpack.c.0.s8 %v2771
  %v2773 = vlaneseq
  %v2774 = vshrl.u32 %v2773, 7
  %v2775 = vsub.s32 %v2772, %v2774
  %v2776 = vrot.slane %v2768, %v2775
  %2778 = vset.pattern.permute.xlu0 0
  %2779 = vperm.xlu0 %2778, %v2558
  %v2780 = vpop.permute.xlu0 %2779
  %v2783 = vunpack.c.l.s4 839922192
  %v2784 = vunpack.c.0.s8 %v2783
  %v2785 = vlaneseq
  %v2786 = vshrl.u32 %v2785, 7
  %v2787 = vsub.s32 %v2784, %v2786
  %v2788 = vrot.slane %v2780, %v2787
  %2790 = vset.pattern.permute.xlu0 0
  %2791 = vperm.xlu0 %2790, %v2559
  %v2792 = vpop.permute.xlu0 %2791
  %v2795 = vunpack.c.l.s4 839922192
  %v2796 = vunpack.c.0.s8 %v2795
  %v2797 = vlaneseq
  %v2798 = vshrl.u32 %v2797, 7
  %v2799 = vsub.s32 %v2796, %v2798
  %v2800 = vrot.slane %v2792, %v2799
  %2802 = vset.pattern.permute.xlu0 0
  %2803 = vperm.xlu0 %2802, %v2560
  %v2804 = vpop.permute.xlu0 %2803
  %v2807 = vunpack.c.l.s4 839922192
  %v2808 = vunpack.c.0.s8 %v2807
  %v2809 = vlaneseq
  %v2810 = vshrl.u32 %v2809, 7
  %v2811 = vsub.s32 %v2808, %v2810
  %v2812 = vrot.slane %v2804, %v2811
  %2814 = vset.pattern.permute.xlu0 0
  %2815 = vperm.xlu0 %2814, %v2561
  %v2816 = vpop.permute.xlu0 %2815
  %v2819 = vunpack.c.l.s4 839922192
  %v2820 = vunpack.c.0.s8 %v2819
  %v2821 = vlaneseq
  %v2822 = vshrl.u32 %v2821, 7
  %v2823 = vsub.s32 %v2820, %v2822
  %v2824 = vrot.slane %v2816, %v2823
  %2826 = vset.pattern.permute.xlu0 0
  %2827 = vperm.xlu0 %2826, %v2562
  %v2828 = vpop.permute.xlu0 %2827
  %v2831 = vunpack.c.l.s4 839922192
  %v2832 = vunpack.c.0.s8 %v2831
  %v2833 = vlaneseq
  %v2834 = vshrl.u32 %v2833, 7
  %v2835 = vsub.s32 %v2832, %v2834
  %v2836 = vrot.slane %v2828, %v2835
  %2838 = vset.pattern.permute.xlu0 0
  %2839 = vperm.xlu0 %2838, %v2563
  %v2840 = vpop.permute.xlu0 %2839
  %v2843 = vunpack.c.l.s4 839922192
  %v2844 = vunpack.c.0.s8 %v2843
  %v2845 = vlaneseq
  %v2846 = vshrl.u32 %v2845, 7
  %v2847 = vsub.s32 %v2844, %v2846
  %v2848 = vrot.slane %v2840, %v2847
  %2850 = vset.pattern.permute.xlu0 0
  %2851 = vperm.xlu0 %2850, %v2564
  %v2852 = vpop.permute.xlu0 %2851
  %v2855 = vunpack.c.l.s4 839922192
  %v2856 = vunpack.c.0.s8 %v2855
  %v2857 = vlaneseq
  %v2858 = vshrl.u32 %v2857, 7
  %v2859 = vsub.s32 %v2856, %v2858
  %v2860 = vrot.slane %v2852, %v2859
  %2862 = vset.pattern.permute.xlu0 0
  %2863 = vperm.xlu0 %2862, %v2565
  %v2864 = vpop.permute.xlu0 %2863
  %v2867 = vunpack.c.l.s4 839922192
  %v2868 = vunpack.c.0.s8 %v2867
  %v2869 = vlaneseq
  %v2870 = vshrl.u32 %v2869, 7
  %v2871 = vsub.s32 %v2868, %v2870
  %v2872 = vrot.slane %v2864, %v2871
  %2874 = vset.pattern.permute.xlu0 0
  %2875 = vperm.xlu0 %2874, %v2566
  %v2876 = vpop.permute.xlu0 %2875
  %v2879 = vunpack.c.l.s4 839922192
  %v2880 = vunpack.c.0.s8 %v2879
  %v2881 = vlaneseq
  %v2882 = vshrl.u32 %v2881, 7
  %v2883 = vsub.s32 %v2880, %v2882
  %v2884 = vrot.slane %v2876, %v2883
  %2886 = vset.pattern.permute.xlu0 0
  %2887 = vperm.xlu0 %2886, %v2567
  %v2888 = vpop.permute.xlu0 %2887
  %v2891 = vunpack.c.l.s4 839922192
  %v2892 = vunpack.c.0.s8 %v2891
  %v2893 = vlaneseq
  %v2894 = vshrl.u32 %v2893, 7
  %v2895 = vsub.s32 %v2892, %v2894
  %v2896 = vrot.slane %v2888, %v2895
  %2898 = vset.pattern.permute.xlu0 0
  %2899 = vperm.xlu0 %2898, %v2568
  %v2900 = vpop.permute.xlu0 %2899
  %v2903 = vunpack.c.l.s4 839922192
  %v2904 = vunpack.c.0.s8 %v2903
  %v2905 = vlaneseq
  %v2906 = vshrl.u32 %v2905, 7
  %v2907 = vsub.s32 %v2904, %v2906
  %v2908 = vrot.slane %v2900, %v2907
  %2910 = vset.pattern.permute.xlu0 0
  %2911 = vperm.xlu0 %2910, %v2569
  %v2912 = vpop.permute.xlu0 %2911
  %v2915 = vunpack.c.l.s4 839922192
  %v2916 = vunpack.c.0.s8 %v2915
  %v2917 = vlaneseq
  %v2918 = vshrl.u32 %v2917, 7
  %v2919 = vsub.s32 %v2916, %v2918
  %v2920 = vrot.slane %v2912, %v2919
  %2922 = vset.pattern.permute.xlu0 0
  %2923 = vperm.xlu0 %2922, %v2570
  %v2924 = vpop.permute.xlu0 %2923
  %v2927 = vunpack.c.l.s4 839922192
  %v2928 = vunpack.c.0.s8 %v2927
  %v2929 = vlaneseq
  %v2930 = vshrl.u32 %v2929, 7
  %v2931 = vsub.s32 %v2928, %v2930
  %v2932 = vrot.slane %v2924, %v2931
  %2934 = vset.pattern.permute.xlu0 0
  %2935 = vperm.xlu0 %2934, %v2571
  %v2936 = vpop.permute.xlu0 %2935
  %v2939 = vunpack.c.l.s4 839922192
  %v2940 = vunpack.c.0.s8 %v2939
  %v2941 = vlaneseq
  %v2942 = vshrl.u32 %v2941, 7
  %v2943 = vsub.s32 %v2940, %v2942
  %v2944 = vrot.slane %v2936, %v2943
  %2946 = vset.pattern.permute.xlu0 0
  %2947 = vperm.xlu0 %2946, %v2572
  %v2948 = vpop.permute.xlu0 %2947
  %v2951 = vunpack.c.l.s4 839922192
  %v2952 = vunpack.c.0.s8 %v2951
  %v2953 = vlaneseq
  %v2954 = vshrl.u32 %v2953, 7
  %v2955 = vsub.s32 %v2952, %v2954
  %v2956 = vrot.slane %v2948, %v2955
  %v2989 = vunpack.c.l.b16 %v2584
  %v2990 = vunpack.c.l.b16 %v2596
  %v2991 = vunpack.c.l.b16 %v2608
  %v2992 = vunpack.c.l.b16 %v2620
  %v2993 = vunpack.c.l.b16 %v2632
  %v2994 = vunpack.c.l.b16 %v2644
  %v2995 = vunpack.c.l.b16 %v2656
  %v2996 = vunpack.c.l.b16 %v2668
  %v2997 = vunpack.c.l.b16 %v2680
  %v2998 = vunpack.c.l.b16 %v2692
  %v2999 = vunpack.c.l.b16 %v2704
  %v3000 = vunpack.c.l.b16 %v2716
  %v3001 = vunpack.c.l.b16 %v2728
  %v3002 = vunpack.c.l.b16 %v2740
  %v3003 = vunpack.c.l.b16 %v2752
  %v3004 = vunpack.c.l.b16 %v2764
  %v3005 = vunpack.c.l.b16 %v2776
  %v3006 = vunpack.c.l.b16 %v2788
  %v3007 = vunpack.c.l.b16 %v2800
  %v3008 = vunpack.c.l.b16 %v2812
  %v3009 = vunpack.c.l.b16 %v2824
  %v3010 = vunpack.c.l.b16 %v2836
  %v3011 = vunpack.c.l.b16 %v2848
  %v3012 = vunpack.c.l.b16 %v2860
  %v3013 = vunpack.c.l.b16 %v2872
  %v3014 = vunpack.c.l.b16 %v2884
  %v3015 = vunpack.c.l.b16 %v2896
  %v3016 = vunpack.c.l.b16 %v2908
  %v3017 = vunpack.c.l.b16 %v2920
  %v3018 = vunpack.c.l.b16 %v2932
  %v3019 = vunpack.c.l.b16 %v2944
  %v3020 = vunpack.c.l.b16 %v2956
  %v3021 = vpack.c.b16 %v2990, %v2989
  %v3022 = vpack.c.b16 %v2992, %v2991
  %v3023 = vpack.c.b16 %v2994, %v2993
  %v3024 = vpack.c.b16 %v2996, %v2995
  %v3025 = vpack.c.b16 %v2998, %v2997
  %v3026 = vpack.c.b16 %v3000, %v2999
  %v3027 = vpack.c.b16 %v3002, %v3001
  %v3028 = vpack.c.b16 %v3004, %v3003
  %v3029 = vpack.c.b16 %v3006, %v3005
  %v3030 = vpack.c.b16 %v3008, %v3007
  %v3031 = vpack.c.b16 %v3010, %v3009
  %v3032 = vpack.c.b16 %v3012, %v3011
  %v3033 = vpack.c.b16 %v3014, %v3013
  %v3034 = vpack.c.b16 %v3016, %v3015
  %v3035 = vpack.c.b16 %v3018, %v3017
  %v3036 = vpack.c.b16 %v3020, %v3019
  %v3053 = vadd.bf16 %v2525, %v3021
  %v3054 = vadd.bf16 %v2526, %v3022
  %v3055 = vadd.bf16 %v2527, %v3023
  %v3056 = vadd.bf16 %v2528, %v3024
  %v3057 = vadd.bf16 %v2529, %v3025
  %v3058 = vadd.bf16 %v2530, %v3026
  %v3059 = vadd.bf16 %v2531, %v3027
  %v3060 = vadd.bf16 %v2532, %v3028
  %v3061 = vadd.bf16 %v2533, %v3029
  %v3062 = vadd.bf16 %v2534, %v3030
  %v3063 = vadd.bf16 %v2535, %v3031
  %v3064 = vadd.bf16 %v2536, %v3032
  %v3065 = vadd.bf16 %v2537, %v3033
  %v3066 = vadd.bf16 %v2538, %v3034
  %v3067 = vadd.bf16 %v2539, %v3035
  %v3068 = vadd.bf16 %v2540, %v3036
  %v3069 = vmax.bf16 %v3053, 0
  %v3070 = vmax.bf16 %v3054, 0
  %v3071 = vmax.bf16 %v3055, 0
  %v3072 = vmax.bf16 %v3056, 0
  %v3073 = vmax.bf16 %v3057, 0
  %v3074 = vmax.bf16 %v3058, 0
  %v3075 = vmax.bf16 %v3059, 0
  %v3076 = vmax.bf16 %v3060, 0
  %v3077 = vmax.bf16 %v3061, 0
  %v3078 = vmax.bf16 %v3062, 0
  %v3079 = vmax.bf16 %v3063, 0
  %v3080 = vmax.bf16 %v3064, 0
  %v3081 = vmax.bf16 %v3065, 0
  %v3082 = vmax.bf16 %v3066, 0
  %v3083 = vmax.bf16 %v3067, 0
  %v3084 = vmax.bf16 %v3068, 0
  %v3085 = vld [vmem:[%s5] sm:$0xff]
  %v3086 = vld [vmem:[%s5 + $0x8] sm:$0xff]
  %v3087 = vld [vmem:[%s5 + $0x10] sm:$0xff]
  %v3088 = vld [vmem:[%s5 + $0x18] sm:$0xff]
  %v3089 = vld [vmem:[%s5 + $0x20] sm:$0xff]
  %v3090 = vld [vmem:[%s5 + $0x28] sm:$0xff]
  %v3091 = vld [vmem:[%s5 + $0x30] sm:$0xff]
  %v3092 = vld [vmem:[%s5 + $0x38] sm:$0xff]
  %v3093 = vld [vmem:[%s5 + $0x40] sm:$0xff]
  %v3094 = vld [vmem:[%s5 + $0x48] sm:$0xff]
  %v3095 = vld [vmem:[%s5 + $0x50] sm:$0xff]
  %v3096 = vld [vmem:[%s5 + $0x58] sm:$0xff]
  %v3097 = vld [vmem:[%s5 + $0x60] sm:$0xff]
  %v3098 = vld [vmem:[%s5 + $0x68] sm:$0xff]
  %v3099 = vld [vmem:[%s5 + $0x70] sm:$0xff]
  %v3100 = vld [vmem:[%s5 + $0x78] sm:$0xff]
  %v3117 = vunpack.c.l.b16 %v3085
  %v3118 = vunpack.c.h.b16 %v3085
  %v3119 = vunpack.c.l.b16 %v3086
  %v3120 = vunpack.c.h.b16 %v3086
  %v3121 = vunpack.c.l.b16 %v3087
  %v3122 = vunpack.c.h.b16 %v3087
  %v3123 = vunpack.c.l.b16 %v3088
  %v3124 = vunpack.c.h.b16 %v3088
  %v3125 = vunpack.c.l.b16 %v3089
  %v3126 = vunpack.c.h.b16 %v3089
  %v3127 = vunpack.c.l.b16 %v3090
  %v3128 = vunpack.c.h.b16 %v3090
  %v3129 = vunpack.c.l.b16 %v3091
  %v3130 = vunpack.c.h.b16 %v3091
  %v3131 = vunpack.c.l.b16 %v3092
  %v3132 = vunpack.c.h.b16 %v3092
  %v3133 = vunpack.c.l.b16 %v3093
  %v3134 = vunpack.c.h.b16 %v3093
  %v3135 = vunpack.c.l.b16 %v3094
  %v3136 = vunpack.c.h.b16 %v3094
  %v3137 = vunpack.c.l.b16 %v3095
  %v3138 = vunpack.c.h.b16 %v3095
  %v3139 = vunpack.c.l.b16 %v3096
  %v3140 = vunpack.c.h.b16 %v3096
  %v3141 = vunpack.c.l.b16 %v3097
  %v3142 = vunpack.c.h.b16 %v3097
  %v3143 = vunpack.c.l.b16 %v3098
  %v3144 = vunpack.c.h.b16 %v3098
  %v3145 = vunpack.c.l.b16 %v3099
  %v3146 = vunpack.c.h.b16 %v3099
  %v3147 = vunpack.c.l.b16 %v3100
  %v3148 = vunpack.c.h.b16 %v3100
  %v3149 = vpack.c.b16 %v3119, %v3117
  %v3150 = vpack.c.b16 %v3120, %v3118
  %v3151 = vpack.c.b16 %v3123, %v3121
  %v3152 = vpack.c.b16 %v3124, %v3122
  %v3153 = vpack.c.b16 %v3127, %v3125
  %v3154 = vpack.c.b16 %v3128, %v3126
  %v3155 = vpack.c.b16 %v3131, %v3129
  %v3156 = vpack.c.b16 %v3132, %v3130
  %v3157 = vpack.c.b16 %v3135, %v3133
  %v3158 = vpack.c.b16 %v3136, %v3134
  %v3159 = vpack.c.b16 %v3139, %v3137
  %v3160 = vpack.c.b16 %v3140, %v3138
  %v3161 = vpack.c.b16 %v3143, %v3141
  %v3162 = vpack.c.b16 %v3144, %v3142
  %v3163 = vpack.c.b16 %v3147, %v3145
  %v3164 = vpack.c.b16 %v3148, %v3146
  %3181 = vmatprep.subr.bf16.mxu0 0
  %3182 = vmatpush1.bf16.msra.mxu0 %v3076
  %3183 = vmatprep.subr.bf16.mxu0 0
  %3184 = vmatpush1.bf16.msra.mxu0 %v3075
  %3185 = vmatprep.subr.bf16.mxu0 0
  %3186 = vmatpush1.bf16.msra.mxu0 %v3074
  %3187 = vmatprep.subr.bf16.mxu0 0
  %3188 = vmatpush1.bf16.msra.mxu0 %v3073
  %3189 = vmatprep.subr.bf16.mxu0 0
  %3190 = vmatpush1.bf16.msra.mxu0 %v3072
  %3191 = vmatprep.subr.bf16.mxu0 0
  %3192 = vmatpush1.bf16.msra.mxu0 %v3071
  %3193 = vmatprep.subr.bf16.mxu0 0
  %3194 = vmatpush1.bf16.msra.mxu0 %v3070
  %3195 = vmatprep.subr.bf16.mxu0 0
  %3196 = vmatpush1.bf16.msra.mxu0 %v3069
  %3197 = vmatprep.subr.bf16.mxu0 0
  %3198 = vmatpush2.bf16.msra.mxu0 %v3084
  %3199 = vmatprep.subr.bf16.mxu0 0
  %3200 = vmatpush2.bf16.msra.mxu0 %v3083
  %3201 = vmatprep.subr.bf16.mxu0 0
  %3202 = vmatpush2.bf16.msra.mxu0 %v3082
  %3203 = vmatprep.subr.bf16.mxu0 0
  %3204 = vmatpush2.bf16.msra.mxu0 %v3081
  %3205 = vmatprep.subr.bf16.mxu0 0
  %3206 = vmatpush2.bf16.msra.mxu0 %v3080
  %3207 = vmatprep.subr.bf16.mxu0 0
  %3208 = vmatpush2.bf16.msra.mxu0 %v3079
  %3209 = vmatprep.subr.bf16.mxu0 0
  %3210 = vmatpush2.bf16.msra.mxu0 %v3078
  %3211 = vmatprep.subr.bf16.mxu0 0
  %3212 = vmatpush2.bf16.msra.mxu0 %v3077
  %3213 = vmatprep.mubr.bf16.mxu0 %v3150
  %3214 = vmatmul.mubr.bf16.gmra.mxu0 %v3149
  %v3215 = vpop.f32.mrf.mxu0
  %v3216 = vadd.f32 0.0, %v3215
  %v3217 = vpop.f32.mrf.mxu0
  %v3218 = vpop.f32.mrf.mxu0
  %v3219 = vadd.f32 0.0, %v3218
  %v3220 = vpop.f32.mrf.mxu0
  %3221 = vmatprep.mubr.bf16.mxu0 %v3152
  %3222 = vmatmul.mubr.bf16.gmra.mxu0 %v3151
  %v3223 = vpop.f32.mrf.mxu0
  %v3224 = vadd.f32 0.0, %v3223
  %v3225 = vpop.f32.mrf.mxu0
  %v3226 = vpop.f32.mrf.mxu0
  %v3227 = vadd.f32 0.0, %v3226
  %v3228 = vpop.f32.mrf.mxu0
  %3229 = vmatprep.mubr.bf16.mxu0 %v3154
  %3230 = vmatmul.mubr.bf16.gmra.mxu0 %v3153
  %v3231 = vpop.f32.mrf.mxu0
  %v3232 = vadd.f32 0.0, %v3231
  %v3233 = vpop.f32.mrf.mxu0
  %v3234 = vpop.f32.mrf.mxu0
  %v3235 = vadd.f32 0.0, %v3234
  %v3236 = vpop.f32.mrf.mxu0
  %3237 = vmatprep.mubr.bf16.mxu0 %v3156
  %3238 = vmatmul.mubr.bf16.gmra.mxu0 %v3155
  %v3239 = vpop.f32.mrf.mxu0
  %v3240 = vadd.f32 0.0, %v3239
  %v3241 = vpop.f32.mrf.mxu0
  %v3242 = vpop.f32.mrf.mxu0
  %v3243 = vadd.f32 0.0, %v3242
  %v3244 = vpop.f32.mrf.mxu0
  %3245 = vmatprep.mubr.bf16.mxu0 %v3158
  %3246 = vmatmul.mubr.bf16.gmra.mxu0 %v3157
  %v3247 = vpop.f32.mrf.mxu0
  %v3248 = vadd.f32 0.0, %v3247
  %v3249 = vpop.f32.mrf.mxu0
  %v3250 = vpop.f32.mrf.mxu0
  %v3251 = vadd.f32 0.0, %v3250
  %v3252 = vpop.f32.mrf.mxu0
  %3253 = vmatprep.mubr.bf16.mxu0 %v3160
  %3254 = vmatmul.mubr.bf16.gmra.mxu0 %v3159
  %v3255 = vpop.f32.mrf.mxu0
  %v3256 = vadd.f32 0.0, %v3255
  %v3257 = vpop.f32.mrf.mxu0
  %v3258 = vpop.f32.mrf.mxu0
  %v3259 = vadd.f32 0.0, %v3258
  %v3260 = vpop.f32.mrf.mxu0
  %3261 = vmatprep.mubr.bf16.mxu0 %v3162
  %3262 = vmatmul.mubr.bf16.gmra.mxu0 %v3161
  %v3263 = vpop.f32.mrf.mxu0
  %v3264 = vadd.f32 0.0, %v3263
  %v3265 = vpop.f32.mrf.mxu0
  %v3266 = vpop.f32.mrf.mxu0
  %v3267 = vadd.f32 0.0, %v3266
  %v3268 = vpop.f32.mrf.mxu0
  %3269 = vmatprep.mubr.bf16.mxu0 %v3164
  %3270 = vmatmul.mubr.bf16.gmra.mxu0 %v3163
  %v3271 = vpop.f32.mrf.mxu0
  %v3272 = vadd.f32 0.0, %v3271
  %v3273 = vpop.f32.mrf.mxu0
  %v3274 = vpop.f32.mrf.mxu0
  %v3275 = vadd.f32 0.0, %v3274
  %v3276 = vpop.f32.mrf.mxu0
  %3277 = vdwg.mxu0
  %v3278 = vpack.c.bf16 %v3219, %v3216
  %v3279 = vpack.c.bf16 %v3227, %v3224
  %v3280 = vpack.c.bf16 %v3235, %v3232
  %v3281 = vpack.c.bf16 %v3243, %v3240
  %v3282 = vpack.c.bf16 %v3251, %v3248
  %v3283 = vpack.c.bf16 %v3259, %v3256
  %v3284 = vpack.c.bf16 %v3267, %v3264
  %v3285 = vpack.c.bf16 %v3275, %v3272
  %v3286 = vld [vmem:[%s6] sm:$0xf]
  %v3287 = vld [vmem:[%s6 + $0x4] sm:$0xf]
  %v3288 = vld [vmem:[%s6 + $0x8] sm:$0xf]
  %v3289 = vld [vmem:[%s6 + $0xc] sm:$0xf]
  %v3290 = vld [vmem:[%s6 + $0x10] sm:$0xf]
  %v3291 = vld [vmem:[%s6 + $0x14] sm:$0xf]
  %v3292 = vld [vmem:[%s6 + $0x18] sm:$0xf]
  %v3293 = vld [vmem:[%s6 + $0x1c] sm:$0xf]
  %v3294 = vld [vmem:[%s6 + $0x20] sm:$0xf]
  %v3295 = vld [vmem:[%s6 + $0x24] sm:$0xf]
  %v3296 = vld [vmem:[%s6 + $0x28] sm:$0xf]
  %v3297 = vld [vmem:[%s6 + $0x2c] sm:$0xf]
  %v3298 = vld [vmem:[%s6 + $0x30] sm:$0xf]
  %v3299 = vld [vmem:[%s6 + $0x34] sm:$0xf]
  %v3300 = vld [vmem:[%s6 + $0x38] sm:$0xf]
  %v3301 = vld [vmem:[%s6 + $0x3c] sm:$0xf]
  %3303 = vset.pattern.permute.xlu0 0
  %3304 = vperm.xlu0 %3303, %v3286
  %v3305 = vpop.permute.xlu0 %3304
  %v3308 = vunpack.c.l.s4 839922192
  %v3309 = vunpack.c.0.s8 %v3308
  %v3310 = vlaneseq
  %v3311 = vshrl.u32 %v3310, 7
  %v3312 = vsub.s32 %v3309, %v3311
  %v3313 = vrot.slane %v3305, %v3312
  %3315 = vset.pattern.permute.xlu0 0
  %3316 = vperm.xlu0 %3315, %v3287
  %v3317 = vpop.permute.xlu0 %3316
  %v3320 = vunpack.c.l.s4 839922192
  %v3321 = vunpack.c.0.s8 %v3320
  %v3322 = vlaneseq
  %v3323 = vshrl.u32 %v3322, 7
  %v3324 = vsub.s32 %v3321, %v3323
  %v3325 = vrot.slane %v3317, %v3324
  %3327 = vset.pattern.permute.xlu0 0
  %3328 = vperm.xlu0 %3327, %v3288
  %v3329 = vpop.permute.xlu0 %3328
  %v3332 = vunpack.c.l.s4 839922192
  %v3333 = vunpack.c.0.s8 %v3332
  %v3334 = vlaneseq
  %v3335 = vshrl.u32 %v3334, 7
  %v3336 = vsub.s32 %v3333, %v3335
  %v3337 = vrot.slane %v3329, %v3336
  %3339 = vset.pattern.permute.xlu0 0
  %3340 = vperm.xlu0 %3339, %v3289
  %v3341 = vpop.permute.xlu0 %3340
  %v3344 = vunpack.c.l.s4 839922192
  %v3345 = vunpack.c.0.s8 %v3344
  %v3346 = vlaneseq
  %v3347 = vshrl.u32 %v3346, 7
  %v3348 = vsub.s32 %v3345, %v3347
  %v3349 = vrot.slane %v3341, %v3348
  %3351 = vset.pattern.permute.xlu0 0
  %3352 = vperm.xlu0 %3351, %v3290
  %v3353 = vpop.permute.xlu0 %3352
  %v3356 = vunpack.c.l.s4 839922192
  %v3357 = vunpack.c.0.s8 %v3356
  %v3358 = vlaneseq
  %v3359 = vshrl.u32 %v3358, 7
  %v3360 = vsub.s32 %v3357, %v3359
  %v3361 = vrot.slane %v3353, %v3360
  %3363 = vset.pattern.permute.xlu0 0
  %3364 = vperm.xlu0 %3363, %v3291
  %v3365 = vpop.permute.xlu0 %3364
  %v3368 = vunpack.c.l.s4 839922192
  %v3369 = vunpack.c.0.s8 %v3368
  %v3370 = vlaneseq
  %v3371 = vshrl.u32 %v3370, 7
  %v3372 = vsub.s32 %v3369, %v3371
  %v3373 = vrot.slane %v3365, %v3372
  %3375 = vset.pattern.permute.xlu0 0
  %3376 = vperm.xlu0 %3375, %v3292
  %v3377 = vpop.permute.xlu0 %3376
  %v3380 = vunpack.c.l.s4 839922192
  %v3381 = vunpack.c.0.s8 %v3380
  %v3382 = vlaneseq
  %v3383 = vshrl.u32 %v3382, 7
  %v3384 = vsub.s32 %v3381, %v3383
  %v3385 = vrot.slane %v3377, %v3384
  %3387 = vset.pattern.permute.xlu0 0
  %3388 = vperm.xlu0 %3387, %v3293
  %v3389 = vpop.permute.xlu0 %3388
  %v3392 = vunpack.c.l.s4 839922192
  %v3393 = vunpack.c.0.s8 %v3392
  %v3394 = vlaneseq
  %v3395 = vshrl.u32 %v3394, 7
  %v3396 = vsub.s32 %v3393, %v3395
  %v3397 = vrot.slane %v3389, %v3396
  %3399 = vset.pattern.permute.xlu0 0
  %3400 = vperm.xlu0 %3399, %v3294
  %v3401 = vpop.permute.xlu0 %3400
  %v3404 = vunpack.c.l.s4 839922192
  %v3405 = vunpack.c.0.s8 %v3404
  %v3406 = vlaneseq
  %v3407 = vshrl.u32 %v3406, 7
  %v3408 = vsub.s32 %v3405, %v3407
  %v3409 = vrot.slane %v3401, %v3408
  %3411 = vset.pattern.permute.xlu0 0
  %3412 = vperm.xlu0 %3411, %v3295
  %v3413 = vpop.permute.xlu0 %3412
  %v3416 = vunpack.c.l.s4 839922192
  %v3417 = vunpack.c.0.s8 %v3416
  %v3418 = vlaneseq
  %v3419 = vshrl.u32 %v3418, 7
  %v3420 = vsub.s32 %v3417, %v3419
  %v3421 = vrot.slane %v3413, %v3420
  %3423 = vset.pattern.permute.xlu0 0
  %3424 = vperm.xlu0 %3423, %v3296
  %v3425 = vpop.permute.xlu0 %3424
  %v3428 = vunpack.c.l.s4 839922192
  %v3429 = vunpack.c.0.s8 %v3428
  %v3430 = vlaneseq
  %v3431 = vshrl.u32 %v3430, 7
  %v3432 = vsub.s32 %v3429, %v3431
  %v3433 = vrot.slane %v3425, %v3432
  %3435 = vset.pattern.permute.xlu0 0
  %3436 = vperm.xlu0 %3435, %v3297
  %v3437 = vpop.permute.xlu0 %3436
  %v3440 = vunpack.c.l.s4 839922192
  %v3441 = vunpack.c.0.s8 %v3440
  %v3442 = vlaneseq
  %v3443 = vshrl.u32 %v3442, 7
  %v3444 = vsub.s32 %v3441, %v3443
  %v3445 = vrot.slane %v3437, %v3444
  %3447 = vset.pattern.permute.xlu0 0
  %3448 = vperm.xlu0 %3447, %v3298
  %v3449 = vpop.permute.xlu0 %3448
  %v3452 = vunpack.c.l.s4 839922192
  %v3453 = vunpack.c.0.s8 %v3452
  %v3454 = vlaneseq
  %v3455 = vshrl.u32 %v3454, 7
  %v3456 = vsub.s32 %v3453, %v3455
  %v3457 = vrot.slane %v3449, %v3456
  %3459 = vset.pattern.permute.xlu0 0
  %3460 = vperm.xlu0 %3459, %v3299
  %v3461 = vpop.permute.xlu0 %3460
  %v3464 = vunpack.c.l.s4 839922192
  %v3465 = vunpack.c.0.s8 %v3464
  %v3466 = vlaneseq
  %v3467 = vshrl.u32 %v3466, 7
  %v3468 = vsub.s32 %v3465, %v3467
  %v3469 = vrot.slane %v3461, %v3468
  %3471 = vset.pattern.permute.xlu0 0
  %3472 = vperm.xlu0 %3471, %v3300
  %v3473 = vpop.permute.xlu0 %3472
  %v3476 = vunpack.c.l.s4 839922192
  %v3477 = vunpack.c.0.s8 %v3476
  %v3478 = vlaneseq
  %v3479 = vshrl.u32 %v3478, 7
  %v3480 = vsub.s32 %v3477, %v3479
  %v3481 = vrot.slane %v3473, %v3480
  %3483 = vset.pattern.permute.xlu0 0
  %3484 = vperm.xlu0 %3483, %v3301
  %v3485 = vpop.permute.xlu0 %3484
  %v3488 = vunpack.c.l.s4 839922192
  %v3489 = vunpack.c.0.s8 %v3488
  %v3490 = vlaneseq
  %v3491 = vshrl.u32 %v3490, 7
  %v3492 = vsub.s32 %v3489, %v3491
  %v3493 = vrot.slane %v3485, %v3492
  %v3510 = vunpack.c.l.b16 %v3313
  %v3511 = vunpack.c.l.b16 %v3325
  %v3512 = vunpack.c.l.b16 %v3337
  %v3513 = vunpack.c.l.b16 %v3349
  %v3514 = vunpack.c.l.b16 %v3361
  %v3515 = vunpack.c.l.b16 %v3373
  %v3516 = vunpack.c.l.b16 %v3385
  %v3517 = vunpack.c.l.b16 %v3397
  %v3518 = vunpack.c.l.b16 %v3409
  %v3519 = vunpack.c.l.b16 %v3421
  %v3520 = vunpack.c.l.b16 %v3433
  %v3521 = vunpack.c.l.b16 %v3445
  %v3522 = vunpack.c.l.b16 %v3457
  %v3523 = vunpack.c.l.b16 %v3469
  %v3524 = vunpack.c.l.b16 %v3481
  %v3525 = vunpack.c.l.b16 %v3493
  %v3526 = vpack.c.b16 %v3511, %v3510
  %v3527 = vpack.c.b16 %v3513, %v3512
  %v3528 = vpack.c.b16 %v3515, %v3514
  %v3529 = vpack.c.b16 %v3517, %v3516
  %v3530 = vpack.c.b16 %v3519, %v3518
  %v3531 = vpack.c.b16 %v3521, %v3520
  %v3532 = vpack.c.b16 %v3523, %v3522
  %v3533 = vpack.c.b16 %v3525, %v3524
  %v3542 = vadd.bf16 %v3278, %v3526
  %v3543 = vadd.bf16 %v3279, %v3527
  %v3544 = vadd.bf16 %v3280, %v3528
  %v3545 = vadd.bf16 %v3281, %v3529
  %v3546 = vadd.bf16 %v3282, %v3530
  %v3547 = vadd.bf16 %v3283, %v3531
  %v3548 = vadd.bf16 %v3284, %v3532
  %v3549 = vadd.bf16 %v3285, %v3533
  %v3550 = vmax.bf16 %v3542, 0
  %v3551 = vmax.bf16 %v3543, 0
  %v3552 = vmax.bf16 %v3544, 0
  %v3553 = vmax.bf16 %v3545, 0
  %v3554 = vmax.bf16 %v3546, 0
  %v3555 = vmax.bf16 %v3547, 0
  %v3556 = vmax.bf16 %v3548, 0
  %v3557 = vmax.bf16 %v3549, 0
  %v3558 = vld [vmem:[%s7] sm:$0xf]
  %v3559 = vld [vmem:[%s7 + $0x4] sm:$0xf]
  %v3560 = vld [vmem:[%s7 + $0x8] sm:$0xf]
  %v3561 = vld [vmem:[%s7 + $0xc] sm:$0xf]
  %v3562 = vld [vmem:[%s7 + $0x10] sm:$0xf]
  %v3563 = vld [vmem:[%s7 + $0x14] sm:$0xf]
  %v3564 = vld [vmem:[%s7 + $0x18] sm:$0xf]
  %v3565 = vld [vmem:[%s7 + $0x1c] sm:$0xf]
  %v3574 = vunpack.c.l.b16 %v3558
  %v3575 = vunpack.c.l.b16 %v3559
  %v3576 = vunpack.c.l.b16 %v3560
  %v3577 = vunpack.c.l.b16 %v3561
  %v3578 = vunpack.c.l.b16 %v3562
  %v3579 = vunpack.c.l.b16 %v3563
  %v3580 = vunpack.c.l.b16 %v3564
  %v3581 = vunpack.c.l.b16 %v3565
  %v3582 = vpack.c.b16 %v3575, %v3574
  %v3583 = vpack.c.b16 %v3577, %v3576
  %v3584 = vpack.c.b16 %v3579, %v3578
  %v3585 = vpack.c.b16 %v3581, %v3580
  %3590 = vmatprep.subr.bf16.mxu0 0
  %3591 = vmatpush1.bf16.msra.mxu0 %v3557
  %3592 = vmatprep.subr.bf16.mxu0 0
  %3593 = vmatpush1.bf16.msra.mxu0 %v3556
  %3594 = vmatprep.subr.bf16.mxu0 0
  %3595 = vmatpush1.bf16.msra.mxu0 %v3555
  %3596 = vmatprep.subr.bf16.mxu0 0
  %3597 = vmatpush1.bf16.msra.mxu0 %v3554
  %3598 = vmatprep.subr.bf16.mxu0 0
  %3599 = vmatpush1.bf16.msra.mxu0 %v3553
  %3600 = vmatprep.subr.bf16.mxu0 0
  %3601 = vmatpush1.bf16.msra.mxu0 %v3552
  %3602 = vmatprep.subr.bf16.mxu0 0
  %3603 = vmatpush1.bf16.msra.mxu0 %v3551
  %3604 = vmatprep.subr.bf16.mxu0 0
  %3605 = vmatpush1.bf16.msra.mxu0 %v3550
  %3606 = vmatprep.subr.bf16.mxu0 0
  %3607 = vmatpush2.bf16.msra.mxu0 0
  %3608 = vmatprep.subr.bf16.mxu0 0
  %3609 = vmatpush2.bf16.msra.mxu0 0
  %3610 = vmatprep.subr.bf16.mxu0 0
  %3611 = vmatpush2.bf16.msra.mxu0 0
  %3612 = vmatprep.subr.bf16.mxu0 0
  %3613 = vmatpush2.bf16.msra.mxu0 0
  %3614 = vmatprep.subr.bf16.mxu0 0
  %3615 = vmatpush2.bf16.msra.mxu0 0
  %3616 = vmatprep.subr.bf16.mxu0 0
  %3617 = vmatpush2.bf16.msra.mxu0 0
  %3618 = vmatprep.subr.bf16.mxu0 0
  %3619 = vmatpush2.bf16.msra.mxu0 0
  %3620 = vmatprep.subr.bf16.mxu0 0
  %3621 = vmatpush2.bf16.msra.mxu0 0
  %3622 = vmatprep.mubr.bf16.mxu0 0
  %3623 = vmatmul.mubr.bf16.gmra.mxu0 %v3582
  %v3624 = vpop.f32.mrf.mxu0
  %v3625 = vadd.f32 0.0, %v3624
  %v3626 = vpop.f32.mrf.mxu0
  %v3627 = vpop.f32.mrf.mxu0
  %v3628 = vadd.f32 0.0, %v3627
  %v3629 = vpop.f32.mrf.mxu0
  %3630 = vmatprep.mubr.bf16.mxu0 0
  %3631 = vmatmul.mubr.bf16.gmra.mxu0 %v3583
  %v3632 = vpop.f32.mrf.mxu0
  %v3633 = vadd.f32 0.0, %v3632
  %v3634 = vpop.f32.mrf.mxu0
  %v3635 = vpop.f32.mrf.mxu0
  %v3636 = vadd.f32 0.0, %v3635
  %v3637 = vpop.f32.mrf.mxu0
  %3638 = vmatprep.mubr.bf16.mxu0 0
  %3639 = vmatmul.mubr.bf16.gmra.mxu0 %v3584
  %v3640 = vpop.f32.mrf.mxu0
  %v3641 = vadd.f32 0.0, %v3640
  %v3642 = vpop.f32.mrf.mxu0
  %v3643 = vpop.f32.mrf.mxu0
  %v3644 = vadd.f32 0.0, %v3643
  %v3645 = vpop.f32.mrf.mxu0
  %3646 = vmatprep.mubr.bf16.mxu0 0
  %3647 = vmatmul.mubr.bf16.gmra.mxu0 %v3585
  %v3648 = vpop.f32.mrf.mxu0
  %v3649 = vadd.f32 0.0, %v3648
  %v3650 = vpop.f32.mrf.mxu0
  %v3651 = vpop.f32.mrf.mxu0
  %v3652 = vadd.f32 0.0, %v3651
  %v3653 = vpop.f32.mrf.mxu0
  %3654 = vdwg.mxu0
  %v3655 = vpack.c.bf16 %v3628, %v3625
  %v3656 = vpack.c.bf16 %v3636, %v3633
  %v3657 = vpack.c.bf16 %v3644, %v3641
  %v3658 = vpack.c.bf16 %v3652, %v3649
  %v3659 = vld [vmem:[%s8] sm:$0xf]
  %v3660 = vld [vmem:[%s8 + $0x4] sm:$0xf]
  %v3661 = vld [vmem:[%s8 + $0x8] sm:$0xf]
  %v3662 = vld [vmem:[%s8 + $0xc] sm:$0xf]
  %v3663 = vld [vmem:[%s8 + $0x10] sm:$0xf]
  %v3664 = vld [vmem:[%s8 + $0x14] sm:$0xf]
  %v3665 = vld [vmem:[%s8 + $0x18] sm:$0xf]
  %v3666 = vld [vmem:[%s8 + $0x1c] sm:$0xf]
  %3668 = vset.pattern.permute.xlu0 0
  %3669 = vperm.xlu0 %3668, %v3659
  %v3670 = vpop.permute.xlu0 %3669
  %v3673 = vunpack.c.l.s4 839922192
  %v3674 = vunpack.c.0.s8 %v3673
  %v3675 = vlaneseq
  %v3676 = vshrl.u32 %v3675, 7
  %v3677 = vsub.s32 %v3674, %v3676
  %v3678 = vrot.slane %v3670, %v3677
  %3680 = vset.pattern.permute.xlu0 0
  %3681 = vperm.xlu0 %3680, %v3660
  %v3682 = vpop.permute.xlu0 %3681
  %v3685 = vunpack.c.l.s4 839922192
  %v3686 = vunpack.c.0.s8 %v3685
  %v3687 = vlaneseq
  %v3688 = vshrl.u32 %v3687, 7
  %v3689 = vsub.s32 %v3686, %v3688
  %v3690 = vrot.slane %v3682, %v3689
  %3692 = vset.pattern.permute.xlu0 0
  %3693 = vperm.xlu0 %3692, %v3661
  %v3694 = vpop.permute.xlu0 %3693
  %v3697 = vunpack.c.l.s4 839922192
  %v3698 = vunpack.c.0.s8 %v3697
  %v3699 = vlaneseq
  %v3700 = vshrl.u32 %v3699, 7
  %v3701 = vsub.s32 %v3698, %v3700
  %v3702 = vrot.slane %v3694, %v3701
  %3704 = vset.pattern.permute.xlu0 0
  %3705 = vperm.xlu0 %3704, %v3662
  %v3706 = vpop.permute.xlu0 %3705
  %v3709 = vunpack.c.l.s4 839922192
  %v3710 = vunpack.c.0.s8 %v3709
  %v3711 = vlaneseq
  %v3712 = vshrl.u32 %v3711, 7
  %v3713 = vsub.s32 %v3710, %v3712
  %v3714 = vrot.slane %v3706, %v3713
  %3716 = vset.pattern.permute.xlu0 0
  %3717 = vperm.xlu0 %3716, %v3663
  %v3718 = vpop.permute.xlu0 %3717
  %v3721 = vunpack.c.l.s4 839922192
  %v3722 = vunpack.c.0.s8 %v3721
  %v3723 = vlaneseq
  %v3724 = vshrl.u32 %v3723, 7
  %v3725 = vsub.s32 %v3722, %v3724
  %v3726 = vrot.slane %v3718, %v3725
  %3728 = vset.pattern.permute.xlu0 0
  %3729 = vperm.xlu0 %3728, %v3664
  %v3730 = vpop.permute.xlu0 %3729
  %v3733 = vunpack.c.l.s4 839922192
  %v3734 = vunpack.c.0.s8 %v3733
  %v3735 = vlaneseq
  %v3736 = vshrl.u32 %v3735, 7
  %v3737 = vsub.s32 %v3734, %v3736
  %v3738 = vrot.slane %v3730, %v3737
  %3740 = vset.pattern.permute.xlu0 0
  %3741 = vperm.xlu0 %3740, %v3665
  %v3742 = vpop.permute.xlu0 %3741
  %v3745 = vunpack.c.l.s4 839922192
  %v3746 = vunpack.c.0.s8 %v3745
  %v3747 = vlaneseq
  %v3748 = vshrl.u32 %v3747, 7
  %v3749 = vsub.s32 %v3746, %v3748
  %v3750 = vrot.slane %v3742, %v3749
  %3752 = vset.pattern.permute.xlu0 0
  %3753 = vperm.xlu0 %3752, %v3666
  %v3754 = vpop.permute.xlu0 %3753
  %v3757 = vunpack.c.l.s4 839922192
  %v3758 = vunpack.c.0.s8 %v3757
  %v3759 = vlaneseq
  %v3760 = vshrl.u32 %v3759, 7
  %v3761 = vsub.s32 %v3758, %v3760
  %v3762 = vrot.slane %v3754, %v3761
  %v3771 = vunpack.c.l.b16 %v3678
  %v3772 = vunpack.c.l.b16 %v3690
  %v3773 = vunpack.c.l.b16 %v3702
  %v3774 = vunpack.c.l.b16 %v3714
  %v3775 = vunpack.c.l.b16 %v3726
  %v3776 = vunpack.c.l.b16 %v3738
  %v3777 = vunpack.c.l.b16 %v3750
  %v3778 = vunpack.c.l.b16 %v3762
  %v3779 = vpack.c.b16 %v3772, %v3771
  %v3780 = vpack.c.b16 %v3774, %v3773
  %v3781 = vpack.c.b16 %v3776, %v3775
  %v3782 = vpack.c.b16 %v3778, %v3777
  %v3787 = vadd.bf16 %v3655, %v3779
  %v3788 = vadd.bf16 %v3656, %v3780
  %v3789 = vadd.bf16 %v3657, %v3781
  %v3790 = vadd.bf16 %v3658, %v3782
  %v3791 = vmax.bf16 %v3787, 0
  %v3792 = vmax.bf16 %v3788, 0
  %v3793 = vmax.bf16 %v3789, 0
  %v3794 = vmax.bf16 %v3790, 0
  %v3795 = vunpack.c.l.bf16 %v3791
  %v3796 = vunpack.c.h.bf16 %v3791
  %v3797 = vunpack.c.l.bf16 %v3792
  %v3798 = vunpack.c.h.bf16 %v3792
  %v3799 = vunpack.c.l.bf16 %v3793
  %v3800 = vunpack.c.h.bf16 %v3793
  %v3801 = vunpack.c.l.bf16 %v3794
  %v3802 = vunpack.c.h.bf16 %v3794
  %v3803 = vld [vmem:[%s9] sm:$0xff]
  %v3804 = vld [vmem:[%s9 + $0x8] sm:$0xff]
  %v3805 = vld [vmem:[%s9 + $0x10] sm:$0xff]
  %v3806 = vld [vmem:[%s9 + $0x18] sm:$0xff]
  %v3807 = vld [vmem:[%s9 + $0x20] sm:$0xff]
  %v3808 = vld [vmem:[%s9 + $0x28] sm:$0xff]
  %v3809 = vld [vmem:[%s9 + $0x30] sm:$0xff]
  %v3810 = vld [vmem:[%s9 + $0x38] sm:$0xff]
  %3812 = vset.pattern.permute.xlu0 0
  %3813 = vperm.xlu0 %3812, %v3803
  %v3814 = vpop.permute.xlu0 %3813
  %3817 = vset.pattern.permute.xlu0 0
  %3818 = vperm.xlu0 %3817, %v3804
  %v3819 = vpop.permute.xlu0 %3818
  %3822 = vset.pattern.permute.xlu0 0
  %3823 = vperm.xlu0 %3822, %v3805
  %v3824 = vpop.permute.xlu0 %3823
  %3827 = vset.pattern.permute.xlu0 0
  %3828 = vperm.xlu0 %3827, %v3806
  %v3829 = vpop.permute.xlu0 %3828
  %3832 = vset.pattern.permute.xlu0 0
  %3833 = vperm.xlu0 %3832, %v3807
  %v3834 = vpop.permute.xlu0 %3833
  %3837 = vset.pattern.permute.xlu0 0
  %3838 = vperm.xlu0 %3837, %v3808
  %v3839 = vpop.permute.xlu0 %3838
  %3842 = vset.pattern.permute.xlu0 0
  %3843 = vperm.xlu0 %3842, %v3809
  %v3844 = vpop.permute.xlu0 %3843
  %3847 = vset.pattern.permute.xlu0 0
  %3848 = vperm.xlu0 %3847, %v3810
  %v3849 = vpop.permute.xlu0 %3848
  %v3851 = vmul.f32 %v3795, %v3814
  %v3852 = vmul.f32 %v3796, %v3819
  %v3853 = vmul.f32 %v3797, %v3824
  %v3854 = vmul.f32 %v3798, %v3829
  %v3855 = vmul.f32 %v3799, %v3834
  %v3856 = vmul.f32 %v3800, %v3839
  %v3857 = vmul.f32 %v3801, %v3844
  %v3858 = vmul.f32 %v3802, %v3849
  %v3859 = vadd.f32 %v3851, %v3852
  %v3860 = vadd.f32 %v3859, %v3853
  %v3861 = vadd.f32 %v3860, %v3854
  %v3862 = vadd.f32 %v3861, %v3855
  %v3863 = vadd.f32 %v3862, %v3856
  %v3864 = vadd.f32 %v3863, %v3857
  %v3865 = vadd.f32 %v3864, %v3858
  %v3866 = vrot.slane %v3865, 4
  %v3867 = vadd.f32 %v3865, %v3866
  %v3868 = vrot.slane %v3867, 2
  %v3869 = vadd.f32 %v3867, %v3868
  %v3870 = vrot.slane %v3869, 1
  %v3871 = vadd.f32 %v3869, %v3870
  %v3872 = vld [vmem:[#allocation2] sm:$0x1]
  %3874 = vset.pattern.permute.xlu0 0
  %3875 = vperm.xlu0 %3874, %v3872
  %v3876 = vpop.permute.xlu0 %3875
  %v3878 = vlaneseq
  %v3879 = vshrl.u32 %v3878, 7
  %v3880 = vsub.s32 0, %v3879
  %v3881 = vrot.slane %v3876, %v3880
  %v3882 = vadd.f32 %v3871, %v3881
  %v3883 = vsub.f32 0.0, %v3882
  %v3884 = vmul.f32 %v3883, 1.442695
  %v3885 = vpow.pop %v3884
  %v3886 = vadd.f32 %v3885, 1.0
  %v3887 = vrcp.pop %v3886
  %3888 = vst [vmem:[%s11] sm:$0x1] %v3887
  // Predicated region
  $region46: #{regressor_forward.1} parent=0 // pred_check
    _
  $region47: #{regressor_forward.1} parent=0 // pred_check_branch
    %3890 = sbr.rel (0) target = $region49
  $region48: #{regressor_forward.1} parent=0 // pred_region
    _
  $region49: #{regressor_forward.1} parent=0 // pred_fallthru
    _
  // Predicated region
  $region50: #{regressor_forward.1} parent=0 // pred_check
    _
  $region51: #{regressor_forward.1} parent=0 // pred_check_branch
    %3892 = sbr.rel (0) target = $region53
  $region52: #{regressor_forward.1} parent=0 // pred_region
    _
  $region53: #{regressor_forward.1} parent=0 // pred_fallthru
    _

</llo_original>
